<compile_context>
chip_gen: v5e
topology: v5e:2x2
jax: 0.10.0
libtpu: 0.0.40
codegen_flags: <defaults>
</compile_context>

<pallas_src>
import functools

import jax
import jax.numpy as jnp
from jax import lax
from jax.experimental import pallas as pl
from jax.experimental.pallas import tpu as pltpu


def _round_up(v, m):
    return (v + m - 1) // m * m


# -----------------------------------------------------------------------------
# Fused kernel: body (residual dilated convs) + shape head + counts head
# -----------------------------------------------------------------------------
def _fused_kernel(x_ref, wbody_ref, bbody_ref, wp_ref, bp_ref, *rest,
                  n_mlp_pairs, C, L, Bt, layer_cfg, G, SEG, Kp, L_out, T):
    mlp_refs = rest[:2 * n_mlp_pairs]
    prof_ref, cnt_ref = rest[2 * n_mlp_pairs], rest[2 * n_mlp_pairs + 1]
    xpad_ref, stack_ref = rest[2 * n_mlp_pairs + 2:]
    f32, bf16 = jnp.float32, jnp.bfloat16
    N = Bt * SEG                      # batch folded into lanes; stride SEG (mult of 128)
    Wtot = N + 2 * G                  # plus zero-guard columns on both sides

    # --- zero guards + per-segment right margins (interiors overwritten below).
    # Margins/guards must hold zeros before the first body layer ('same' padding);
    # the masked write-back re-zeroes the per-segment margins every layer.  Done
    # every grid step (cheap: margins only) for megacore-safety.
    if G > 0:
        xpad_ref[:, 0:G] = jnp.zeros((C, G), f32)
        xpad_ref[:, G + N:Wtot] = jnp.zeros((C, G), f32)
    if SEG > L:
        for b in range(Bt):
            xpad_ref[:, G + b * SEG + L:G + (b + 1) * SEG] = \
                jnp.zeros((C, SEG - L), f32)

    # --- copy input tile into the interiors (128-aligned starts) -------------
    for b in range(Bt):
        xpad_ref[:, G + b * SEG:G + b * SEG + L] = x_ref[b].astype(f32)

    # interior-column mask: True where (col % SEG) < L (built without int div)
    seg_col = lax.broadcasted_iota(jnp.int32, (1, SEG), 1)
    interior = jnp.tile(seg_col < L, (1, Bt))                       # (1, N) bool

    # --- body: residual dilated convs, activation resident in VMEM -----------
    # out = relu(conv1d_same_dilated(x)) + x ; K taps stacked into ONE matmul,
    # all batches folded into the lane (N) dimension.
    for li, (K, d) in enumerate(layer_cfg):
        p = d * (K - 1) // 2
        for k in range(K):            # one lane-shifted slab copy per tap (all batches)
            s = G + k * d - p
            stack_ref[k * C:(k + 1) * C, :] = xpad_ref[:, s:s + N].astype(bf16)
        y = jnp.dot(wbody_ref[li, :, 0:K * C], stack_ref[0:K * C, :],
                    preferred_element_type=f32)                     # (C, N) f32
        y = jnp.maximum(y + bbody_ref[li], 0.0) + xpad_ref[:, G:G + N]
        # single aligned dense store; cross-segment garbage re-zeroed via mask
        xpad_ref[:, G:G + N] = jnp.where(interior, y, 0.0)

    # --- shape head: 'valid' conv as Kp accumulated per-tap matmuls ----------
    logits = jnp.zeros((T, N), f32)
    for k in range(Kp):
        rhs = xpad_ref[:, G + k:G + k + N].astype(bf16)
        logits = logits + jnp.dot(wp_ref[k], rhs, preferred_element_type=f32)
    logits = logits + bp_ref[...]

    prof = []
    for b in range(Bt):
        lg = logits[:, b * SEG:b * SEG + L_out]                     # (T, L_out)
        m = jnp.max(lg, axis=-1, keepdims=True)
        e = jnp.exp(lg - m)
        inv = pl.reciprocal(jnp.sum(e, axis=-1, keepdims=True), approx=True)
        prof.append(e * inv)
    prof_ref[...] = jnp.stack(prof, axis=0).astype(prof_ref.dtype)  # one slab store

    # --- counts head: GAP (while resident) + MLP + softplus, channel-major ---
    gap = [jnp.mean(xpad_ref[:, G + b * SEG:G + b * SEG + L], axis=-1,
                    keepdims=True) for b in range(Bt)]
    h = jnp.concatenate(gap, axis=1)                                # (C, Bt) f32
    for j in range(n_mlp_pairs - 1):
        Wr, br = mlp_refs[2 * j], mlp_refs[2 * j + 1]
        h = jnp.maximum(jnp.dot(Wr[...], h, preferred_element_type=f32)
                        + br[...], 0.0)
    Wl, bl = mlp_refs[-2], mlp_refs[-1]
    cl = jnp.dot(Wl[...], h, preferred_element_type=f32) + bl[...]  # (T, Bt)
    sp = jnp.maximum(cl, 0.0) + jnp.log1p(jnp.exp(-jnp.abs(cl)))
    cnt_ref[0] = sp.astype(cnt_ref.dtype)


# -----------------------------------------------------------------------------
# Wrapper: weight prep, Bt selection from a VMEM budget, single pallas_call
# -----------------------------------------------------------------------------
def base_regressor_forward(x, params, *, batch_tile=None,
                           vmem_budget_bytes=40 * 1024 * 1024):
    B, C, L = x.shape
    body_params = params["body"]
    assert len(body_params) >= 1
    layer_cfg = tuple((int(w.shape[-1]), int(d)) for (w, _, d) in body_params)
    for K, _ in layer_cfg:
        assert K % 2 == 1, "'same' padding here assumes odd kernel sizes"
    Kmax = max(K for K, _ in layer_cfg)
    pad_max = max(d * (K - 1) // 2 for K, d in layer_cfg)
    n_layers = len(layer_cfg)

    wp = params["w_prof"]
    T, _, Kp = wp.shape
    L_out = L - Kp + 1                                    # padding='valid'

    mlp = params["counts_mlp"]                            # [(W(out,in), b(out,))]
    n_mlp_pairs = len(mlp)

    # lane-aligned padded layout constants
    SEG = _round_up(L + pad_max, 128)                     # per-batch lane stride
    G = _round_up(pad_max, 128)                           # aligned guard/margin

    out_itemsize = jnp.dtype(x.dtype).itemsize
    w_bytes = (n_layers * C * Kmax * C * 2 + n_layers * C * 4       # body w + b
               + Kp * T * C * 2 + T * 4                             # shape head
               + sum(Wm.size * 4 + bv.size * 4 for (Wm, bv) in mlp))

    def vmem_bytes(bt):
        n = bt * SEG
        scratch = C * (n + 2 * G) * 4 + Kmax * C * n * 2            # xpad + stack
        io = (2 * bt * C * L * 2                                    # bf16 input x2
              + 2 * bt * T * L_out * out_itemsize + 2 * T * bt * 4)  # outputs x2
        return scratch + io + 2 * w_bytes

    # Bt: largest divisor of B fitting the budget; cap at B//2 so the batch grid
    # has >= 2 steps (both v7x TensorCores get work).
    max_bt = B if B < 2 else max(1, B // 2)
    if batch_tile is not None:
        max_bt = max(1, min(max_bt, batch_tile))
    cands = [t for t in range(max_bt, 0, -1) if B % t == 0]
    Bt = next((t for t in cands if vmem_bytes(t) <= vmem_budget_bytes), cands[-1])
    nb = B // Bt
    vmem_limit = int(min(64 * 1024 * 1024,
                         max(32 * 1024 * 1024, vmem_bytes(Bt) * 5 // 4)))

    # ---- weight prep (cheap XLA ops, outside the kernel) ----
    wflat, bstk = [], []
    for (w, b, _) in body_params:
        K = w.shape[-1]
        wf = jnp.transpose(w, (0, 2, 1)).reshape(C, K * C)  # [o, k*C + c] = w[o,c,k]
        wf = jnp.pad(wf, ((0, 0), (0, (Kmax - K) * C)))
        wflat.append(wf)
        bstk.append(b.reshape(C, 1).astype(jnp.float32))
    wbody = jnp.stack(wflat).astype(jnp.bfloat16)           # (nl, C, Kmax*C)
    bbody = jnp.stack(bstk)                                  # (nl, C, 1)

    wp3 = jnp.transpose(wp, (2, 0, 1)).astype(jnp.bfloat16)  # (Kp, T, C)
    bp = params["b_prof"].reshape(T, 1).astype(jnp.float32)

    mlp_flat = []
    for (Wm, bv) in mlp:
        mlp_flat += [Wm.astype(jnp.float32), bv.reshape(-1, 1).astype(jnp.float32)]

    x_bf = x.astype(jnp.bfloat16)                            # half the input DMA

    kern = functools.partial(
        _fused_kernel, n_mlp_pairs=n_mlp_pairs, C=C, L=L, Bt=Bt,
        layer_cfg=layer_cfg, G=G, SEG=SEG, Kp=Kp, L_out=L_out, T=T)

    in_specs = [
        pl.BlockSpec((Bt, C, L), lambda i: (i, 0, 0)),
        pl.BlockSpec(wbody.shape, lambda i: (0, 0, 0)),
        pl.BlockSpec(bbody.shape, lambda i: (0, 0, 0)),
        pl.BlockSpec(wp3.shape, lambda i: (0, 0, 0)),
        pl.BlockSpec(bp.shape, lambda i: (0, 0)),
    ]
    in_specs += [pl.BlockSpec(a.shape, lambda i: (0, 0)) for a in mlp_flat]

    out_shape = (jax.ShapeDtypeStruct((B, T, L_out), x.dtype),
                 jax.ShapeDtypeStruct((nb, T, Bt), x.dtype))
    out_specs = (pl.BlockSpec((Bt, T, L_out), lambda i: (i, 0, 0)),
                 pl.BlockSpec((1, T, Bt), lambda i: (i, 0, 0)))

    scratch_shapes = [
        pltpu.VMEM((C, Bt * SEG + 2 * G), jnp.float32),   # padded activations (f32)
        pltpu.VMEM((Kmax * C, Bt * SEG), jnp.bfloat16),   # staged conv taps (bf16)
    ]

    profile, counts_blk = pl.pallas_call(
        kern,
        out_shape=out_shape,
        grid=(nb,),
        in_specs=in_specs,
        out_specs=out_specs,
        scratch_shapes=scratch_shapes,
        compiler_params=pltpu.CompilerParams(
            dimension_semantics=("parallel",),
            vmem_limit_bytes=vmem_limit),
    )(x_bf, wbody, bbody, wp3, bp, *mlp_flat)

    counts = jnp.transpose(counts_blk, (0, 2, 1)).reshape(B, T)
    return profile, counts


# -----------------------------------------------------------------------------
# Pure-JAX reference (same assumed ResidualConv semantics), for validation
# -----------------------------------------------------------------------------
def _reference_forward(x, params):
    def conv_same(z, w, b, d):
        K = w.shape[-1]
        p = d * (K - 1) // 2
        Lz = z.shape[-1]
        zp = jnp.pad(z, ((0, 0), (0, 0), (p, p)))
        out = jnp.zeros((z.shape[0], w.shape[0], Lz), jnp.float32)
        for k in range(K):
            out = out + jnp.einsum("oc,bcl->bol", w[:, :, k],
                                   zp[:, :, k * d:k * d + Lz])
        return out + b[None, :, None]

    body = x
    for (w, b, d) in params["body"]:
        body = jax.nn.relu(conv_same(body, w, b, d)) + body

    wp, bp = params["w_prof"], params["b_prof"]
    Kp = wp.shape[-1]
    L_out = body.shape[-1] - Kp + 1
    logits = jnp.zeros((x.shape[0], wp.shape[0], L_out), jnp.float32)
    for k in range(Kp):
        logits = logits + jnp.einsum("oc,bcl->bol", wp[:, :, k],
                                     body[:, :, k:k + L_out])
    logits = logits + bp[None, :, None]
    profile = jax.nn.softmax(logits, axis=2)

    h = body.mean(axis=2)
    for (W, bb) in params["counts_mlp"][:-1]:
        h = jax.nn.relu(h @ W.T + bb)
    W, bb = params["counts_mlp"][-1]
    counts = jax.nn.softplus(h @ W.T + bb)
    return profile, counts


# -----------------------------------------------------------------------------
# Deterministic parameter construction + example run
# -----------------------------------------------------------------------------
def make_params(key, *, filters, n_non_dil_layers, non_dil_kernel_size,
                n_dil_layers, dil_kernel_size, profile_kernel_size,
                counts_head_mlp_layers, num_tasks):
    keys = iter(jax.random.split(key, 64))
    body = []
    for _ in range(n_non_dil_layers):
        w = jax.random.normal(next(keys), (filters, filters, non_dil_kernel_size),
                              jnp.float32) * 0.05
        b = jax.random.normal(next(keys), (filters,), jnp.float32) * 0.01
        body.append((w, b, 1))
    for i in range(n_dil_layers):
        w = jax.random.normal(next(keys), (filters, filters, dil_kernel_size),
                              jnp.float32) * 0.05
        b = jax.random.normal(next(keys), (filters,), jnp.float32) * 0.01
        body.append((w, b, 2 ** (i + 1)))
    w_prof = jax.random.normal(next(keys), (num_tasks, filters, profile_kernel_size),
                               jnp.float32) * 0.05
    b_prof = jax.random.normal(next(keys), (num_tasks,), jnp.float32) * 0.01
    mlp = []
    in_dim = filters
    for _ in range(counts_head_mlp_layers):
        W = jax.random.normal(next(keys), (filters, in_dim), jnp.float32) * 0.05
        b = jax.random.normal(next(keys), (filters,), jnp.float32) * 0.01
        mlp.append((W, b))
        in_dim = filters
    W = jax.random.normal(next(keys), (num_tasks, in_dim), jnp.float32) * 0.05
    b = jax.random.normal(next(keys), (num_tasks,), jnp.float32) * 0.01
    mlp.append((W, b))
    return {"body": body, "w_prof": w_prof, "b_prof": b_prof, "counts_mlp": mlp}


if __name__ == "__main__":
    # small, forward-consistent shapes (B=4 -> Bt=2, nb=2 grid steps)
    B, filters, L = 4, 32, 64
    n_non_dil_layers, non_dil_kernel_size = 1, 3
    n_dil_layers, dil_kernel_size = 3, 3          # dilations 2, 4, 8
    profile_kernel_size = 9
    counts_head_mlp_layers = 3
    num_tasks = 1

    root = jax.random.PRNGKey(0)
    kx, kp = jax.random.split(root)
    x = jax.random.normal(kx, (B, filters, L), jnp.float32)
    params = make_params(
        kp, filters=filters, n_non_dil_layers=n_non_dil_layers,
        non_dil_kernel_size=non_dil_kernel_size, n_dil_layers=n_dil_layers,
        dil_kernel_size=dil_kernel_size, profile_kernel_size=profile_kernel_size,
        counts_head_mlp_layers=counts_head_mlp_layers, num_tasks=num_tasks)

    fwd = jax.jit(lambda xx: base_regressor_forward(xx, params))
    profile, counts = fwd(x)
    jax.block_until_ready((profile, counts))

    L_out = L - profile_kernel_size + 1
    assert profile.shape == (B, num_tasks, L_out), profile.shape
    assert counts.shape == (B, num_tasks), counts.shape
    assert bool(jnp.all(jnp.isfinite(profile))) and bool(jnp.all(jnp.isfinite(counts)))
    # softmax over dim=2 sums to 1 (approx reciprocal -> ~1e-3); softplus positive
    assert bool(jnp.allclose(jnp.sum(profile, axis=2), 1.0, atol=5e-3))
    assert bool(jnp.all(counts > 0.0))

    # cross-check against a pure-JAX f32 reference (kernel uses bf16 MXU operands
    # and bf16 input transfer, hence the modest tolerances)
    prof_ref, cnt_ref = _reference_forward(x, params)
    assert bool(jnp.allclose(profile, prof_ref, rtol=5e-2, atol=5e-3)), \
        float(jnp.max(jnp.abs(profile - prof_ref)))
    assert bool(jnp.allclose(counts, cnt_ref, rtol=2e-2, atol=2e-2)), \
        float(jnp.max(jnp.abs(counts - cnt_ref)))

    print("KERNEL_OK")
</pallas_src>

<mosaic_0001>
module attributes {stable_mosaic.version = 11 : i64} {
  func.func @_fused_kernel(%arg0: i32, %arg1: memref<2x32x64xbf16, #tpu.memory_space<vmem>>, %arg2: memref<4x32x96xbf16, #tpu.memory_space<vmem>>, %arg3: memref<4x32x1xf32, #tpu.memory_space<vmem>>, %arg4: memref<9x1x32xbf16, #tpu.memory_space<vmem>>, %arg5: memref<1x1xf32, #tpu.memory_space<vmem>>, %arg6: memref<32x32xf32, #tpu.memory_space<vmem>>, %arg7: memref<32x1xf32, #tpu.memory_space<vmem>>, %arg8: memref<32x32xf32, #tpu.memory_space<vmem>>, %arg9: memref<32x1xf32, #tpu.memory_space<vmem>>, %arg10: memref<32x32xf32, #tpu.memory_space<vmem>>, %arg11: memref<32x1xf32, #tpu.memory_space<vmem>>, %arg12: memref<1x32xf32, #tpu.memory_space<vmem>>, %arg13: memref<1x1xf32, #tpu.memory_space<vmem>>, %arg14: memref<2x1x56xf32, #tpu.memory_space<vmem>>, %arg15: memref<1x1x2xf32, #tpu.memory_space<vmem>>, %arg16: memref<32x512xf32, #tpu.memory_space<vmem>>, %arg17: memref<96x256xbf16, #tpu.memory_space<vmem>>) attributes {dimension_semantics = [#tpu.dimension_semantics<parallel>], iteration_bounds = array<i64: 2>, scalar_prefetch = 0 : i64, scratch_operands = 2 : i64, tpu.core_type = #tpu.core_type<tc>, window_params = [{transform_indices = @transform_0, window_bounds = array<i64: 2, 32, 64>}, {pipeline_mode = #tpu.pipeline_mode<synchronous>, transform_indices = @transform_1, window_bounds = array<i64: 4, 32, 96>}, {pipeline_mode = #tpu.pipeline_mode<synchronous>, transform_indices = @transform_2, window_bounds = array<i64: 4, 32, 1>}, {pipeline_mode = #tpu.pipeline_mode<synchronous>, transform_indices = @transform_3, window_bounds = array<i64: 9, 1, 32>}, {pipeline_mode = #tpu.pipeline_mode<synchronous>, transform_indices = @transform_4, window_bounds = array<i64: 1, 1>}, {pipeline_mode = #tpu.pipeline_mode<synchronous>, transform_indices = @transform_5, window_bounds = array<i64: 32, 32>}, {pipeline_mode = #tpu.pipeline_mode<synchronous>, transform_indices = @transform_6, window_bounds = array<i64: 32, 1>}, {pipeline_mode = #tpu.pipeline_mode<synchronous>, transform_indices = @transform_7, window_bounds = array<i64: 32, 32>}, {pipeline_mode = #tpu.pipeline_mode<synchronous>, transform_indices = @transform_8, window_bounds = array<i64: 32, 1>}, {pipeline_mode = #tpu.pipeline_mode<synchronous>, transform_indices = @transform_9, window_bounds = array<i64: 32, 32>}, {pipeline_mode = #tpu.pipeline_mode<synchronous>, transform_indices = @transform_10, window_bounds = array<i64: 32, 1>}, {pipeline_mode = #tpu.pipeline_mode<synchronous>, transform_indices = @transform_11, window_bounds = array<i64: 1, 32>}, {pipeline_mode = #tpu.pipeline_mode<synchronous>, transform_indices = @transform_12, window_bounds = array<i64: 1, 1>}, {transform_indices = @transform_13, window_bounds = array<i64: 2, 1, 56>}, {transform_indices = @transform_14, window_bounds = array<i64: 1, 1, 2>}]} {
    %cst = arith.constant 0.000000e+00 : f32
    %0 = vector.broadcast %cst : f32 to vector<32x128xf32>
    %c0 = arith.constant 0 : index
    %c0_0 = arith.constant 0 : index
    %1 = vector.load %arg16[%c0, %c0_0] : memref<32x512xf32, #tpu.memory_space<vmem>>, vector<32x128xf32>
    tpu.vector_store %arg16[%c0, %c0_0], %0 {strides = array<i32>} : memref<32x512xf32, #tpu.memory_space<vmem>>, vector<32x128xf32>,
    %cst_1 = arith.constant 0.000000e+00 : f32
    %2 = vector.broadcast %cst_1 : f32 to vector<32x128xf32>
    %c0_2 = arith.constant 0 : index
    %c384 = arith.constant 384 : index
    %3 = vector.load %arg16[%c0_2, %c384] : memref<32x512xf32, #tpu.memory_space<vmem>>, vector<32x128xf32>
    tpu.vector_store %arg16[%c0_2, %c384], %2 {strides = array<i32>} : memref<32x512xf32, #tpu.memory_space<vmem>>, vector<32x128xf32>,
    %cst_3 = arith.constant 0.000000e+00 : f32
    %4 = vector.broadcast %cst_3 : f32 to vector<32x64xf32>
    %c0_4 = arith.constant 0 : index
    %c192 = arith.constant 192 : index
    %5 = vector.load %arg16[%c0_4, %c192] : memref<32x512xf32, #tpu.memory_space<vmem>>, vector<32x64xf32>
    tpu.vector_store %arg16[%c0_4, %c192], %4 {strides = array<i32>} : memref<32x512xf32, #tpu.memory_space<vmem>>, vector<32x64xf32>,
    %cst_5 = arith.constant 0.000000e+00 : f32
    %6 = vector.broadcast %cst_5 : f32 to vector<32x64xf32>
    %c0_6 = arith.constant 0 : index
    %c320 = arith.constant 320 : index
    %7 = vector.load %arg16[%c0_6, %c320] : memref<32x512xf32, #tpu.memory_space<vmem>>, vector<32x64xf32>
    tpu.vector_store %arg16[%c0_6, %c320], %6 {strides = array<i32>} : memref<32x512xf32, #tpu.memory_space<vmem>>, vector<32x64xf32>,
    %c0_7 = arith.constant 0 : index
    %c0_8 = arith.constant 0 : index
    %c0_9 = arith.constant 0 : index
    %8 = vector.load %arg1[%c0_7, %c0_8, %c0_9] : memref<2x32x64xbf16, #tpu.memory_space<vmem>>, vector<1x32x64xbf16>
    %9 = vector.shape_cast %8 : vector<1x32x64xbf16> to vector<32x64xbf16>
    %10 = arith.extf %9 : vector<32x64xbf16> to vector<32x64xf32>
    %c0_10 = arith.constant 0 : index
    %c128 = arith.constant 128 : index
    %11 = vector.load %arg16[%c0_10, %c128] : memref<32x512xf32, #tpu.memory_space<vmem>>, vector<32x64xf32>
    tpu.vector_store %arg16[%c0_10, %c128], %10 {strides = array<i32>} : memref<32x512xf32, #tpu.memory_space<vmem>>, vector<32x64xf32>,
    %c1 = arith.constant 1 : index
    %c0_11 = arith.constant 0 : index
    %c0_12 = arith.constant 0 : index
    %12 = vector.load %arg1[%c1, %c0_11, %c0_12] : memref<2x32x64xbf16, #tpu.memory_space<vmem>>, vector<1x32x64xbf16>
    %13 = vector.shape_cast %12 : vector<1x32x64xbf16> to vector<32x64xbf16>
    %14 = arith.extf %13 : vector<32x64xbf16> to vector<32x64xf32>
    %c0_13 = arith.constant 0 : index
    %c256 = arith.constant 256 : index
    %15 = vector.load %arg16[%c0_13, %c256] : memref<32x512xf32, #tpu.memory_space<vmem>>, vector<32x64xf32>
    tpu.vector_store %arg16[%c0_13, %c256], %14 {strides = array<i32>} : memref<32x512xf32, #tpu.memory_space<vmem>>, vector<32x64xf32>,
    %16 = tpu.iota {dimensions = array<i32: 1>} : vector<1x128xi32>
    %c64_i32 = arith.constant 64 : i32
    %17 = vector.broadcast %c64_i32 : i32 to vector<1x128xi32>
    %18 = arith.cmpi slt, %16, %17 : vector<1x128xi32>
    %19 = tpu.concatenate %18, %18 in 1 : vector<1x128xi1>, vector<1x128xi1> -> vector<1x256xi1>
    %c0_14 = arith.constant 0 : index
    %c127 = arith.constant 127 : index
    %20 = vector.load %arg16[%c0_14, %c127] : memref<32x512xf32, #tpu.memory_space<vmem>>, vector<32x256xf32>
    %21 = arith.truncf %20 : vector<32x256xf32> to vector<32x256xbf16>
    %c0_15 = arith.constant 0 : index
    %c0_16 = arith.constant 0 : index
    %22 = vector.load %arg17[%c0_15, %c0_16] : memref<96x256xbf16, #tpu.memory_space<vmem>>, vector<32x256xbf16>
    tpu.vector_store %arg17[%c0_15, %c0_16], %21 {strides = array<i32>} : memref<96x256xbf16, #tpu.memory_space<vmem>>, vector<32x256xbf16>,
    %c0_17 = arith.constant 0 : index
    %c128_18 = arith.constant 128 : index
    %23 = vector.load %arg16[%c0_17, %c128_18] : memref<32x512xf32, #tpu.memory_space<vmem>>, vector<32x256xf32>
    %24 = arith.truncf %23 : vector<32x256xf32> to vector<32x256xbf16>
    %c32 = arith.constant 32 : index
    %c0_19 = arith.constant 0 : index
    %25 = vector.load %arg17[%c32, %c0_19] : memref<96x256xbf16, #tpu.memory_space<vmem>>, vector<32x256xbf16>
    tpu.vector_store %arg17[%c32, %c0_19], %24 {strides = array<i32>} : memref<96x256xbf16, #tpu.memory_space<vmem>>, vector<32x256xbf16>,
    %c0_20 = arith.constant 0 : index
    %c129 = arith.constant 129 : index
    %26 = vector.load %arg16[%c0_20, %c129] : memref<32x512xf32, #tpu.memory_space<vmem>>, vector<32x256xf32>
    %27 = arith.truncf %26 : vector<32x256xf32> to vector<32x256xbf16>
    %c64 = arith.constant 64 : index
    %c0_21 = arith.constant 0 : index
    %28 = vector.load %arg17[%c64, %c0_21] : memref<96x256xbf16, #tpu.memory_space<vmem>>, vector<32x256xbf16>
    tpu.vector_store %arg17[%c64, %c0_21], %27 {strides = array<i32>} : memref<96x256xbf16, #tpu.memory_space<vmem>>, vector<32x256xbf16>,
    %c0_22 = arith.constant 0 : index
    %c0_23 = arith.constant 0 : index
    %c0_24 = arith.constant 0 : index
    %29 = vector.load %arg2[%c0_22, %c0_23, %c0_24] : memref<4x32x96xbf16, #tpu.memory_space<vmem>>, vector<1x32x96xbf16>
    %30 = vector.shape_cast %29 : vector<1x32x96xbf16> to vector<32x96xbf16>
    %c0_25 = arith.constant 0 : index
    %c0_26 = arith.constant 0 : index
    %31 = vector.load %arg17[%c0_25, %c0_26] : memref<96x256xbf16, #tpu.memory_space<vmem>>, vector<96x256xbf16>
    %cst_27 = arith.constant dense<0.000000e+00> : vector<32x256xf32>
    %32 = tpu.matmul %30, %31, %cst_27 {dimension_numbers = #tpu.dot_dimension_numbers<[1], [0], [0], [1], [0, 0, 1, 1], [], []>} : vector<32x96xbf16>, vector<96x256xbf16>, vector<32x256xf32> -> vector<32x256xf32>
    %c0_28 = arith.constant 0 : index
    %c0_29 = arith.constant 0 : index
    %c0_30 = arith.constant 0 : index
    %33 = vector.load %arg3[%c0_28, %c0_29, %c0_30] : memref<4x32x1xf32, #tpu.memory_space<vmem>>, vector<1x32x1xf32>
    %34 = vector.shape_cast %33 : vector<1x32x1xf32> to vector<32x1xf32>
    %35 = vector.broadcast %34 : vector<32x1xf32> to vector<32x256xf32>
    %36 = arith.addf %32, %35 : vector<32x256xf32>
    %cst_31 = arith.constant 0.000000e+00 : f32
    %37 = vector.broadcast %cst_31 : f32 to vector<32x256xf32>
    %38 = arith.maximumf %36, %37 : vector<32x256xf32>
    %c0_32 = arith.constant 0 : index
    %c128_33 = arith.constant 128 : index
    %39 = vector.load %arg16[%c0_32, %c128_33] : memref<32x512xf32, #tpu.memory_space<vmem>>, vector<32x256xf32>
    %40 = arith.addf %38, %39 : vector<32x256xf32>
    %cst_34 = arith.constant 0.000000e+00 : f32
    %41 = vector.shape_cast %19 : vector<1x256xi1> to vector<1x256xi1>
    %42 = vector.broadcast %41 : vector<1x256xi1> to vector<32x256xi1>
    %43 = vector.broadcast %cst_34 : f32 to vector<32x256xf32>
    %44 = arith.select %42, %40, %43 : vector<32x256xi1>, vector<32x256xf32>
    %c0_35 = arith.constant 0 : index
    %c128_36 = arith.constant 128 : index
    %45 = vector.load %arg16[%c0_35, %c128_36] : memref<32x512xf32, #tpu.memory_space<vmem>>, vector<32x256xf32>
    tpu.vector_store %arg16[%c0_35, %c128_36], %44 {strides = array<i32>} : memref<32x512xf32, #tpu.memory_space<vmem>>, vector<32x256xf32>,
    %c0_37 = arith.constant 0 : index
    %c126 = arith.constant 126 : index
    %46 = vector.load %arg16[%c0_37, %c126] : memref<32x512xf32, #tpu.memory_space<vmem>>, vector<32x256xf32>
    %47 = arith.truncf %46 : vector<32x256xf32> to vector<32x256xbf16>
    %c0_38 = arith.constant 0 : index
    %c0_39 = arith.constant 0 : index
    %48 = vector.load %arg17[%c0_38, %c0_39] : memref<96x256xbf16, #tpu.memory_space<vmem>>, vector<32x256xbf16>
    tpu.vector_store %arg17[%c0_38, %c0_39], %47 {strides = array<i32>} : memref<96x256xbf16, #tpu.memory_space<vmem>>, vector<32x256xbf16>,
    %c0_40 = arith.constant 0 : index
    %c128_41 = arith.constant 128 : index
    %49 = vector.load %arg16[%c0_40, %c128_41] : memref<32x512xf32, #tpu.memory_space<vmem>>, vector<32x256xf32>
    %50 = arith.truncf %49 : vector<32x256xf32> to vector<32x256xbf16>
    %c32_42 = arith.constant 32 : index
    %c0_43 = arith.constant 0 : index
    %51 = vector.load %arg17[%c32_42, %c0_43] : memref<96x256xbf16, #tpu.memory_space<vmem>>, vector<32x256xbf16>
    tpu.vector_store %arg17[%c32_42, %c0_43], %50 {strides = array<i32>} : memref<96x256xbf16, #tpu.memory_space<vmem>>, vector<32x256xbf16>,
    %c0_44 = arith.constant 0 : index
    %c130 = arith.constant 130 : index
    %52 = vector.load %arg16[%c0_44, %c130] : memref<32x512xf32, #tpu.memory_space<vmem>>, vector<32x256xf32>
    %53 = arith.truncf %52 : vector<32x256xf32> to vector<32x256xbf16>
    %c64_45 = arith.constant 64 : index
    %c0_46 = arith.constant 0 : index
    %54 = vector.load %arg17[%c64_45, %c0_46] : memref<96x256xbf16, #tpu.memory_space<vmem>>, vector<32x256xbf16>
    tpu.vector_store %arg17[%c64_45, %c0_46], %53 {strides = array<i32>} : memref<96x256xbf16, #tpu.memory_space<vmem>>, vector<32x256xbf16>,
    %c1_47 = arith.constant 1 : index
    %c0_48 = arith.constant 0 : index
    %c0_49 = arith.constant 0 : index
    %55 = vector.load %arg2[%c1_47, %c0_48, %c0_49] : memref<4x32x96xbf16, #tpu.memory_space<vmem>>, vector<1x32x96xbf16>
    %56 = vector.shape_cast %55 : vector<1x32x96xbf16> to vector<32x96xbf16>
    %c0_50 = arith.constant 0 : index
    %c0_51 = arith.constant 0 : index
    %57 = vector.load %arg17[%c0_50, %c0_51] : memref<96x256xbf16, #tpu.memory_space<vmem>>, vector<96x256xbf16>
    %cst_52 = arith.constant dense<0.000000e+00> : vector<32x256xf32>
    %58 = tpu.matmul %56, %57, %cst_52 {dimension_numbers = #tpu.dot_dimension_numbers<[1], [0], [0], [1], [0, 0, 1, 1], [], []>} : vector<32x96xbf16>, vector<96x256xbf16>, vector<32x256xf32> -> vector<32x256xf32>
    %c1_53 = arith.constant 1 : index
    %c0_54 = arith.constant 0 : index
    %c0_55 = arith.constant 0 : index
    %59 = vector.load %arg3[%c1_53, %c0_54, %c0_55] : memref<4x32x1xf32, #tpu.memory_space<vmem>>, vector<1x32x1xf32>
    %60 = vector.shape_cast %59 : vector<1x32x1xf32> to vector<32x1xf32>
    %61 = vector.broadcast %60 : vector<32x1xf32> to vector<32x256xf32>
    %62 = arith.addf %58, %61 : vector<32x256xf32>
    %cst_56 = arith.constant 0.000000e+00 : f32
    %63 = vector.broadcast %cst_56 : f32 to vector<32x256xf32>
    %64 = arith.maximumf %62, %63 : vector<32x256xf32>
    %c0_57 = arith.constant 0 : index
    %c128_58 = arith.constant 128 : index
    %65 = vector.load %arg16[%c0_57, %c128_58] : memref<32x512xf32, #tpu.memory_space<vmem>>, vector<32x256xf32>
    %66 = arith.addf %64, %65 : vector<32x256xf32>
    %cst_59 = arith.constant 0.000000e+00 : f32
    %67 = vector.shape_cast %19 : vector<1x256xi1> to vector<1x256xi1>
    %68 = vector.broadcast %67 : vector<1x256xi1> to vector<32x256xi1>
    %69 = vector.broadcast %cst_59 : f32 to vector<32x256xf32>
    %70 = arith.select %68, %66, %69 : vector<32x256xi1>, vector<32x256xf32>
    %c0_60 = arith.constant 0 : index
    %c128_61 = arith.constant 128 : index
    %71 = vector.load %arg16[%c0_60, %c128_61] : memref<32x512xf32, #tpu.memory_space<vmem>>, vector<32x256xf32>
    tpu.vector_store %arg16[%c0_60, %c128_61], %70 {strides = array<i32>} : memref<32x512xf32, #tpu.memory_space<vmem>>, vector<32x256xf32>,
    %c0_62 = arith.constant 0 : index
    %c124 = arith.constant 124 : index
    %72 = vector.load %arg16[%c0_62, %c124] : memref<32x512xf32, #tpu.memory_space<vmem>>, vector<32x256xf32>
    %73 = arith.truncf %72 : vector<32x256xf32> to vector<32x256xbf16>
    %c0_63 = arith.constant 0 : index
    %c0_64 = arith.constant 0 : index
    %74 = vector.load %arg17[%c0_63, %c0_64] : memref<96x256xbf16, #tpu.memory_space<vmem>>, vector<32x256xbf16>
    tpu.vector_store %arg17[%c0_63, %c0_64], %73 {strides = array<i32>} : memref<96x256xbf16, #tpu.memory_space<vmem>>, vector<32x256xbf16>,
    %c0_65 = arith.constant 0 : index
    %c128_66 = arith.constant 128 : index
    %75 = vector.load %arg16[%c0_65, %c128_66] : memref<32x512xf32, #tpu.memory_space<vmem>>, vector<32x256xf32>
    %76 = arith.truncf %75 : vector<32x256xf32> to vector<32x256xbf16>
    %c32_67 = arith.constant 32 : index
    %c0_68 = arith.constant 0 : index
    %77 = vector.load %arg17[%c32_67, %c0_68] : memref<96x256xbf16, #tpu.memory_space<vmem>>, vector<32x256xbf16>
    tpu.vector_store %arg17[%c32_67, %c0_68], %76 {strides = array<i32>} : memref<96x256xbf16, #tpu.memory_space<vmem>>, vector<32x256xbf16>,
    %c0_69 = arith.constant 0 : index
    %c132 = arith.constant 132 : index
    %78 = vector.load %arg16[%c0_69, %c132] : memref<32x512xf32, #tpu.memory_space<vmem>>, vector<32x256xf32>
    %79 = arith.truncf %78 : vector<32x256xf32> to vector<32x256xbf16>
    %c64_70 = arith.constant 64 : index
    %c0_71 = arith.constant 0 : index
    %80 = vector.load %arg17[%c64_70, %c0_71] : memref<96x256xbf16, #tpu.memory_space<vmem>>, vector<32x256xbf16>
    tpu.vector_store %arg17[%c64_70, %c0_71], %79 {strides = array<i32>} : memref<96x256xbf16, #tpu.memory_space<vmem>>, vector<32x256xbf16>,
    %c2 = arith.constant 2 : index
    %c0_72 = arith.constant 0 : index
    %c0_73 = arith.constant 0 : index
    %81 = vector.load %arg2[%c2, %c0_72, %c0_73] : memref<4x32x96xbf16, #tpu.memory_space<vmem>>, vector<1x32x96xbf16>
    %82 = vector.shape_cast %81 : vector<1x32x96xbf16> to vector<32x96xbf16>
    %c0_74 = arith.constant 0 : index
    %c0_75 = arith.constant 0 : index
    %83 = vector.load %arg17[%c0_74, %c0_75] : memref<96x256xbf16, #tpu.memory_space<vmem>>, vector<96x256xbf16>
    %cst_76 = arith.constant dense<0.000000e+00> : vector<32x256xf32>
    %84 = tpu.matmul %82, %83, %cst_76 {dimension_numbers = #tpu.dot_dimension_numbers<[1], [0], [0], [1], [0, 0, 1, 1], [], []>} : vector<32x96xbf16>, vector<96x256xbf16>, vector<32x256xf32> -> vector<32x256xf32>
    %c2_77 = arith.constant 2 : index
    %c0_78 = arith.constant 0 : index
    %c0_79 = arith.constant 0 : index
    %85 = vector.load %arg3[%c2_77, %c0_78, %c0_79] : memref<4x32x1xf32, #tpu.memory_space<vmem>>, vector<1x32x1xf32>
    %86 = vector.shape_cast %85 : vector<1x32x1xf32> to vector<32x1xf32>
    %87 = vector.broadcast %86 : vector<32x1xf32> to vector<32x256xf32>
    %88 = arith.addf %84, %87 : vector<32x256xf32>
    %cst_80 = arith.constant 0.000000e+00 : f32
    %89 = vector.broadcast %cst_80 : f32 to vector<32x256xf32>
    %90 = arith.maximumf %88, %89 : vector<32x256xf32>
    %c0_81 = arith.constant 0 : index
    %c128_82 = arith.constant 128 : index
    %91 = vector.load %arg16[%c0_81, %c128_82] : memref<32x512xf32, #tpu.memory_space<vmem>>, vector<32x256xf32>
    %92 = arith.addf %90, %91 : vector<32x256xf32>
    %cst_83 = arith.constant 0.000000e+00 : f32
    %93 = vector.shape_cast %19 : vector<1x256xi1> to vector<1x256xi1>
    %94 = vector.broadcast %93 : vector<1x256xi1> to vector<32x256xi1>
    %95 = vector.broadcast %cst_83 : f32 to vector<32x256xf32>
    %96 = arith.select %94, %92, %95 : vector<32x256xi1>, vector<32x256xf32>
    %c0_84 = arith.constant 0 : index
    %c128_85 = arith.constant 128 : index
    %97 = vector.load %arg16[%c0_84, %c128_85] : memref<32x512xf32, #tpu.memory_space<vmem>>, vector<32x256xf32>
    tpu.vector_store %arg16[%c0_84, %c128_85], %96 {strides = array<i32>} : memref<32x512xf32, #tpu.memory_space<vmem>>, vector<32x256xf32>,
    %c0_86 = arith.constant 0 : index
    %c120 = arith.constant 120 : index
    %98 = vector.load %arg16[%c0_86, %c120] : memref<32x512xf32, #tpu.memory_space<vmem>>, vector<32x256xf32>
    %99 = arith.truncf %98 : vector<32x256xf32> to vector<32x256xbf16>
    %c0_87 = arith.constant 0 : index
    %c0_88 = arith.constant 0 : index
    %100 = vector.load %arg17[%c0_87, %c0_88] : memref<96x256xbf16, #tpu.memory_space<vmem>>, vector<32x256xbf16>
    tpu.vector_store %arg17[%c0_87, %c0_88], %99 {strides = array<i32>} : memref<96x256xbf16, #tpu.memory_space<vmem>>, vector<32x256xbf16>,
    %c0_89 = arith.constant 0 : index
    %c128_90 = arith.constant 128 : index
    %101 = vector.load %arg16[%c0_89, %c128_90] : memref<32x512xf32, #tpu.memory_space<vmem>>, vector<32x256xf32>
    %102 = arith.truncf %101 : vector<32x256xf32> to vector<32x256xbf16>
    %c32_91 = arith.constant 32 : index
    %c0_92 = arith.constant 0 : index
    %103 = vector.load %arg17[%c32_91, %c0_92] : memref<96x256xbf16, #tpu.memory_space<vmem>>, vector<32x256xbf16>
    tpu.vector_store %arg17[%c32_91, %c0_92], %102 {strides = array<i32>} : memref<96x256xbf16, #tpu.memory_space<vmem>>, vector<32x256xbf16>,
    %c0_93 = arith.constant 0 : index
    %c136 = arith.constant 136 : index
    %104 = vector.load %arg16[%c0_93, %c136] : memref<32x512xf32, #tpu.memory_space<vmem>>, vector<32x256xf32>
    %105 = arith.truncf %104 : vector<32x256xf32> to vector<32x256xbf16>
    %c64_94 = arith.constant 64 : index
    %c0_95 = arith.constant 0 : index
    %106 = vector.load %arg17[%c64_94, %c0_95] : memref<96x256xbf16, #tpu.memory_space<vmem>>, vector<32x256xbf16>
    tpu.vector_store %arg17[%c64_94, %c0_95], %105 {strides = array<i32>} : memref<96x256xbf16, #tpu.memory_space<vmem>>, vector<32x256xbf16>,
    %c3 = arith.constant 3 : index
    %c0_96 = arith.constant 0 : index
    %c0_97 = arith.constant 0 : index
    %107 = vector.load %arg2[%c3, %c0_96, %c0_97] : memref<4x32x96xbf16, #tpu.memory_space<vmem>>, vector<1x32x96xbf16>
    %108 = vector.shape_cast %107 : vector<1x32x96xbf16> to vector<32x96xbf16>
    %c0_98 = arith.constant 0 : index
    %c0_99 = arith.constant 0 : index
    %109 = vector.load %arg17[%c0_98, %c0_99] : memref<96x256xbf16, #tpu.memory_space<vmem>>, vector<96x256xbf16>
    %cst_100 = arith.constant dense<0.000000e+00> : vector<32x256xf32>
    %110 = tpu.matmul %108, %109, %cst_100 {dimension_numbers = #tpu.dot_dimension_numbers<[1], [0], [0], [1], [0, 0, 1, 1], [], []>} : vector<32x96xbf16>, vector<96x256xbf16>, vector<32x256xf32> -> vector<32x256xf32>
    %c3_101 = arith.constant 3 : index
    %c0_102 = arith.constant 0 : index
    %c0_103 = arith.constant 0 : index
    %111 = vector.load %arg3[%c3_101, %c0_102, %c0_103] : memref<4x32x1xf32, #tpu.memory_space<vmem>>, vector<1x32x1xf32>
    %112 = vector.shape_cast %111 : vector<1x32x1xf32> to vector<32x1xf32>
    %113 = vector.broadcast %112 : vector<32x1xf32> to vector<32x256xf32>
    %114 = arith.addf %110, %113 : vector<32x256xf32>
    %cst_104 = arith.constant 0.000000e+00 : f32
    %115 = vector.broadcast %cst_104 : f32 to vector<32x256xf32>
    %116 = arith.maximumf %114, %115 : vector<32x256xf32>
    %c0_105 = arith.constant 0 : index
    %c128_106 = arith.constant 128 : index
    %117 = vector.load %arg16[%c0_105, %c128_106] : memref<32x512xf32, #tpu.memory_space<vmem>>, vector<32x256xf32>
    %118 = arith.addf %116, %117 : vector<32x256xf32>
    %cst_107 = arith.constant 0.000000e+00 : f32
    %119 = vector.shape_cast %19 : vector<1x256xi1> to vector<1x256xi1>
    %120 = vector.broadcast %119 : vector<1x256xi1> to vector<32x256xi1>
    %121 = vector.broadcast %cst_107 : f32 to vector<32x256xf32>
    %122 = arith.select %120, %118, %121 : vector<32x256xi1>, vector<32x256xf32>
    %c0_108 = arith.constant 0 : index
    %c128_109 = arith.constant 128 : index
    %123 = vector.load %arg16[%c0_108, %c128_109] : memref<32x512xf32, #tpu.memory_space<vmem>>, vector<32x256xf32>
    tpu.vector_store %arg16[%c0_108, %c128_109], %122 {strides = array<i32>} : memref<32x512xf32, #tpu.memory_space<vmem>>, vector<32x256xf32>,
    %cst_110 = arith.constant 0.000000e+00 : f32
    %124 = vector.broadcast %cst_110 : f32 to vector<1x256xf32>
    %c0_111 = arith.constant 0 : index
    %c128_112 = arith.constant 128 : index
    %125 = vector.load %arg16[%c0_111, %c128_112] : memref<32x512xf32, #tpu.memory_space<vmem>>, vector<32x256xf32>
    %126 = arith.truncf %125 : vector<32x256xf32> to vector<32x256xbf16>
    %c0_113 = arith.constant 0 : index
    %c0_114 = arith.constant 0 : index
    %c0_115 = arith.constant 0 : index
    %127 = vector.load %arg4[%c0_113, %c0_114, %c0_115] : memref<9x1x32xbf16, #tpu.memory_space<vmem>>, vector<1x1x32xbf16>
    %128 = vector.shape_cast %127 : vector<1x1x32xbf16> to vector<1x32xbf16>
    %cst_116 = arith.constant dense<0.000000e+00> : vector<1x256xf32>
    %129 = tpu.matmul %128, %126, %cst_116 {dimension_numbers = #tpu.dot_dimension_numbers<[1], [0], [0], [1], [0, 0, 1, 1], [], []>} : vector<1x32xbf16>, vector<32x256xbf16>, vector<1x256xf32> -> vector<1x256xf32>
    %130 = arith.addf %124, %129 : vector<1x256xf32>
    %c0_117 = arith.constant 0 : index
    %c129_118 = arith.constant 129 : index
    %131 = vector.load %arg16[%c0_117, %c129_118] : memref<32x512xf32, #tpu.memory_space<vmem>>, vector<32x256xf32>
    %132 = arith.truncf %131 : vector<32x256xf32> to vector<32x256xbf16>
    %c1_119 = arith.constant 1 : index
    %c0_120 = arith.constant 0 : index
    %c0_121 = arith.constant 0 : index
    %133 = vector.load %arg4[%c1_119, %c0_120, %c0_121] : memref<9x1x32xbf16, #tpu.memory_space<vmem>>, vector<1x1x32xbf16>
    %134 = vector.shape_cast %133 : vector<1x1x32xbf16> to vector<1x32xbf16>
    %cst_122 = arith.constant dense<0.000000e+00> : vector<1x256xf32>
    %135 = tpu.matmul %134, %132, %cst_122 {dimension_numbers = #tpu.dot_dimension_numbers<[1], [0], [0], [1], [0, 0, 1, 1], [], []>} : vector<1x32xbf16>, vector<32x256xbf16>, vector<1x256xf32> -> vector<1x256xf32>
    %136 = arith.addf %130, %135 : vector<1x256xf32>
    %c0_123 = arith.constant 0 : index
    %c130_124 = arith.constant 130 : index
    %137 = vector.load %arg16[%c0_123, %c130_124] : memref<32x512xf32, #tpu.memory_space<vmem>>, vector<32x256xf32>
    %138 = arith.truncf %137 : vector<32x256xf32> to vector<32x256xbf16>
    %c2_125 = arith.constant 2 : index
    %c0_126 = arith.constant 0 : index
    %c0_127 = arith.constant 0 : index
    %139 = vector.load %arg4[%c2_125, %c0_126, %c0_127] : memref<9x1x32xbf16, #tpu.memory_space<vmem>>, vector<1x1x32xbf16>
    %140 = vector.shape_cast %139 : vector<1x1x32xbf16> to vector<1x32xbf16>
    %cst_128 = arith.constant dense<0.000000e+00> : vector<1x256xf32>
    %141 = tpu.matmul %140, %138, %cst_128 {dimension_numbers = #tpu.dot_dimension_numbers<[1], [0], [0], [1], [0, 0, 1, 1], [], []>} : vector<1x32xbf16>, vector<32x256xbf16>, vector<1x256xf32> -> vector<1x256xf32>
    %142 = arith.addf %136, %141 : vector<1x256xf32>
    %c0_129 = arith.constant 0 : index
    %c131 = arith.constant 131 : index
    %143 = vector.load %arg16[%c0_129, %c131] : memref<32x512xf32, #tpu.memory_space<vmem>>, vector<32x256xf32>
    %144 = arith.truncf %143 : vector<32x256xf32> to vector<32x256xbf16>
    %c3_130 = arith.constant 3 : index
    %c0_131 = arith.constant 0 : index
    %c0_132 = arith.constant 0 : index
    %145 = vector.load %arg4[%c3_130, %c0_131, %c0_132] : memref<9x1x32xbf16, #tpu.memory_space<vmem>>, vector<1x1x32xbf16>
    %146 = vector.shape_cast %145 : vector<1x1x32xbf16> to vector<1x32xbf16>
    %cst_133 = arith.constant dense<0.000000e+00> : vector<1x256xf32>
    %147 = tpu.matmul %146, %144, %cst_133 {dimension_numbers = #tpu.dot_dimension_numbers<[1], [0], [0], [1], [0, 0, 1, 1], [], []>} : vector<1x32xbf16>, vector<32x256xbf16>, vector<1x256xf32> -> vector<1x256xf32>
    %148 = arith.addf %142, %147 : vector<1x256xf32>
    %c0_134 = arith.constant 0 : index
    %c132_135 = arith.constant 132 : index
    %149 = vector.load %arg16[%c0_134, %c132_135] : memref<32x512xf32, #tpu.memory_space<vmem>>, vector<32x256xf32>
    %150 = arith.truncf %149 : vector<32x256xf32> to vector<32x256xbf16>
    %c4 = arith.constant 4 : index
    %c0_136 = arith.constant 0 : index
    %c0_137 = arith.constant 0 : index
    %151 = vector.load %arg4[%c4, %c0_136, %c0_137] : memref<9x1x32xbf16, #tpu.memory_space<vmem>>, vector<1x1x32xbf16>
    %152 = vector.shape_cast %151 : vector<1x1x32xbf16> to vector<1x32xbf16>
    %cst_138 = arith.constant dense<0.000000e+00> : vector<1x256xf32>
    %153 = tpu.matmul %152, %150, %cst_138 {dimension_numbers = #tpu.dot_dimension_numbers<[1], [0], [0], [1], [0, 0, 1, 1], [], []>} : vector<1x32xbf16>, vector<32x256xbf16>, vector<1x256xf32> -> vector<1x256xf32>
    %154 = arith.addf %148, %153 : vector<1x256xf32>
    %c0_139 = arith.constant 0 : index
    %c133 = arith.constant 133 : index
    %155 = vector.load %arg16[%c0_139, %c133] : memref<32x512xf32, #tpu.memory_space<vmem>>, vector<32x256xf32>
    %156 = arith.truncf %155 : vector<32x256xf32> to vector<32x256xbf16>
    %c5 = arith.constant 5 : index
    %c0_140 = arith.constant 0 : index
    %c0_141 = arith.constant 0 : index
    %157 = vector.load %arg4[%c5, %c0_140, %c0_141] : memref<9x1x32xbf16, #tpu.memory_space<vmem>>, vector<1x1x32xbf16>
    %158 = vector.shape_cast %157 : vector<1x1x32xbf16> to vector<1x32xbf16>
    %cst_142 = arith.constant dense<0.000000e+00> : vector<1x256xf32>
    %159 = tpu.matmul %158, %156, %cst_142 {dimension_numbers = #tpu.dot_dimension_numbers<[1], [0], [0], [1], [0, 0, 1, 1], [], []>} : vector<1x32xbf16>, vector<32x256xbf16>, vector<1x256xf32> -> vector<1x256xf32>
    %160 = arith.addf %154, %159 : vector<1x256xf32>
    %c0_143 = arith.constant 0 : index
    %c134 = arith.constant 134 : index
    %161 = vector.load %arg16[%c0_143, %c134] : memref<32x512xf32, #tpu.memory_space<vmem>>, vector<32x256xf32>
    %162 = arith.truncf %161 : vector<32x256xf32> to vector<32x256xbf16>
    %c6 = arith.constant 6 : index
    %c0_144 = arith.constant 0 : index
    %c0_145 = arith.constant 0 : index
    %163 = vector.load %arg4[%c6, %c0_144, %c0_145] : memref<9x1x32xbf16, #tpu.memory_space<vmem>>, vector<1x1x32xbf16>
    %164 = vector.shape_cast %163 : vector<1x1x32xbf16> to vector<1x32xbf16>
    %cst_146 = arith.constant dense<0.000000e+00> : vector<1x256xf32>
    %165 = tpu.matmul %164, %162, %cst_146 {dimension_numbers = #tpu.dot_dimension_numbers<[1], [0], [0], [1], [0, 0, 1, 1], [], []>} : vector<1x32xbf16>, vector<32x256xbf16>, vector<1x256xf32> -> vector<1x256xf32>
    %166 = arith.addf %160, %165 : vector<1x256xf32>
    %c0_147 = arith.constant 0 : index
    %c135 = arith.constant 135 : index
    %167 = vector.load %arg16[%c0_147, %c135] : memref<32x512xf32, #tpu.memory_space<vmem>>, vector<32x256xf32>
    %168 = arith.truncf %167 : vector<32x256xf32> to vector<32x256xbf16>
    %c7 = arith.constant 7 : index
    %c0_148 = arith.constant 0 : index
    %c0_149 = arith.constant 0 : index
    %169 = vector.load %arg4[%c7, %c0_148, %c0_149] : memref<9x1x32xbf16, #tpu.memory_space<vmem>>, vector<1x1x32xbf16>
    %170 = vector.shape_cast %169 : vector<1x1x32xbf16> to vector<1x32xbf16>
    %cst_150 = arith.constant dense<0.000000e+00> : vector<1x256xf32>
    %171 = tpu.matmul %170, %168, %cst_150 {dimension_numbers = #tpu.dot_dimension_numbers<[1], [0], [0], [1], [0, 0, 1, 1], [], []>} : vector<1x32xbf16>, vector<32x256xbf16>, vector<1x256xf32> -> vector<1x256xf32>
    %172 = arith.addf %166, %171 : vector<1x256xf32>
    %c0_151 = arith.constant 0 : index
    %c136_152 = arith.constant 136 : index
    %173 = vector.load %arg16[%c0_151, %c136_152] : memref<32x512xf32, #tpu.memory_space<vmem>>, vector<32x256xf32>
    %174 = arith.truncf %173 : vector<32x256xf32> to vector<32x256xbf16>
    %c8 = arith.constant 8 : index
    %c0_153 = arith.constant 0 : index
    %c0_154 = arith.constant 0 : index
    %175 = vector.load %arg4[%c8, %c0_153, %c0_154] : memref<9x1x32xbf16, #tpu.memory_space<vmem>>, vector<1x1x32xbf16>
    %176 = vector.shape_cast %175 : vector<1x1x32xbf16> to vector<1x32xbf16>
    %cst_155 = arith.constant dense<0.000000e+00> : vector<1x256xf32>
    %177 = tpu.matmul %176, %174, %cst_155 {dimension_numbers = #tpu.dot_dimension_numbers<[1], [0], [0], [1], [0, 0, 1, 1], [], []>} : vector<1x32xbf16>, vector<32x256xbf16>, vector<1x256xf32> -> vector<1x256xf32>
    %178 = arith.addf %172, %177 : vector<1x256xf32>
    %c0_156 = arith.constant 0 : index
    %c0_157 = arith.constant 0 : index
    %179 = vector.load %arg5[%c0_156, %c0_157] : memref<1x1xf32, #tpu.memory_space<vmem>>, vector<1x1xf32>
    %180 = vector.broadcast %179 : vector<1x1xf32> to vector<1x256xf32>
    %181 = arith.addf %178, %180 : vector<1x256xf32>
    %182 = vector.extract_strided_slice %181 {offsets = [0, 0], sizes = [1, 56], strides = [1, 1]} : vector<1x256xf32> to vector<1x56xf32>
    %cst_158 = arith.constant dense<0xFF800000> : vector<1xf32>
    %183 = vector.multi_reduction <maximumf>, %182, %cst_158 [1] : vector<1x56xf32> to vector<1xf32>
    %184 = vector.shape_cast %183 : vector<1xf32> to vector<1x1xf32>
    %185 = vector.broadcast %184 : vector<1x1xf32> to vector<1x56xf32>
    %186 = arith.subf %182, %185 : vector<1x56xf32>
    %187 = math.exp %186 : vector<1x56xf32>
    %cst_159 = arith.constant dense<0.000000e+00> : vector<1xf32>
    %188 = vector.multi_reduction <add>, %187, %cst_159 [1] : vector<1x56xf32> to vector<1xf32>
    %189 = vector.shape_cast %188 : vector<1xf32> to vector<1x1xf32>
    %190 = tpu.reciprocal %189 {approx = true} : vector<1x1xf32> -> vector<1x1xf32>
    %191 = vector.broadcast %190 : vector<1x1xf32> to vector<1x56xf32>
    %192 = arith.mulf %187, %191 : vector<1x56xf32>
    %193 = vector.extract_strided_slice %181 {offsets = [0, 128], sizes = [1, 56], strides = [1, 1]} : vector<1x256xf32> to vector<1x56xf32>
    %cst_160 = arith.constant dense<0xFF800000> : vector<1xf32>
    %194 = vector.multi_reduction <maximumf>, %193, %cst_160 [1] : vector<1x56xf32> to vector<1xf32>
    %195 = vector.shape_cast %194 : vector<1xf32> to vector<1x1xf32>
    %196 = vector.broadcast %195 : vector<1x1xf32> to vector<1x56xf32>
    %197 = arith.subf %193, %196 : vector<1x56xf32>
    %198 = math.exp %197 : vector<1x56xf32>
    %cst_161 = arith.constant dense<0.000000e+00> : vector<1xf32>
    %199 = vector.multi_reduction <add>, %198, %cst_161 [1] : vector<1x56xf32> to vector<1xf32>
    %200 = vector.shape_cast %199 : vector<1xf32> to vector<1x1xf32>
    %201 = tpu.reciprocal %200 {approx = true} : vector<1x1xf32> -> vector<1x1xf32>
    %202 = vector.broadcast %201 : vector<1x1xf32> to vector<1x56xf32>
    %203 = arith.mulf %198, %202 : vector<1x56xf32>
    %204 = vector.shape_cast %192 : vector<1x56xf32> to vector<1x1x56xf32>
    %205 = vector.shape_cast %203 : vector<1x56xf32> to vector<1x1x56xf32>
    %206 = tpu.concatenate %204, %205 in 0 : vector<1x1x56xf32>, vector<1x1x56xf32> -> vector<2x1x56xf32>
    %c0_162 = arith.constant 0 : index
    %c0_163 = arith.constant 0 : index
    %c0_164 = arith.constant 0 : index
    %207 = vector.load %arg14[%c0_162, %c0_163, %c0_164] : memref<2x1x56xf32, #tpu.memory_space<vmem>>, vector<2x1x56xf32>
    tpu.vector_store %arg14[%c0_162, %c0_163, %c0_164], %206 {strides = array<i32>} : memref<2x1x56xf32, #tpu.memory_space<vmem>>, vector<2x1x56xf32>,
    %c0_165 = arith.constant 0 : index
    %c128_166 = arith.constant 128 : index
    %208 = vector.load %arg16[%c0_165, %c128_166] : memref<32x512xf32, #tpu.memory_space<vmem>>, vector<32x64xf32>
    %cst_167 = arith.constant dense<0.000000e+00> : vector<32xf32>
    %209 = vector.multi_reduction <add>, %208, %cst_167 [1] : vector<32x64xf32> to vector<32xf32>
    %210 = vector.shape_cast %209 : vector<32xf32> to vector<32x1xf32>
    %cst_168 = arith.constant 6.400000e+01 : f32
    %211 = vector.broadcast %cst_168 : f32 to vector<32x1xf32>
    %212 = arith.divf %210, %211 : vector<32x1xf32>
    %c0_169 = arith.constant 0 : index
    %c256_170 = arith.constant 256 : index
    %213 = vector.load %arg16[%c0_169, %c256_170] : memref<32x512xf32, #tpu.memory_space<vmem>>, vector<32x64xf32>
    %cst_171 = arith.constant dense<0.000000e+00> : vector<32xf32>
    %214 = vector.multi_reduction <add>, %213, %cst_171 [1] : vector<32x64xf32> to vector<32xf32>
    %215 = vector.shape_cast %214 : vector<32xf32> to vector<32x1xf32>
    %cst_172 = arith.constant 6.400000e+01 : f32
    %216 = vector.broadcast %cst_172 : f32 to vector<32x1xf32>
    %217 = arith.divf %215, %216 : vector<32x1xf32>
    %218 = tpu.concatenate %212, %217 in 1 : vector<32x1xf32>, vector<32x1xf32> -> vector<32x2xf32>
    %c0_173 = arith.constant 0 : index
    %c0_174 = arith.constant 0 : index
    %219 = vector.load %arg6[%c0_173, %c0_174] : memref<32x32xf32, #tpu.memory_space<vmem>>, vector<32x32xf32>
    %cst_175 = arith.constant dense<0.000000e+00> : vector<32x2xf32>
    %220 = tpu.matmul %219, %218, %cst_175 {dimension_numbers = #tpu.dot_dimension_numbers<[1], [0], [0], [1], [0, 0, 1, 1], [], []>} : vector<32x32xf32>, vector<32x2xf32>, vector<32x2xf32> -> vector<32x2xf32>
    %c0_176 = arith.constant 0 : index
    %c0_177 = arith.constant 0 : index
    %221 = vector.load %arg7[%c0_176, %c0_177] : memref<32x1xf32, #tpu.memory_space<vmem>>, vector<32x1xf32>
    %222 = vector.broadcast %221 : vector<32x1xf32> to vector<32x2xf32>
    %223 = arith.addf %220, %222 : vector<32x2xf32>
    %cst_178 = arith.constant 0.000000e+00 : f32
    %224 = vector.broadcast %cst_178 : f32 to vector<32x2xf32>
    %225 = arith.maximumf %223, %224 : vector<32x2xf32>
    %c0_179 = arith.constant 0 : index
    %c0_180 = arith.constant 0 : index
    %226 = vector.load %arg8[%c0_179, %c0_180] : memref<32x32xf32, #tpu.memory_space<vmem>>, vector<32x32xf32>
    %cst_181 = arith.constant dense<0.000000e+00> : vector<32x2xf32>
    %227 = tpu.matmul %226, %225, %cst_181 {dimension_numbers = #tpu.dot_dimension_numbers<[1], [0], [0], [1], [0, 0, 1, 1], [], []>} : vector<32x32xf32>, vector<32x2xf32>, vector<32x2xf32> -> vector<32x2xf32>
    %c0_182 = arith.constant 0 : index
    %c0_183 = arith.constant 0 : index
    %228 = vector.load %arg9[%c0_182, %c0_183] : memref<32x1xf32, #tpu.memory_space<vmem>>, vector<32x1xf32>
    %229 = vector.broadcast %228 : vector<32x1xf32> to vector<32x2xf32>
    %230 = arith.addf %227, %229 : vector<32x2xf32>
    %cst_184 = arith.constant 0.000000e+00 : f32
    %231 = vector.broadcast %cst_184 : f32 to vector<32x2xf32>
    %232 = arith.maximumf %230, %231 : vector<32x2xf32>
    %c0_185 = arith.constant 0 : index
    %c0_186 = arith.constant 0 : index
    %233 = vector.load %arg10[%c0_185, %c0_186] : memref<32x32xf32, #tpu.memory_space<vmem>>, vector<32x32xf32>
    %cst_187 = arith.constant dense<0.000000e+00> : vector<32x2xf32>
    %234 = tpu.matmul %233, %232, %cst_187 {dimension_numbers = #tpu.dot_dimension_numbers<[1], [0], [0], [1], [0, 0, 1, 1], [], []>} : vector<32x32xf32>, vector<32x2xf32>, vector<32x2xf32> -> vector<32x2xf32>
    %c0_188 = arith.constant 0 : index
    %c0_189 = arith.constant 0 : index
    %235 = vector.load %arg11[%c0_188, %c0_189] : memref<32x1xf32, #tpu.memory_space<vmem>>, vector<32x1xf32>
    %236 = vector.broadcast %235 : vector<32x1xf32> to vector<32x2xf32>
    %237 = arith.addf %234, %236 : vector<32x2xf32>
    %cst_190 = arith.constant 0.000000e+00 : f32
    %238 = vector.broadcast %cst_190 : f32 to vector<32x2xf32>
    %239 = arith.maximumf %237, %238 : vector<32x2xf32>
    %c0_191 = arith.constant 0 : index
    %c0_192 = arith.constant 0 : index
    %240 = vector.load %arg12[%c0_191, %c0_192] : memref<1x32xf32, #tpu.memory_space<vmem>>, vector<1x32xf32>
    %cst_193 = arith.constant dense<0.000000e+00> : vector<1x2xf32>
    %241 = tpu.matmul %240, %239, %cst_193 {dimension_numbers = #tpu.dot_dimension_numbers<[1], [0], [0], [1], [0, 0, 1, 1], [], []>} : vector<1x32xf32>, vector<32x2xf32>, vector<1x2xf32> -> vector<1x2xf32>
    %c0_194 = arith.constant 0 : index
    %c0_195 = arith.constant 0 : index
    %242 = vector.load %arg13[%c0_194, %c0_195] : memref<1x1xf32, #tpu.memory_space<vmem>>, vector<1x1xf32>
    %243 = vector.broadcast %242 : vector<1x1xf32> to vector<1x2xf32>
    %244 = arith.addf %241, %243 : vector<1x2xf32>
    %cst_196 = arith.constant 0.000000e+00 : f32
    %245 = vector.broadcast %cst_196 : f32 to vector<1x2xf32>
    %246 = arith.maximumf %244, %245 : vector<1x2xf32>
    %247 = math.absf %244 : vector<1x2xf32>
    %cst_197 = arith.constant 0.000000e+00 : f32
    %248 = vector.broadcast %cst_197 : f32 to vector<1x2xf32>
    %249 = arith.subf %248, %247 : vector<1x2xf32>
    %250 = math.exp %249 : vector<1x2xf32>
    %251 = math.log1p %250 : vector<1x2xf32>
    %252 = arith.addf %246, %251 : vector<1x2xf32>
    %c0_198 = arith.constant 0 : index
    %c0_199 = arith.constant 0 : index
    %c0_200 = arith.constant 0 : index
    %253 = vector.load %arg15[%c0_198, %c0_199, %c0_200] : memref<1x1x2xf32, #tpu.memory_space<vmem>>, vector<1x1x2xf32>
    %254 = vector.shape_cast %253 : vector<1x1x2xf32> to vector<1x2xf32>
    %255 = vector.shape_cast %252 : vector<1x2xf32> to vector<1x1x2xf32>
    tpu.vector_store %arg15[%c0_198, %c0_199, %c0_200], %255 {strides = array<i32>} : memref<1x1x2xf32, #tpu.memory_space<vmem>>, vector<1x1x2xf32>,
    return
  }
  func.func @transform_0(%arg0: i32) -> (i32, i32, i32) {
    %c0_i32 = arith.constant 0 : i32
    %c0_i32_0 = arith.constant 0 : i32
    %c0_i32_1 = arith.constant 0 : i32
    return %arg0, %c0_i32, %c0_i32_0 : i32, i32, i32
  }
  func.func @transform_1(%arg0: i32) -> (i32, i32, i32) {
    %c0_i32 = arith.constant 0 : i32
    %c0_i32_0 = arith.constant 0 : i32
    %c0_i32_1 = arith.constant 0 : i32
    %c0_i32_2 = arith.constant 0 : i32
    return %c0_i32, %c0_i32_0, %c0_i32_1 : i32, i32, i32
  }
  func.func @transform_2(%arg0: i32) -> (i32, i32, i32) {
    %c0_i32 = arith.constant 0 : i32
    %c0_i32_0 = arith.constant 0 : i32
    %c0_i32_1 = arith.constant 0 : i32
    %c0_i32_2 = arith.constant 0 : i32
    return %c0_i32, %c0_i32_0, %c0_i32_1 : i32, i32, i32
  }
  func.func @transform_3(%arg0: i32) -> (i32, i32, i32) {
    %c0_i32 = arith.constant 0 : i32
    %c0_i32_0 = arith.constant 0 : i32
    %c0_i32_1 = arith.constant 0 : i32
    %c0_i32_2 = arith.constant 0 : i32
    return %c0_i32, %c0_i32_0, %c0_i32_1 : i32, i32, i32
  }
  func.func @transform_4(%arg0: i32) -> (i32, i32) {
    %c0_i32 = arith.constant 0 : i32
    %c0_i32_0 = arith.constant 0 : i32
    %c0_i32_1 = arith.constant 0 : i32
    return %c0_i32, %c0_i32_0 : i32, i32
  }
  func.func @transform_5(%arg0: i32) -> (i32, i32) {
    %c0_i32 = arith.constant 0 : i32
    %c0_i32_0 = arith.constant 0 : i32
    %c0_i32_1 = arith.constant 0 : i32
    return %c0_i32, %c0_i32_0 : i32, i32
  }
  func.func @transform_6(%arg0: i32) -> (i32, i32) {
    %c0_i32 = arith.constant 0 : i32
    %c0_i32_0 = arith.constant 0 : i32
    %c0_i32_1 = arith.constant 0 : i32
    return %c0_i32, %c0_i32_0 : i32, i32
  }
  func.func @transform_7(%arg0: i32) -> (i32, i32) {
    %c0_i32 = arith.constant 0 : i32
    %c0_i32_0 = arith.constant 0 : i32
    %c0_i32_1 = arith.constant 0 : i32
    return %c0_i32, %c0_i32_0 : i32, i32
  }
  func.func @transform_8(%arg0: i32) -> (i32, i32) {
    %c0_i32 = arith.constant 0 : i32
    %c0_i32_0 = arith.constant 0 : i32
    %c0_i32_1 = arith.constant 0 : i32
    return %c0_i32, %c0_i32_0 : i32, i32
  }
  func.func @transform_9(%arg0: i32) -> (i32, i32) {
    %c0_i32 = arith.constant 0 : i32
    %c0_i32_0 = arith.constant 0 : i32
    %c0_i32_1 = arith.constant 0 : i32
    return %c0_i32, %c0_i32_0 : i32, i32
  }
  func.func @transform_10(%arg0: i32) -> (i32, i32) {
    %c0_i32 = arith.constant 0 : i32
    %c0_i32_0 = arith.constant 0 : i32
    %c0_i32_1 = arith.constant 0 : i32
    return %c0_i32, %c0_i32_0 : i32, i32
  }
  func.func @transform_11(%arg0: i32) -> (i32, i32) {
    %c0_i32 = arith.constant 0 : i32
    %c0_i32_0 = arith.constant 0 : i32
    %c0_i32_1 = arith.constant 0 : i32
    return %c0_i32, %c0_i32_0 : i32, i32
  }
  func.func @transform_12(%arg0: i32) -> (i32, i32) {
    %c0_i32 = arith.constant 0 : i32
    %c0_i32_0 = arith.constant 0 : i32
    %c0_i32_1 = arith.constant 0 : i32
    return %c0_i32, %c0_i32_0 : i32, i32
  }
  func.func @transform_13(%arg0: i32) -> (i32, i32, i32) {
    %c0_i32 = arith.constant 0 : i32
    %c0_i32_0 = arith.constant 0 : i32
    %c0_i32_1 = arith.constant 0 : i32
    return %arg0, %c0_i32, %c0_i32_0 : i32, i32, i32
  }
  func.func @transform_14(%arg0: i32) -> (i32, i32, i32) {
    %c0_i32 = arith.constant 0 : i32
    %c0_i32_0 = arith.constant 0 : i32
    %c0_i32_1 = arith.constant 0 : i32
    return %arg0, %c0_i32, %c0_i32_0 : i32, i32, i32
  }
}

</mosaic_0001>

<llo_original>
// kernel: _lambda_.1
$region0: #{_lambda_.1}
  #allocation0 [shape = 'u32[]', space=smem, size = 0x4, offset = 0x4, fixed_abs, tag = 'smem constant byte address 0x4 - core index']
  #allocation1 [shape = 'u32[72,128]{1,0:T(1,128)}', space=vmem, size = 0x9000, scoped, tag = 'internal scratch']
  #allocation2 [shape = 'f32[32,512]{1,0:T(8,128)}', space=vmem, size = 0x10000, scoped, tag = 'scratch operand']
  #allocation3 [shape = 'bf16[96,256]{1,0:T(8,128)(2,1)}', space=vmem, size = 0xc000, scoped, tag = 'scratch operand']
  #allocation4 [shape = 'f32[1,1]{1,0:T(1,128)S(1)}', space=vmem, size = 0x200, scoped, tag = 'scoped memory for _lambda_.1']
  #allocation5 [shape = 'f32[1,1]{1,0:T(1,128)S(1)}', space=vmem, size = 0x200, scoped, tag = 'scoped memory for _lambda_.1']
  %s0 = inlined_call_operand.vmem [shape: bf16[4,32,64], index: 0, kind: input, shape index: {}]
  %s1 = inlined_call_operand.vmem [shape: bf16[4,32,96], index: 1, kind: input, shape index: {}]
  %s2 = inlined_call_operand.vmem [shape: f32[4,32,1], index: 2, kind: input, shape index: {}]
  %s3 = inlined_call_operand.hbm [shape: bf16[9,1,32], index: 3, kind: input, shape index: {}]
  %s4 = inlined_call_operand.<no memory space> [shape: f32[1,1], index: 4, kind: input, shape index: {}]
  %s5 = inlined_call_operand.hbm [shape: f32[32,32], index: 5, kind: input, shape index: {}]
  %s6 = inlined_call_operand.hbm [shape: f32[32,1], index: 6, kind: input, shape index: {}]
  %s7 = inlined_call_operand.hbm [shape: f32[32,32], index: 7, kind: input, shape index: {}]
  %s8 = inlined_call_operand.hbm [shape: f32[32,1], index: 8, kind: input, shape index: {}]
  %s9 = inlined_call_operand.hbm [shape: f32[32,32], index: 9, kind: input, shape index: {}]
  %s10 = inlined_call_operand.hbm [shape: f32[32,1], index: 10, kind: input, shape index: {}]
  %s11 = inlined_call_operand.vmem [shape: f32[1,32], index: 11, kind: input, shape index: {}]
  %s12 = inlined_call_operand.<no memory space> [shape: f32[1,1], index: 12, kind: input, shape index: {}]
  %s13 = inlined_call_operand.hbm [shape: f32[4,1,56], index: 13, kind: output, shape index: {0}]
  %s14 = inlined_call_operand.vmem [shape: f32[2,1,2], index: 14, kind: output, shape index: {1}]
  %15 = xla_tuple %s13, %s14
  %s16 = sld [smem:[#allocation0]]
  $region121: #{_lambda_.1} parent=0
    _
  %s18 = ssub.s32 1, %s16
  %s19 = scalar_select 0, %s18, %s16
  %v20 = vstv %s4
  %21 = vst [vmem:[#allocation4] sm:$0x1] %v20
  %v22 = vstv %s12
  %23 = vst [vmem:[#allocation5] sm:$0x1] %v22
  $region1: #{_lambda_.1} parent=0
    #allocation6 [shape = 'u8[4608]{0}', space=vmem, size = 0x1400, scoped, tag = 'input window, operand 3, single buffered']
    #allocation7 [shape = 's32[2]{0}', space=sflag, size = 0x8, scoped, tag = 'scoped memory for _lambda_.1']
    #allocation8 [shape = 's32[2]{0}', space=sflag, size = 0x8, scoped, tag = 'scoped memory for _lambda_.1']
    #allocation9 [shape = 'u8[16384]{0}', space=vmem, size = 0x4000, scoped, tag = 'input window, operand 5, single buffered']
    #allocation10 [shape = 's32[1]{0}', space=sflag, size = 0x4, scoped, tag = 'scoped memory for _lambda_.1']
    #allocation11 [shape = 'u8[16384]{0}', space=vmem, size = 0x4000, scoped, tag = 'input window, operand 6, single buffered']
    #allocation12 [shape = 'u8[16384]{0}', space=vmem, size = 0x4000, scoped, tag = 'input window, operand 7, single buffered']
    #allocation13 [shape = 's32[1]{0}', space=sflag, size = 0x4, scoped, tag = 'scoped memory for _lambda_.1']
    #allocation14 [shape = 'u8[16384]{0}', space=vmem, size = 0x4000, scoped, tag = 'input window, operand 8, single buffered']
    #allocation15 [shape = 'u8[16384]{0}', space=vmem, size = 0x4000, scoped, tag = 'input window, operand 9, single buffered']
    #allocation16 [shape = 's32[1]{0}', space=sflag, size = 0x4, scoped, tag = 'scoped memory for _lambda_.1']
    #allocation17 [shape = 'u8[16384]{0}', space=vmem, size = 0x4000, scoped, tag = 'input window, operand 10, single buffered']
    #allocation18 [shape = 'u8[2048]{0}', space=vmem, size = 0x800, scoped, tag = 'output window, operand 0']
    %24 = vsyncpa [#allocation7], 0
    %25 = vsyncpa [#allocation10], 0
    %26 = vsyncpa [#allocation13], 0
    %27 = vsyncpa [#allocation16], 0
    %28 = vsyncpa [#allocation8], 0
    %s29 = scalar_lea.sflag [#allocation8], 1
    %30 = vsyncpa %s29, 0
    loop: start=0, step=1, limit=4
    $region2: #{_lambda_.1} parent=1 // loop_pre_header
      _
    $region3: #{_lambda_.1} parent=1 // loop_header
      %s32 = sphi 0, %s36
      %p33 = scmp.ge.s32.totalorder %s32, 4
      %s42 = sphi 0, %s44
      %s45 = sphi 0, %s42
      %s46 = sphi 0, %s45
      %s62 = sphi 0, %s46
      %s66 = sphi 0, %s66
      %s68 = sphi 0, %s66
      %s69 = sphi 0, %s68
      %s83 = sphi 0, %s69
      %s87 = sphi 0, %s87
      %s89 = sphi 0, %s87
      %s90 = sphi 0, %s89
      %s104 = sphi 0, %s90
      %s108 = sphi 0, %s108
      %s110 = sphi 0, %s108
      %s111 = sphi 0, %s110
      %s125 = sphi 0, %s111
      %s129 = sphi 0, %s129
      %s131 = sphi 0, %s129
      %s132 = sphi 0, %s131
      %s146 = sphi 0, %s132
      %s150 = sphi 0, %s150
      %s152 = sphi 0, %s150
      %s153 = sphi 0, %s152
      %s167 = sphi 0, %s153
      %s171 = sphi 0, %s171
      %s173 = sphi 0, %s171
      %s174 = sphi 0, %s173
      %s188 = sphi 0, %s174
      %s192 = sphi 0, %s192
      %s194 = sphi 0, %s192
      %s195 = sphi 0, %s194
      %s209 = sphi 0, %s195
      %s213 = sphi 0, %s213
      %s215 = sphi 0, %s213
      %s216 = sphi 0, %s215
      %s230 = sphi 0, %s216
      %s234 = sphi 0, %s234
      %s236 = sphi 0, %s234
      %s237 = sphi 0, %s236
      %s251 = sphi 0, %s237
      %s255 = sphi 0, %s255
      %s257 = sphi 0, %s255
      %s258 = sphi 0, %s257
      %s272 = sphi 0, %s258
      %s276 = sphi 0, %s276
      %s278 = sphi 0, %s276
      %s279 = sphi 0, %s278
      %s293 = sphi 0, %s279
      %s297 = sphi 0, %s297
      %s299 = sphi 0, %s297
      %s300 = sphi 0, %s299
      %s314 = sphi 0, %s300
      %s320 = sphi 0, %s322
      %s323 = sphi 0, %s320
      %s324 = sphi 0, %s323
      %s340 = sphi 0, %s324
      %s346 = sphi 0, %s348
      %s349 = sphi 0, %s346
      %s350 = sphi 0, %s349
      %s366 = sphi 0, %s350
    $region4: #{_lambda_.1} parent=1 // loop_header_branch
      %35 = sbr.rel (%p33) target = $region8
    $region5: #{_lambda_.1} parent=1 // loop_body
      %s37 = ssub.s32 %s32, 1
      %s38 = ssub.s32 %s32, 2
      %s39 = sadd.s32 %s32, 1
      %s40 = ssub.s32 %s32, %s39
      %p41 = scmp.eq.s32.totalorder %s40, 0
      %s43 = sadd.s32 %s42, 1
      %s44 = scalar_select %p41, %s42, %s43
      %p47 = pneg %p41
      %p48 = scmp.eq.s32.totalorder %s32, 1
      %p49 = por %p47, %p48
      %p50 = scmp.ne.s32.totalorder %s42, %s45
      %p51 = scmp.eq.s32.totalorder %s32, 0
      %p52 = por %p50, %p51
      %p53 = scmp.ne.s32.totalorder %s42, %s45
      %p54 = scmp.eq.s32.totalorder %s37, 1
      %p55 = por %p53, %p54
      %p56 = scmp.ne.s32.totalorder %s45, %s46
      %p57 = scmp.eq.s32.totalorder %s37, 0
      %p58 = por %p56, %p57
      %p59 = scmp.ne.s32.totalorder %s45, %s46
      %p60 = scmp.eq.s32.totalorder %s38, 1
      %p61 = por %p59, %p60
      %p63 = scmp.ne.s32.totalorder %s46, %s62
      %p64 = scmp.eq.s32.totalorder %s38, 0
      %p65 = por %p63, %p64
      %s67 = sadd.s32 %s66, 1
      %p70 = scmp.eq.s32.totalorder %s32, 1
      %p71 = scmp.ne.s32.totalorder %s66, %s68
      %p72 = scmp.eq.s32.totalorder %s32, 0
      %p73 = por %p71, %p72
      %p74 = scmp.ne.s32.totalorder %s66, %s68
      %p75 = scmp.eq.s32.totalorder %s37, 1
      %p76 = por %p74, %p75
      %p77 = scmp.ne.s32.totalorder %s68, %s69
      %p78 = scmp.eq.s32.totalorder %s37, 0
      %p79 = por %p77, %p78
      %p80 = scmp.ne.s32.totalorder %s68, %s69
      %p81 = scmp.eq.s32.totalorder %s38, 1
      %p82 = por %p80, %p81
      %p84 = scmp.ne.s32.totalorder %s69, %s83
      %p85 = scmp.eq.s32.totalorder %s38, 0
      %p86 = por %p84, %p85
      %s88 = sadd.s32 %s87, 1
      %p91 = scmp.eq.s32.totalorder %s32, 1
      %p92 = scmp.ne.s32.totalorder %s87, %s89
      %p93 = scmp.eq.s32.totalorder %s32, 0
      %p94 = por %p92, %p93
      %p95 = scmp.ne.s32.totalorder %s87, %s89
      %p96 = scmp.eq.s32.totalorder %s37, 1
      %p97 = por %p95, %p96
      %p98 = scmp.ne.s32.totalorder %s89, %s90
      %p99 = scmp.eq.s32.totalorder %s37, 0
      %p100 = por %p98, %p99
      %p101 = scmp.ne.s32.totalorder %s89, %s90
      %p102 = scmp.eq.s32.totalorder %s38, 1
      %p103 = por %p101, %p102
      %p105 = scmp.ne.s32.totalorder %s90, %s104
      %p106 = scmp.eq.s32.totalorder %s38, 0
      %p107 = por %p105, %p106
      %s109 = sadd.s32 %s108, 1
      %p112 = scmp.eq.s32.totalorder %s32, 1
      %p113 = scmp.ne.s32.totalorder %s108, %s110
      %p114 = scmp.eq.s32.totalorder %s32, 0
      %p115 = por %p113, %p114
      %p116 = scmp.ne.s32.totalorder %s108, %s110
      %p117 = scmp.eq.s32.totalorder %s37, 1
      %p118 = por %p116, %p117
      %p119 = scmp.ne.s32.totalorder %s110, %s111
      %p120 = scmp.eq.s32.totalorder %s37, 0
      %p121 = por %p119, %p120
      %p122 = scmp.ne.s32.totalorder %s110, %s111
      %p123 = scmp.eq.s32.totalorder %s38, 1
      %p124 = por %p122, %p123
      %p126 = scmp.ne.s32.totalorder %s111, %s125
      %p127 = scmp.eq.s32.totalorder %s38, 0
      %p128 = por %p126, %p127
      %s130 = sadd.s32 %s129, 1
      %p133 = scmp.eq.s32.totalorder %s32, 1
      %p134 = scmp.ne.s32.totalorder %s129, %s131
      %p135 = scmp.eq.s32.totalorder %s32, 0
      %p136 = por %p134, %p135
      %p137 = scmp.ne.s32.totalorder %s129, %s131
      %p138 = scmp.eq.s32.totalorder %s37, 1
      %p139 = por %p137, %p138
      %p140 = scmp.ne.s32.totalorder %s131, %s132
      %p141 = scmp.eq.s32.totalorder %s37, 0
      %p142 = por %p140, %p141
      %p143 = scmp.ne.s32.totalorder %s131, %s132
      %p144 = scmp.eq.s32.totalorder %s38, 1
      %p145 = por %p143, %p144
      %p147 = scmp.ne.s32.totalorder %s132, %s146
      %p148 = scmp.eq.s32.totalorder %s38, 0
      %p149 = por %p147, %p148
      %s151 = sadd.s32 %s150, 1
      %p154 = scmp.eq.s32.totalorder %s32, 1
      %p155 = scmp.ne.s32.totalorder %s150, %s152
      %p156 = scmp.eq.s32.totalorder %s32, 0
      %p157 = por %p155, %p156
      %p158 = scmp.ne.s32.totalorder %s150, %s152
      %p159 = scmp.eq.s32.totalorder %s37, 1
      %p160 = por %p158, %p159
      %p161 = scmp.ne.s32.totalorder %s152, %s153
      %p162 = scmp.eq.s32.totalorder %s37, 0
      %p163 = por %p161, %p162
      %p164 = scmp.ne.s32.totalorder %s152, %s153
      %p165 = scmp.eq.s32.totalorder %s38, 1
      %p166 = por %p164, %p165
      %p168 = scmp.ne.s32.totalorder %s153, %s167
      %p169 = scmp.eq.s32.totalorder %s38, 0
      %p170 = por %p168, %p169
      %s172 = sadd.s32 %s171, 1
      %p175 = scmp.eq.s32.totalorder %s32, 1
      %p176 = scmp.ne.s32.totalorder %s171, %s173
      %p177 = scmp.eq.s32.totalorder %s32, 0
      %p178 = por %p176, %p177
      %p179 = scmp.ne.s32.totalorder %s171, %s173
      %p180 = scmp.eq.s32.totalorder %s37, 1
      %p181 = por %p179, %p180
      %p182 = scmp.ne.s32.totalorder %s173, %s174
      %p183 = scmp.eq.s32.totalorder %s37, 0
      %p184 = por %p182, %p183
      %p185 = scmp.ne.s32.totalorder %s173, %s174
      %p186 = scmp.eq.s32.totalorder %s38, 1
      %p187 = por %p185, %p186
      %p189 = scmp.ne.s32.totalorder %s174, %s188
      %p190 = scmp.eq.s32.totalorder %s38, 0
      %p191 = por %p189, %p190
      %s193 = sadd.s32 %s192, 1
      %p196 = scmp.eq.s32.totalorder %s32, 1
      %p197 = scmp.ne.s32.totalorder %s192, %s194
      %p198 = scmp.eq.s32.totalorder %s32, 0
      %p199 = por %p197, %p198
      %p200 = scmp.ne.s32.totalorder %s192, %s194
      %p201 = scmp.eq.s32.totalorder %s37, 1
      %p202 = por %p200, %p201
      %p203 = scmp.ne.s32.totalorder %s194, %s195
      %p204 = scmp.eq.s32.totalorder %s37, 0
      %p205 = por %p203, %p204
      %p206 = scmp.ne.s32.totalorder %s194, %s195
      %p207 = scmp.eq.s32.totalorder %s38, 1
      %p208 = por %p206, %p207
      %p210 = scmp.ne.s32.totalorder %s195, %s209
      %p211 = scmp.eq.s32.totalorder %s38, 0
      %p212 = por %p210, %p211
      %s214 = sadd.s32 %s213, 1
      %p217 = scmp.eq.s32.totalorder %s32, 1
      %p218 = scmp.ne.s32.totalorder %s213, %s215
      %p219 = scmp.eq.s32.totalorder %s32, 0
      %p220 = por %p218, %p219
      %p221 = scmp.ne.s32.totalorder %s213, %s215
      %p222 = scmp.eq.s32.totalorder %s37, 1
      %p223 = por %p221, %p222
      %p224 = scmp.ne.s32.totalorder %s215, %s216
      %p225 = scmp.eq.s32.totalorder %s37, 0
      %p226 = por %p224, %p225
      %p227 = scmp.ne.s32.totalorder %s215, %s216
      %p228 = scmp.eq.s32.totalorder %s38, 1
      %p229 = por %p227, %p228
      %p231 = scmp.ne.s32.totalorder %s216, %s230
      %p232 = scmp.eq.s32.totalorder %s38, 0
      %p233 = por %p231, %p232
      %s235 = sadd.s32 %s234, 1
      %p238 = scmp.eq.s32.totalorder %s32, 1
      %p239 = scmp.ne.s32.totalorder %s234, %s236
      %p240 = scmp.eq.s32.totalorder %s32, 0
      %p241 = por %p239, %p240
      %p242 = scmp.ne.s32.totalorder %s234, %s236
      %p243 = scmp.eq.s32.totalorder %s37, 1
      %p244 = por %p242, %p243
      %p245 = scmp.ne.s32.totalorder %s236, %s237
      %p246 = scmp.eq.s32.totalorder %s37, 0
      %p247 = por %p245, %p246
      %p248 = scmp.ne.s32.totalorder %s236, %s237
      %p249 = scmp.eq.s32.totalorder %s38, 1
      %p250 = por %p248, %p249
      %p252 = scmp.ne.s32.totalorder %s237, %s251
      %p253 = scmp.eq.s32.totalorder %s38, 0
      %p254 = por %p252, %p253
      %s256 = sadd.s32 %s255, 1
      %p259 = scmp.eq.s32.totalorder %s32, 1
      %p260 = scmp.ne.s32.totalorder %s255, %s257
      %p261 = scmp.eq.s32.totalorder %s32, 0
      %p262 = por %p260, %p261
      %p263 = scmp.ne.s32.totalorder %s255, %s257
      %p264 = scmp.eq.s32.totalorder %s37, 1
      %p265 = por %p263, %p264
      %p266 = scmp.ne.s32.totalorder %s257, %s258
      %p267 = scmp.eq.s32.totalorder %s37, 0
      %p268 = por %p266, %p267
      %p269 = scmp.ne.s32.totalorder %s257, %s258
      %p270 = scmp.eq.s32.totalorder %s38, 1
      %p271 = por %p269, %p270
      %p273 = scmp.ne.s32.totalorder %s258, %s272
      %p274 = scmp.eq.s32.totalorder %s38, 0
      %p275 = por %p273, %p274
      %s277 = sadd.s32 %s276, 1
      %p280 = scmp.eq.s32.totalorder %s32, 1
      %p281 = scmp.ne.s32.totalorder %s276, %s278
      %p282 = scmp.eq.s32.totalorder %s32, 0
      %p283 = por %p281, %p282
      %p284 = scmp.ne.s32.totalorder %s276, %s278
      %p285 = scmp.eq.s32.totalorder %s37, 1
      %p286 = por %p284, %p285
      %p287 = scmp.ne.s32.totalorder %s278, %s279
      %p288 = scmp.eq.s32.totalorder %s37, 0
      %p289 = por %p287, %p288
      %p290 = scmp.ne.s32.totalorder %s278, %s279
      %p291 = scmp.eq.s32.totalorder %s38, 1
      %p292 = por %p290, %p291
      %p294 = scmp.ne.s32.totalorder %s279, %s293
      %p295 = scmp.eq.s32.totalorder %s38, 0
      %p296 = por %p294, %p295
      %s298 = sadd.s32 %s297, 1
      %p301 = scmp.eq.s32.totalorder %s32, 1
      %p302 = scmp.ne.s32.totalorder %s297, %s299
      %p303 = scmp.eq.s32.totalorder %s32, 0
      %p304 = por %p302, %p303
      %p305 = scmp.ne.s32.totalorder %s297, %s299
      %p306 = scmp.eq.s32.totalorder %s37, 1
      %p307 = por %p305, %p306
      %p308 = scmp.ne.s32.totalorder %s299, %s300
      %p309 = scmp.eq.s32.totalorder %s37, 0
      %p310 = por %p308, %p309
      %p311 = scmp.ne.s32.totalorder %s299, %s300
      %p312 = scmp.eq.s32.totalorder %s38, 1
      %p313 = por %p311, %p312
      %p315 = scmp.ne.s32.totalorder %s300, %s314
      %p316 = scmp.eq.s32.totalorder %s38, 0
      %p317 = por %p315, %p316
      %s318 = ssub.s32 %s32, %s39
      %p319 = scmp.eq.s32.totalorder %s318, 0
      %s321 = sadd.s32 %s320, 1
      %s322 = scalar_select %p319, %s320, %s321
      %p325 = pneg %p319
      %p326 = scmp.eq.s32.totalorder %s32, 1
      %p327 = por %p325, %p326
      %p328 = scmp.ne.s32.totalorder %s320, %s323
      %p329 = scmp.eq.s32.totalorder %s32, 0
      %p330 = por %p328, %p329
      %p331 = scmp.ne.s32.totalorder %s320, %s323
      %p332 = scmp.eq.s32.totalorder %s37, 1
      %p333 = por %p331, %p332
      %p334 = scmp.ne.s32.totalorder %s323, %s324
      %p335 = scmp.eq.s32.totalorder %s37, 0
      %p336 = por %p334, %p335
      %p337 = scmp.ne.s32.totalorder %s323, %s324
      %p338 = scmp.eq.s32.totalorder %s38, 1
      %p339 = por %p337, %p338
      %p341 = scmp.ne.s32.totalorder %s324, %s340
      %p342 = scmp.eq.s32.totalorder %s38, 0
      %p343 = por %p341, %p342
      %s344 = ssub.s32 %s32, %s39
      %p345 = scmp.eq.s32.totalorder %s344, 0
      %s347 = sadd.s32 %s346, 1
      %s348 = scalar_select %p345, %s346, %s347
      %p351 = pneg %p345
      %p352 = scmp.eq.s32.totalorder %s32, 1
      %p353 = por %p351, %p352
      %p354 = scmp.ne.s32.totalorder %s346, %s349
      %p355 = scmp.eq.s32.totalorder %s32, 0
      %p356 = por %p354, %p355
      %p357 = scmp.ne.s32.totalorder %s346, %s349
      %p358 = scmp.eq.s32.totalorder %s37, 1
      %p359 = por %p357, %p358
      %p360 = scmp.ne.s32.totalorder %s349, %s350
      %p361 = scmp.eq.s32.totalorder %s37, 0
      %p362 = por %p360, %p361
      %p363 = scmp.ne.s32.totalorder %s349, %s350
      %p364 = scmp.eq.s32.totalorder %s38, 1
      %p365 = por %p363, %p364
      %p367 = scmp.ne.s32.totalorder %s350, %s366
      %p368 = scmp.eq.s32.totalorder %s38, 0
      %p369 = por %p367, %p368
      %p370 = scmp.le.s32.totalorder 1, %s32
      %p371 = scmp.lt.s32.totalorder %s32, 3
      %p372 = pnand %p370, %p371
      %p373 = pneg %p372
      // Predicated region
      $region9: #{_lambda_.1} parent=5 // pred_check
        _
      $region10: #{_lambda_.1} parent=5 // pred_check_branch
        %375 = sbr.rel (%p372) target = $region12
      $region11: #{_lambda_.1} parent=5 // pred_region
        %s376 = ssub.s32 %s32, 1
        // Predicated region
        $region13: #{_lambda_.1} parent=11 // pred_check
          %p377 = pneg %p79
        $region14: #{_lambda_.1} parent=11 // pred_check_branch
          %379 = sbr.rel (%p377) target = $region16
        $region15: #{_lambda_.1} parent=11 // pred_region
          _
        $region16: #{_lambda_.1} parent=11 // pred_fallthru
          _
        // Predicated region
        $region17: #{_lambda_.1} parent=11 // pred_check
          %p380 = pneg %p100
        $region18: #{_lambda_.1} parent=11 // pred_check_branch
          %382 = sbr.rel (%p380) target = $region20
        $region19: #{_lambda_.1} parent=11 // pred_region
          _
        $region20: #{_lambda_.1} parent=11 // pred_fallthru
          _
        // Predicated region
        $region21: #{_lambda_.1} parent=11 // pred_check
          %p383 = pneg %p121
        $region22: #{_lambda_.1} parent=11 // pred_check_branch
          %385 = sbr.rel (%p383) target = $region24
        $region23: #{_lambda_.1} parent=11 // pred_region
          %387 = vsyncadd [#allocation7], 0
          %s388 = sshll.u32 %s3, 4
          %s389 = int_to_ptr.hbm [resolvable:$true] %s388
          %s390 = sshll.u32 [#allocation6], 4
          %s391 = int_to_ptr.vmem [resolvable:$true] %s390
          %396 = dma.hbm_to_vmem [thread:$0]  %s389, 144, %s391, [#allocation7], 16, 16, 1
        $region24: #{_lambda_.1} parent=11 // pred_fallthru
          _
        // Predicated region
        $region25: #{_lambda_.1} parent=11 // pred_check
          %p397 = pneg %p142
        $region26: #{_lambda_.1} parent=11 // pred_check_branch
          %399 = sbr.rel (%p397) target = $region28
        $region27: #{_lambda_.1} parent=11 // pred_region
          _
        $region28: #{_lambda_.1} parent=11 // pred_fallthru
          _
        // Predicated region
        $region29: #{_lambda_.1} parent=11 // pred_check
          %p400 = pneg %p163
        $region30: #{_lambda_.1} parent=11 // pred_check_branch
          %402 = sbr.rel (%p400) target = $region32
        $region31: #{_lambda_.1} parent=11 // pred_region
          %404 = vsyncadd [#allocation10], 0
          %s405 = sshll.u32 %s5, 4
          %s406 = int_to_ptr.hbm [resolvable:$true] %s405
          %s407 = sshll.u32 [#allocation9], 4
          %s408 = int_to_ptr.vmem [resolvable:$true] %s407
          %413 = dma.hbm_to_vmem [thread:$0]  %s406, 512, %s408, [#allocation10], 128, 128, 8
        $region32: #{_lambda_.1} parent=11 // pred_fallthru
          _
        // Predicated region
        $region33: #{_lambda_.1} parent=11 // pred_check
          %p414 = pneg %p184
        $region34: #{_lambda_.1} parent=11 // pred_check_branch
          %416 = sbr.rel (%p414) target = $region36
        $region35: #{_lambda_.1} parent=11 // pred_region
          %418 = vsyncadd [#allocation10], 0
          %s419 = sshll.u32 %s6, 4
          %s420 = int_to_ptr.hbm [resolvable:$true] %s419
          %s421 = sshll.u32 [#allocation11], 4
          %s422 = int_to_ptr.vmem [resolvable:$true] %s421
          %427 = dma.hbm_to_vmem [thread:$0]  %s420, 512, %s422, [#allocation10], 128, 128, 8
        $region36: #{_lambda_.1} parent=11 // pred_fallthru
          _
        // Predicated region
        $region37: #{_lambda_.1} parent=11 // pred_check
          %p428 = pneg %p205
        $region38: #{_lambda_.1} parent=11 // pred_check_branch
          %430 = sbr.rel (%p428) target = $region40
        $region39: #{_lambda_.1} parent=11 // pred_region
          %432 = vsyncadd [#allocation13], 0
          %s433 = sshll.u32 %s7, 4
          %s434 = int_to_ptr.hbm [resolvable:$true] %s433
          %s435 = sshll.u32 [#allocation12], 4
          %s436 = int_to_ptr.vmem [resolvable:$true] %s435
          %441 = dma.hbm_to_vmem [thread:$0]  %s434, 512, %s436, [#allocation13], 128, 128, 8
        $region40: #{_lambda_.1} parent=11 // pred_fallthru
          _
        // Predicated region
        $region41: #{_lambda_.1} parent=11 // pred_check
          %p442 = pneg %p226
        $region42: #{_lambda_.1} parent=11 // pred_check_branch
          %444 = sbr.rel (%p442) target = $region44
        $region43: #{_lambda_.1} parent=11 // pred_region
          %446 = vsyncadd [#allocation13], 0
          %s447 = sshll.u32 %s8, 4
          %s448 = int_to_ptr.hbm [resolvable:$true] %s447
          %s449 = sshll.u32 [#allocation14], 4
          %s450 = int_to_ptr.vmem [resolvable:$true] %s449
          %455 = dma.hbm_to_vmem [thread:$0]  %s448, 512, %s450, [#allocation13], 128, 128, 8
        $region44: #{_lambda_.1} parent=11 // pred_fallthru
          _
        // Predicated region
        $region45: #{_lambda_.1} parent=11 // pred_check
          %p456 = pneg %p247
        $region46: #{_lambda_.1} parent=11 // pred_check_branch
          %458 = sbr.rel (%p456) target = $region48
        $region47: #{_lambda_.1} parent=11 // pred_region
          %460 = vsyncadd [#allocation16], 0
          %s461 = sshll.u32 %s9, 4
          %s462 = int_to_ptr.hbm [resolvable:$true] %s461
          %s463 = sshll.u32 [#allocation15], 4
          %s464 = int_to_ptr.vmem [resolvable:$true] %s463
          %469 = dma.hbm_to_vmem [thread:$0]  %s462, 512, %s464, [#allocation16], 128, 128, 8
        $region48: #{_lambda_.1} parent=11 // pred_fallthru
          _
        // Predicated region
        $region49: #{_lambda_.1} parent=11 // pred_check
          %p470 = pneg %p268
        $region50: #{_lambda_.1} parent=11 // pred_check_branch
          %472 = sbr.rel (%p470) target = $region52
        $region51: #{_lambda_.1} parent=11 // pred_region
          %474 = vsyncadd [#allocation16], 0
          %s475 = sshll.u32 %s10, 4
          %s476 = int_to_ptr.hbm [resolvable:$true] %s475
          %s477 = sshll.u32 [#allocation17], 4
          %s478 = int_to_ptr.vmem [resolvable:$true] %s477
          %483 = dma.hbm_to_vmem [thread:$0]  %s476, 512, %s478, [#allocation16], 128, 128, 8
        $region52: #{_lambda_.1} parent=11 // pred_fallthru
          _
        // Predicated region
        $region53: #{_lambda_.1} parent=11 // pred_check
          %p484 = pneg %p289
        $region54: #{_lambda_.1} parent=11 // pred_check_branch
          %486 = sbr.rel (%p484) target = $region56
        $region55: #{_lambda_.1} parent=11 // pred_region
          _
        $region56: #{_lambda_.1} parent=11 // pred_fallthru
          _
        // Predicated region
        $region57: #{_lambda_.1} parent=11 // pred_check
          %p487 = pneg %p310
        $region58: #{_lambda_.1} parent=11 // pred_check_branch
          %489 = sbr.rel (%p487) target = $region60
        $region59: #{_lambda_.1} parent=11 // pred_region
          _
        $region60: #{_lambda_.1} parent=11 // pred_fallthru
          _
      $region12: #{_lambda_.1} parent=5 // pred_fallthru
        _
      %p490 = scmp.lt.s32.totalorder %s32, 2
      // Predicated region
      $region61: #{_lambda_.1} parent=5 // pred_check
        %p491 = pneg %p490
      $region62: #{_lambda_.1} parent=5 // pred_check_branch
        %493 = sbr.rel (%p491) target = $region64
      $region63: #{_lambda_.1} parent=5 // pred_region
        // Predicated region
        $region65: #{_lambda_.1} parent=63 // pred_check
          %p494 = pneg %p52
        $region66: #{_lambda_.1} parent=63 // pred_check_branch
          %496 = sbr.rel (%p494) target = $region68
        $region67: #{_lambda_.1} parent=63 // pred_region
          %s497 = smul.u32 2, %s32
          %p498 = scmp.lt.s32.totalorder %s497, 3
          %s499 = scalar_select %p498, %s497, 3
          %s500 = smul.addr %s499, 4
          %s501 = smul.addr %s500, 4
          %s502 = scalar_lea.vmem %s0, %s501
          %s503 = smul.u32 2, %s32
        $region68: #{_lambda_.1} parent=63 // pred_fallthru
          _
      $region64: #{_lambda_.1} parent=5 // pred_fallthru
        _
      %p504 = scmp.le.s32.totalorder 1, %s32
      %p505 = scmp.lt.s32.totalorder %s32, 3
      %p506 = pnand %p504, %p505
      %p507 = pneg %p506
      // Predicated region
      $region69: #{_lambda_.1} parent=5 // pred_check
        _
      $region70: #{_lambda_.1} parent=5 // pred_check_branch
        %509 = sbr.rel (%p506) target = $region72
      $region71: #{_lambda_.1} parent=5 // pred_region
        %s510 = ssub.s32 %s32, 1
        // Predicated region
        $region73: #{_lambda_.1} parent=71 // pred_check
          %p511 = pneg %p121
        $region74: #{_lambda_.1} parent=71 // pred_check_branch
          %513 = sbr.rel (%p511) target = $region76
        $region75: #{_lambda_.1} parent=71 // pred_region
          %515 = dma.done [#allocation7], 144
        $region76: #{_lambda_.1} parent=71 // pred_fallthru
          _
        // Predicated region
        $region77: #{_lambda_.1} parent=71 // pred_check
          %p516 = pneg %p163
        $region78: #{_lambda_.1} parent=71 // pred_check_branch
          %518 = sbr.rel (%p516) target = $region80
        $region79: #{_lambda_.1} parent=71 // pred_region
          %520 = dma.done [#allocation10], 512
        $region80: #{_lambda_.1} parent=71 // pred_fallthru
          _
        // Predicated region
        $region81: #{_lambda_.1} parent=71 // pred_check
          %p521 = pneg %p184
        $region82: #{_lambda_.1} parent=71 // pred_check_branch
          %523 = sbr.rel (%p521) target = $region84
        $region83: #{_lambda_.1} parent=71 // pred_region
          %525 = dma.done [#allocation10], 512
        $region84: #{_lambda_.1} parent=71 // pred_fallthru
          _
        // Predicated region
        $region85: #{_lambda_.1} parent=71 // pred_check
          %p526 = pneg %p205
        $region86: #{_lambda_.1} parent=71 // pred_check_branch
          %528 = sbr.rel (%p526) target = $region88
        $region87: #{_lambda_.1} parent=71 // pred_region
          %530 = dma.done [#allocation13], 512
        $region88: #{_lambda_.1} parent=71 // pred_fallthru
          _
        // Predicated region
        $region89: #{_lambda_.1} parent=71 // pred_check
          %p531 = pneg %p226
        $region90: #{_lambda_.1} parent=71 // pred_check_branch
          %533 = sbr.rel (%p531) target = $region92
        $region91: #{_lambda_.1} parent=71 // pred_region
          %535 = dma.done [#allocation13], 512
        $region92: #{_lambda_.1} parent=71 // pred_fallthru
          _
        // Predicated region
        $region93: #{_lambda_.1} parent=71 // pred_check
          %p536 = pneg %p247
        $region94: #{_lambda_.1} parent=71 // pred_check_branch
          %538 = sbr.rel (%p536) target = $region96
        $region95: #{_lambda_.1} parent=71 // pred_region
          %540 = dma.done [#allocation16], 512
        $region96: #{_lambda_.1} parent=71 // pred_fallthru
          _
        // Predicated region
        $region97: #{_lambda_.1} parent=71 // pred_check
          %p541 = pneg %p268
        $region98: #{_lambda_.1} parent=71 // pred_check_branch
          %543 = sbr.rel (%p541) target = $region100
        $region99: #{_lambda_.1} parent=71 // pred_region
          %545 = dma.done [#allocation16], 512
        $region100: #{_lambda_.1} parent=71 // pred_fallthru
          _
        %s546 = smul.u32 2, %s37
        %p547 = scmp.lt.s32.totalorder %s546, 3
        %s548 = scalar_select %p547, %s546, 3
        %s549 = smul.addr %s548, 4
        %s550 = smul.addr %s549, 4
        %s551 = scalar_lea.vmem %s0, %s550
        %p552 = pneg %p58
        %p553 = pneg %p55
        %p554 = pneg %p79
        %p555 = pneg %p76
        %p556 = pneg %p100
        %p557 = pneg %p97
        %p558 = pneg %p121
        %p559 = pneg %p118
        %p560 = pneg %p142
        %p561 = pneg %p139
        %p562 = pneg %p163
        %p563 = pneg %p160
        %p564 = pneg %p184
        %p565 = pneg %p181
        %p566 = pneg %p205
        %p567 = pneg %p202
        %p568 = pneg %p226
        %p569 = pneg %p223
        %p570 = pneg %p247
        %p571 = pneg %p244
        %p572 = pneg %p268
        %p573 = pneg %p265
        %p574 = pneg %p289
        %p575 = pneg %p286
        %p576 = pneg %p310
        %p577 = pneg %p307
        %p578 = pneg %p336
        %p579 = pneg %p333
        %s580 = sand.u32 %s323, 1
        %s581 = scalar_lea.sflag [#allocation8], %s580
        %s582 = sand.u32 %s323, 1
        %s583 = smul.addr %s582, 2
        %s584 = scalar_lea.vmem [#allocation18], %s583
        %p585 = pneg %p362
        %p586 = pneg %p359
        %p587 = scmp.lt.s32.totalorder %s37, 1
        %s588 = scalar_select %p587, %s37, 1
        %s589 = scalar_lea.vmem %s14, %s588
        %s590 = smul.u32 2, %s37
        %p591 = scmp.lt.s32.totalorder %s590, 3
        %s592 = scalar_select %p591, %s590, 3
        %s593 = smul.addr %s592, 4
        %s594 = smul.addr %s593, 4
        %s595 = scalar_lea.vmem %s0, %s594
        %s596 = smul.u32 2, %s37
        %s597 = smul.u32 2, %s37
        %p598 = scmp.lt.s32.totalorder %s37, 1
        %s599 = scalar_select %p598, %s37, 1
        %s600 = scalar_lea.vmem %s14, %s599
        %602 = vst [vmem:[#allocation2] sm:$0xff] 0.0
        %603 = vst [vmem:[#allocation2 + $0x20] sm:$0xff] 0.0
        %604 = vst [vmem:[#allocation2 + $0x40] sm:$0xff] 0.0
        %605 = vst [vmem:[#allocation2 + $0x60] sm:$0xff] 0.0
        %606 = vst [vmem:[#allocation2 + $0x18] sm:$0xff] 0.0
        %607 = vst [vmem:[#allocation2 + $0x38] sm:$0xff] 0.0
        %608 = vst [vmem:[#allocation2 + $0x58] sm:$0xff] 0.0
        %609 = vst [vmem:[#allocation2 + $0x78] sm:$0xff] 0.0
        %vm610 = vcmask 1048064
        %611 = vst.msk [vmem:[#allocation2 + $0x8] sm:$0xff] %vm610, 0.0
        %612 = vst.msk [vmem:[#allocation2 + $0x28] sm:$0xff] %vm610, 0.0
        %613 = vst.msk [vmem:[#allocation2 + $0x48] sm:$0xff] %vm610, 0.0
        %614 = vst.msk [vmem:[#allocation2 + $0x68] sm:$0xff] %vm610, 0.0
        %615 = vst.msk [vmem:[#allocation2 + $0x10] sm:$0xff] %vm610, 0.0
        %616 = vst.msk [vmem:[#allocation2 + $0x30] sm:$0xff] %vm610, 0.0
        %617 = vst.msk [vmem:[#allocation2 + $0x50] sm:$0xff] %vm610, 0.0
        %618 = vst.msk [vmem:[#allocation2 + $0x70] sm:$0xff] %vm610, 0.0
        %v619 = vld [vmem:[%s595] sm:$0xf]
        %v620 = vld [vmem:[%s595 + $0x4] sm:$0xf]
        %v621 = vld [vmem:[%s595 + $0x8] sm:$0xf]
        %v622 = vld [vmem:[%s595 + $0xc] sm:$0xf]
        %v623 = vunpack.c.l.bf16 %v619
        %v624 = vunpack.c.l.bf16 %v620
        %v625 = vunpack.c.l.bf16 %v621
        %v626 = vunpack.c.l.bf16 %v622
        %vm627 = vcmask 523264
        %628 = vst.msk [vmem:[#allocation2 + $0x8] sm:$0xff] %vm627, %v623
        %629 = vst.msk [vmem:[#allocation2 + $0x28] sm:$0xff] %vm627, %v624
        %630 = vst.msk [vmem:[#allocation2 + $0x48] sm:$0xff] %vm627, %v625
        %631 = vst.msk [vmem:[#allocation2 + $0x68] sm:$0xff] %vm627, %v626
        %s632 = scalar_lea.vmem %s595, 16
        %v633 = vld [vmem:[%s632] sm:$0xf]
        %v634 = vld [vmem:[%s632 + $0x4] sm:$0xf]
        %v635 = vld [vmem:[%s632 + $0x8] sm:$0xf]
        %v636 = vld [vmem:[%s632 + $0xc] sm:$0xf]
        %v637 = vunpack.c.l.bf16 %v633
        %v638 = vunpack.c.l.bf16 %v634
        %v639 = vunpack.c.l.bf16 %v635
        %v640 = vunpack.c.l.bf16 %v636
        %641 = vst.msk [vmem:[#allocation2 + $0x10] sm:$0xff] %vm627, %v637
        %642 = vst.msk [vmem:[#allocation2 + $0x30] sm:$0xff] %vm627, %v638
        %643 = vst.msk [vmem:[#allocation2 + $0x50] sm:$0xff] %vm627, %v639
        %644 = vst.msk [vmem:[#allocation2 + $0x70] sm:$0xff] %vm627, %v640
        %v645 = vlaneseq
        %v646 = vand.u32 %v645, 127
        %vm647 = vcmp.lt.s32.totalorder %v646, 64
        %v648 = vld [vmem:[#allocation2] sm:$0xff]
        %v649 = vld [vmem:[#allocation2 + $0x8] sm:$0xff]
        %v650 = vld [vmem:[#allocation2 + $0x10] sm:$0xff]
        %v651 = vld [vmem:[#allocation2 + $0x20] sm:$0xff]
        %v652 = vld [vmem:[#allocation2 + $0x28] sm:$0xff]
        %v653 = vld [vmem:[#allocation2 + $0x30] sm:$0xff]
        %v654 = vld [vmem:[#allocation2 + $0x40] sm:$0xff]
        %v655 = vld [vmem:[#allocation2 + $0x48] sm:$0xff]
        %v656 = vld [vmem:[#allocation2 + $0x50] sm:$0xff]
        %v657 = vld [vmem:[#allocation2 + $0x60] sm:$0xff]
        %v658 = vld [vmem:[#allocation2 + $0x68] sm:$0xff]
        %v659 = vld [vmem:[#allocation2 + $0x70] sm:$0xff]
        %v660 = vpack.c.bf16 %v649, %v648
        %v661 = vpack.c.bf16 %v650, %v650
        %v662 = vpack.c.bf16 %v652, %v651
        %v663 = vpack.c.bf16 %v653, %v653
        %v664 = vpack.c.bf16 %v655, %v654
        %v665 = vpack.c.bf16 %v656, %v656
        %v666 = vpack.c.bf16 %v658, %v657
        %v667 = vpack.c.bf16 %v659, %v659
        %676 = vrot.lane.b32.xlu0 %v660, 1
        %v677 = vpop.permute.xlu0 %676
        %678 = vrot.lane.b32.xlu0 %v661, 1
        %v679 = vpop.permute.xlu0 %678
        %680 = vrot.lane.b32.xlu0 %v662, 1
        %v681 = vpop.permute.xlu0 %680
        %682 = vrot.lane.b32.xlu0 %v663, 1
        %v683 = vpop.permute.xlu0 %682
        %684 = vrot.lane.b32.xlu0 %v664, 1
        %v685 = vpop.permute.xlu0 %684
        %686 = vrot.lane.b32.xlu0 %v665, 1
        %v687 = vpop.permute.xlu0 %686
        %688 = vrot.lane.b32.xlu0 %v666, 1
        %v689 = vpop.permute.xlu0 %688
        %690 = vrot.lane.b32.xlu0 %v667, 1
        %v691 = vpop.permute.xlu0 %690
        %v692 = vrot.slane %v677, 4
        %v693 = vrot.slane %v679, 4
        %v694 = vrot.slane %v681, 4
        %v695 = vrot.slane %v683, 4
        %v696 = vrot.slane %v685, 4
        %v697 = vrot.slane %v687, 4
        %v698 = vrot.slane %v689, 4
        %v699 = vrot.slane %v691, 4
        %vm700 = vcmask 1043456
        %v701 = vsel %vm700, %v692, %v693
        %vm702 = vcmask 7168
        %v703 = vsel %vm702, %v677, %v701
        %v704 = vsel %vm700, %v694, %v695
        %v705 = vsel %vm702, %v681, %v704
        %v706 = vsel %vm700, %v696, %v697
        %v707 = vsel %vm702, %v685, %v706
        %v708 = vsel %vm700, %v698, %v699
        %v709 = vsel %vm702, %v689, %v708
        %714 = vst [vmem:[#allocation3] sm:$0xff] %v703
        %715 = vst [vmem:[#allocation3 + $0x8] sm:$0xff] %v705
        %716 = vst [vmem:[#allocation3 + $0x10] sm:$0xff] %v707
        %717 = vst [vmem:[#allocation3 + $0x18] sm:$0xff] %v709
        %v718 = vld [vmem:[#allocation2 + $0x8] sm:$0xff]
        %v719 = vld [vmem:[#allocation2 + $0x10] sm:$0xff]
        %v720 = vld [vmem:[#allocation2 + $0x28] sm:$0xff]
        %v721 = vld [vmem:[#allocation2 + $0x30] sm:$0xff]
        %v722 = vld [vmem:[#allocation2 + $0x48] sm:$0xff]
        %v723 = vld [vmem:[#allocation2 + $0x50] sm:$0xff]
        %v724 = vld [vmem:[#allocation2 + $0x68] sm:$0xff]
        %v725 = vld [vmem:[#allocation2 + $0x70] sm:$0xff]
        %v726 = vpack.c.bf16 %v719, %v718
        %v727 = vpack.c.bf16 %v721, %v720
        %v728 = vpack.c.bf16 %v723, %v722
        %v729 = vpack.c.bf16 %v725, %v724
        %730 = vst [vmem:[#allocation3 + $0x20] sm:$0xff] %v726
        %731 = vst [vmem:[#allocation3 + $0x28] sm:$0xff] %v727
        %732 = vst [vmem:[#allocation3 + $0x30] sm:$0xff] %v728
        %733 = vst [vmem:[#allocation3 + $0x38] sm:$0xff] %v729
        %v734 = vld [vmem:[#allocation2 + $0x8] sm:$0xff]
        %v735 = vld [vmem:[#allocation2 + $0x10] sm:$0xff]
        %v736 = vld [vmem:[#allocation2 + $0x18] sm:$0xff]
        %v737 = vld [vmem:[#allocation2 + $0x28] sm:$0xff]
        %v738 = vld [vmem:[#allocation2 + $0x30] sm:$0xff]
        %v739 = vld [vmem:[#allocation2 + $0x38] sm:$0xff]
        %v740 = vld [vmem:[#allocation2 + $0x48] sm:$0xff]
        %v741 = vld [vmem:[#allocation2 + $0x50] sm:$0xff]
        %v742 = vld [vmem:[#allocation2 + $0x58] sm:$0xff]
        %v743 = vld [vmem:[#allocation2 + $0x68] sm:$0xff]
        %v744 = vld [vmem:[#allocation2 + $0x70] sm:$0xff]
        %v745 = vld [vmem:[#allocation2 + $0x78] sm:$0xff]
        %v746 = vpack.c.bf16 %v735, %v734
        %v747 = vpack.c.bf16 %v736, %v736
        %v748 = vpack.c.bf16 %v738, %v737
        %v749 = vpack.c.bf16 %v739, %v739
        %v750 = vpack.c.bf16 %v741, %v740
        %v751 = vpack.c.bf16 %v742, %v742
        %v752 = vpack.c.bf16 %v744, %v743
        %v753 = vpack.c.bf16 %v745, %v745
        %762 = vrot.lane.b32.xlu0 %v746, 127
        %v763 = vpop.permute.xlu0 %762
        %764 = vrot.lane.b32.xlu0 %v747, 127
        %v765 = vpop.permute.xlu0 %764
        %766 = vrot.lane.b32.xlu0 %v748, 127
        %v767 = vpop.permute.xlu0 %766
        %768 = vrot.lane.b32.xlu0 %v749, 127
        %v769 = vpop.permute.xlu0 %768
        %770 = vrot.lane.b32.xlu0 %v750, 127
        %v771 = vpop.permute.xlu0 %770
        %772 = vrot.lane.b32.xlu0 %v751, 127
        %v773 = vpop.permute.xlu0 %772
        %774 = vrot.lane.b32.xlu0 %v752, 127
        %v775 = vpop.permute.xlu0 %774
        %776 = vrot.lane.b32.xlu0 %v753, 127
        %v777 = vpop.permute.xlu0 %776
        %v778 = vrot.slane %v763, 4
        %v779 = vrot.slane %v765, 4
        %v780 = vrot.slane %v767, 4
        %v781 = vrot.slane %v769, 4
        %v782 = vrot.slane %v771, 4
        %v783 = vrot.slane %v773, 4
        %v784 = vrot.slane %v775, 4
        %v785 = vrot.slane %v777, 4
        %v786 = vsel %vm700, %v778, %v779
        %vm787 = vcmask 1039360
        %v788 = vsel %vm787, %v763, %v786
        %v789 = vsel %vm700, %v780, %v781
        %v790 = vsel %vm787, %v767, %v789
        %v791 = vsel %vm700, %v782, %v783
        %v792 = vsel %vm787, %v771, %v791
        %v793 = vsel %vm700, %v784, %v785
        %v794 = vsel %vm787, %v775, %v793
        %799 = vst [vmem:[#allocation3 + $0x40] sm:$0xff] %v788
        %800 = vst [vmem:[#allocation3 + $0x48] sm:$0xff] %v790
        %801 = vst [vmem:[#allocation3 + $0x50] sm:$0xff] %v792
        %802 = vst [vmem:[#allocation3 + $0x58] sm:$0xff] %v794
        %v803 = vld [vmem:[%s1] sm:$0xf]
        %v804 = vld [vmem:[%s1 + $0x4] sm:$0xf]
        %v805 = vld [vmem:[%s1 + $0x8] sm:$0xf]
        %v806 = vld [vmem:[%s1 + $0xc] sm:$0xf]
        %v807 = vld [vmem:[#allocation3] sm:$0xff]
        %v808 = vld [vmem:[#allocation3 + $0x8] sm:$0xff]
        %v809 = vld [vmem:[#allocation3 + $0x10] sm:$0xff]
        %v810 = vld [vmem:[#allocation3 + $0x18] sm:$0xff]
        %v811 = vld [vmem:[#allocation3 + $0x20] sm:$0xff]
        %v812 = vld [vmem:[#allocation3 + $0x28] sm:$0xff]
        %v813 = vld [vmem:[#allocation3 + $0x30] sm:$0xff]
        %v814 = vld [vmem:[#allocation3 + $0x38] sm:$0xff]
        %v815 = vld [vmem:[#allocation3 + $0x40] sm:$0xff]
        %v816 = vld [vmem:[#allocation3 + $0x48] sm:$0xff]
        %v817 = vld [vmem:[#allocation3 + $0x50] sm:$0xff]
        %v818 = vld [vmem:[#allocation3 + $0x58] sm:$0xff]
        %v819 = vld [vmem:[%s2] sm:$0xff]
        %v820 = vld [vmem:[%s2 + $0x8] sm:$0xff]
        %v821 = vld [vmem:[%s2 + $0x10] sm:$0xff]
        %v822 = vld [vmem:[%s2 + $0x18] sm:$0xff]
        %824 = vset.pattern.permute.xlu0 0
        %825 = vperm.xlu0 %824, %v819
        %v826 = vpop.permute.xlu0 %825
        %829 = vset.pattern.permute.xlu0 0
        %830 = vperm.xlu0 %829, %v820
        %v831 = vpop.permute.xlu0 %830
        %834 = vset.pattern.permute.xlu0 0
        %835 = vperm.xlu0 %834, %v821
        %v836 = vpop.permute.xlu0 %835
        %839 = vset.pattern.permute.xlu0 0
        %840 = vperm.xlu0 %839, %v822
        %v841 = vpop.permute.xlu0 %840
        %v847 = vunpack.c.l.b16 %v803
        %v848 = vunpack.c.l.b16 %v804
        %v849 = vunpack.c.l.b16 %v805
        %v850 = vunpack.c.l.b16 %v806
        %v851 = vpack.c.b16 %v848, %v847
        %v852 = vpack.c.b16 %v850, %v849
        %v865 = vunpack.c.l.b16 %v807
        %v866 = vunpack.c.h.b16 %v807
        %v867 = vunpack.c.l.b16 %v808
        %v868 = vunpack.c.h.b16 %v808
        %v869 = vunpack.c.l.b16 %v809
        %v870 = vunpack.c.h.b16 %v809
        %v871 = vunpack.c.l.b16 %v810
        %v872 = vunpack.c.h.b16 %v810
        %v873 = vunpack.c.l.b16 %v811
        %v874 = vunpack.c.h.b16 %v811
        %v875 = vunpack.c.l.b16 %v812
        %v876 = vunpack.c.h.b16 %v812
        %v877 = vunpack.c.l.b16 %v813
        %v878 = vunpack.c.h.b16 %v813
        %v879 = vunpack.c.l.b16 %v814
        %v880 = vunpack.c.h.b16 %v814
        %v881 = vunpack.c.l.b16 %v815
        %v882 = vunpack.c.h.b16 %v815
        %v883 = vunpack.c.l.b16 %v816
        %v884 = vunpack.c.h.b16 %v816
        %v885 = vunpack.c.l.b16 %v817
        %v886 = vunpack.c.h.b16 %v817
        %v887 = vunpack.c.l.b16 %v818
        %v888 = vunpack.c.h.b16 %v818
        %v889 = vpack.c.b16 %v867, %v865
        %v890 = vpack.c.b16 %v868, %v866
        %v891 = vpack.c.b16 %v871, %v869
        %v892 = vpack.c.b16 %v872, %v870
        %v893 = vpack.c.b16 %v875, %v873
        %v894 = vpack.c.b16 %v876, %v874
        %v895 = vpack.c.b16 %v879, %v877
        %v896 = vpack.c.b16 %v880, %v878
        %v897 = vpack.c.b16 %v883, %v881
        %v898 = vpack.c.b16 %v884, %v882
        %v899 = vpack.c.b16 %v887, %v885
        %v900 = vpack.c.b16 %v888, %v886
        %vm913 = vcmask 785408
        %v915 = vsel %vm913, %v851, 0
        %v918 = vsel %vm913, %v852, 0
        %920 = vmatpush.bf16.msra.mxu0 0
        %921 = vmatpush.bf16.msra.mxu0 0
        %922 = vmatpush.bf16.msra.mxu0 %v899
        %923 = vmatpush.bf16.msra.mxu0 %v897
        %924 = vmatpush.bf16.msra.mxu0 %v895
        %925 = vmatpush.bf16.msra.mxu0 %v893
        %926 = vmatpush.bf16.msra.mxu0 %v891
        %927 = vmatpush.bf16.msra.mxu0 %v889
        %928 = vmatmul.bf16.gmra.mxu0 %v915
        %v929 = vpop.f32.mrf.mxu0
        %v930 = vadd.f32 %v826, %v929
        %v931 = vpop.f32.mrf.mxu0
        %v932 = vadd.f32 %v831, %v931
        %933 = vmatmul.bf16.gmra.mxu0 %v918
        %v934 = vpop.f32.mrf.mxu0
        %v935 = vadd.f32 %v836, %v934
        %v936 = vpop.f32.mrf.mxu0
        %v937 = vadd.f32 %v841, %v936
        %938 = vdwg.mxu0
        %939 = vmatpush.bf16.msra.mxu0 0
        %940 = vmatpush.bf16.msra.mxu0 0
        %941 = vmatpush.bf16.msra.mxu0 %v900
        %942 = vmatpush.bf16.msra.mxu0 %v898
        %943 = vmatpush.bf16.msra.mxu0 %v896
        %944 = vmatpush.bf16.msra.mxu0 %v894
        %945 = vmatpush.bf16.msra.mxu0 %v892
        %946 = vmatpush.bf16.msra.mxu0 %v890
        %947 = vmatmul.bf16.gmra.mxu0 %v915
        %v948 = vpop.f32.mrf.mxu0
        %v949 = vadd.f32 %v826, %v948
        %v950 = vpop.f32.mrf.mxu0
        %v951 = vadd.f32 %v831, %v950
        %952 = vmatmul.bf16.gmra.mxu0 %v918
        %v953 = vpop.f32.mrf.mxu0
        %v954 = vadd.f32 %v836, %v953
        %v955 = vpop.f32.mrf.mxu0
        %v956 = vadd.f32 %v841, %v955
        %957 = vdwg.mxu0
        %v958 = vmax.f32 %v930, 0.0
        %v959 = vmax.f32 %v949, 0.0
        %v960 = vmax.f32 %v932, 0.0
        %v961 = vmax.f32 %v951, 0.0
        %v962 = vmax.f32 %v935, 0.0
        %v963 = vmax.f32 %v954, 0.0
        %v964 = vmax.f32 %v937, 0.0
        %v965 = vmax.f32 %v956, 0.0
        %v966 = vld [vmem:[#allocation2 + $0x8] sm:$0xff]
        %v967 = vld [vmem:[#allocation2 + $0x10] sm:$0xff]
        %v968 = vld [vmem:[#allocation2 + $0x28] sm:$0xff]
        %v969 = vld [vmem:[#allocation2 + $0x30] sm:$0xff]
        %v970 = vld [vmem:[#allocation2 + $0x48] sm:$0xff]
        %v971 = vld [vmem:[#allocation2 + $0x50] sm:$0xff]
        %v972 = vld [vmem:[#allocation2 + $0x68] sm:$0xff]
        %v973 = vld [vmem:[#allocation2 + $0x70] sm:$0xff]
        %v974 = vadd.f32 %v958, %v966
        %v975 = vadd.f32 %v959, %v967
        %v976 = vadd.f32 %v960, %v968
        %v977 = vadd.f32 %v961, %v969
        %v978 = vadd.f32 %v962, %v970
        %v979 = vadd.f32 %v963, %v971
        %v980 = vadd.f32 %v964, %v972
        %v981 = vadd.f32 %v965, %v973
        %v982 = vsel %vm647, 1, 0
        %v983 = vperm.slane %v982, 0
        %vm984 = vcmp.eq.s32.totalorder %v983, 1
        %v985 = vsel %vm984, %v974, 0.0
        %v986 = vsel %vm984, %v975, 0.0
        %v987 = vsel %vm984, %v976, 0.0
        %v988 = vsel %vm984, %v977, 0.0
        %v989 = vsel %vm984, %v978, 0.0
        %v990 = vsel %vm984, %v979, 0.0
        %v991 = vsel %vm984, %v980, 0.0
        %v992 = vsel %vm984, %v981, 0.0
        %993 = vst [vmem:[#allocation2 + $0x8] sm:$0xff] %v985
        %994 = vst [vmem:[#allocation2 + $0x10] sm:$0xff] %v986
        %995 = vst [vmem:[#allocation2 + $0x28] sm:$0xff] %v987
        %996 = vst [vmem:[#allocation2 + $0x30] sm:$0xff] %v988
        %997 = vst [vmem:[#allocation2 + $0x48] sm:$0xff] %v989
        %998 = vst [vmem:[#allocation2 + $0x50] sm:$0xff] %v990
        %999 = vst [vmem:[#allocation2 + $0x68] sm:$0xff] %v991
        %1000 = vst [vmem:[#allocation2 + $0x70] sm:$0xff] %v992
        %v1001 = vld [vmem:[#allocation2] sm:$0xff]
        %v1002 = vld [vmem:[#allocation2 + $0x8] sm:$0xff]
        %v1003 = vld [vmem:[#allocation2 + $0x10] sm:$0xff]
        %v1004 = vld [vmem:[#allocation2 + $0x20] sm:$0xff]
        %v1005 = vld [vmem:[#allocation2 + $0x28] sm:$0xff]
        %v1006 = vld [vmem:[#allocation2 + $0x30] sm:$0xff]
        %v1007 = vld [vmem:[#allocation2 + $0x40] sm:$0xff]
        %v1008 = vld [vmem:[#allocation2 + $0x48] sm:$0xff]
        %v1009 = vld [vmem:[#allocation2 + $0x50] sm:$0xff]
        %v1010 = vld [vmem:[#allocation2 + $0x60] sm:$0xff]
        %v1011 = vld [vmem:[#allocation2 + $0x68] sm:$0xff]
        %v1012 = vld [vmem:[#allocation2 + $0x70] sm:$0xff]
        %v1013 = vpack.c.bf16 %v1002, %v1001
        %v1014 = vpack.c.bf16 %v1003, %v1003
        %v1015 = vpack.c.bf16 %v1005, %v1004
        %v1016 = vpack.c.bf16 %v1006, %v1006
        %v1017 = vpack.c.bf16 %v1008, %v1007
        %v1018 = vpack.c.bf16 %v1009, %v1009
        %v1019 = vpack.c.bf16 %v1011, %v1010
        %v1020 = vpack.c.bf16 %v1012, %v1012
        %1029 = vrot.lane.b32.xlu0 %v1013, 2
        %v1030 = vpop.permute.xlu0 %1029
        %1031 = vrot.lane.b32.xlu0 %v1014, 2
        %v1032 = vpop.permute.xlu0 %1031
        %1033 = vrot.lane.b32.xlu0 %v1015, 2
        %v1034 = vpop.permute.xlu0 %1033
        %1035 = vrot.lane.b32.xlu0 %v1016, 2
        %v1036 = vpop.permute.xlu0 %1035
        %1037 = vrot.lane.b32.xlu0 %v1017, 2
        %v1038 = vpop.permute.xlu0 %1037
        %1039 = vrot.lane.b32.xlu0 %v1018, 2
        %v1040 = vpop.permute.xlu0 %1039
        %1041 = vrot.lane.b32.xlu0 %v1019, 2
        %v1042 = vpop.permute.xlu0 %1041
        %1043 = vrot.lane.b32.xlu0 %v1020, 2
        %v1044 = vpop.permute.xlu0 %1043
        %v1045 = vrot.slane %v1030, 4
        %v1046 = vrot.slane %v1032, 4
        %v1047 = vrot.slane %v1034, 4
        %v1048 = vrot.slane %v1036, 4
        %v1049 = vrot.slane %v1038, 4
        %v1050 = vrot.slane %v1040, 4
        %v1051 = vrot.slane %v1042, 4
        %v1052 = vrot.slane %v1044, 4
        %v1053 = vsel %vm700, %v1045, %v1046
        %vm1054 = vcmask 15360
        %v1055 = vsel %vm1054, %v1030, %v1053
        %v1056 = vsel %vm700, %v1047, %v1048
        %v1057 = vsel %vm1054, %v1034, %v1056
        %v1058 = vsel %vm700, %v1049, %v1050
        %v1059 = vsel %vm1054, %v1038, %v1058
        %v1060 = vsel %vm700, %v1051, %v1052
        %v1061 = vsel %vm1054, %v1042, %v1060
        %1066 = vst [vmem:[#allocation3] sm:$0xff] %v1055
        %1067 = vst [vmem:[#allocation3 + $0x8] sm:$0xff] %v1057
        %1068 = vst [vmem:[#allocation3 + $0x10] sm:$0xff] %v1059
        %1069 = vst [vmem:[#allocation3 + $0x18] sm:$0xff] %v1061
        %v1070 = vld [vmem:[#allocation2 + $0x8] sm:$0xff]
        %v1071 = vld [vmem:[#allocation2 + $0x10] sm:$0xff]
        %v1072 = vld [vmem:[#allocation2 + $0x28] sm:$0xff]
        %v1073 = vld [vmem:[#allocation2 + $0x30] sm:$0xff]
        %v1074 = vld [vmem:[#allocation2 + $0x48] sm:$0xff]
        %v1075 = vld [vmem:[#allocation2 + $0x50] sm:$0xff]
        %v1076 = vld [vmem:[#allocation2 + $0x68] sm:$0xff]
        %v1077 = vld [vmem:[#allocation2 + $0x70] sm:$0xff]
        %v1078 = vpack.c.bf16 %v1071, %v1070
        %v1079 = vpack.c.bf16 %v1073, %v1072
        %v1080 = vpack.c.bf16 %v1075, %v1074
        %v1081 = vpack.c.bf16 %v1077, %v1076
        %1082 = vst [vmem:[#allocation3 + $0x20] sm:$0xff] %v1078
        %1083 = vst [vmem:[#allocation3 + $0x28] sm:$0xff] %v1079
        %1084 = vst [vmem:[#allocation3 + $0x30] sm:$0xff] %v1080
        %1085 = vst [vmem:[#allocation3 + $0x38] sm:$0xff] %v1081
        %v1086 = vld [vmem:[#allocation2 + $0x8] sm:$0xff]
        %v1087 = vld [vmem:[#allocation2 + $0x10] sm:$0xff]
        %v1088 = vld [vmem:[#allocation2 + $0x18] sm:$0xff]
        %v1089 = vld [vmem:[#allocation2 + $0x28] sm:$0xff]
        %v1090 = vld [vmem:[#allocation2 + $0x30] sm:$0xff]
        %v1091 = vld [vmem:[#allocation2 + $0x38] sm:$0xff]
        %v1092 = vld [vmem:[#allocation2 + $0x48] sm:$0xff]
        %v1093 = vld [vmem:[#allocation2 + $0x50] sm:$0xff]
        %v1094 = vld [vmem:[#allocation2 + $0x58] sm:$0xff]
        %v1095 = vld [vmem:[#allocation2 + $0x68] sm:$0xff]
        %v1096 = vld [vmem:[#allocation2 + $0x70] sm:$0xff]
        %v1097 = vld [vmem:[#allocation2 + $0x78] sm:$0xff]
        %v1098 = vpack.c.bf16 %v1087, %v1086
        %v1099 = vpack.c.bf16 %v1088, %v1088
        %v1100 = vpack.c.bf16 %v1090, %v1089
        %v1101 = vpack.c.bf16 %v1091, %v1091
        %v1102 = vpack.c.bf16 %v1093, %v1092
        %v1103 = vpack.c.bf16 %v1094, %v1094
        %v1104 = vpack.c.bf16 %v1096, %v1095
        %v1105 = vpack.c.bf16 %v1097, %v1097
        %1114 = vrot.lane.b32.xlu0 %v1098, 126
        %v1115 = vpop.permute.xlu0 %1114
        %1116 = vrot.lane.b32.xlu0 %v1099, 126
        %v1117 = vpop.permute.xlu0 %1116
        %1118 = vrot.lane.b32.xlu0 %v1100, 126
        %v1119 = vpop.permute.xlu0 %1118
        %1120 = vrot.lane.b32.xlu0 %v1101, 126
        %v1121 = vpop.permute.xlu0 %1120
        %1122 = vrot.lane.b32.xlu0 %v1102, 126
        %v1123 = vpop.permute.xlu0 %1122
        %1124 = vrot.lane.b32.xlu0 %v1103, 126
        %v1125 = vpop.permute.xlu0 %1124
        %1126 = vrot.lane.b32.xlu0 %v1104, 126
        %v1127 = vpop.permute.xlu0 %1126
        %1128 = vrot.lane.b32.xlu0 %v1105, 126
        %v1129 = vpop.permute.xlu0 %1128
        %v1130 = vrot.slane %v1115, 4
        %v1131 = vrot.slane %v1117, 4
        %v1132 = vrot.slane %v1119, 4
        %v1133 = vrot.slane %v1121, 4
        %v1134 = vrot.slane %v1123, 4
        %v1135 = vrot.slane %v1125, 4
        %v1136 = vrot.slane %v1127, 4
        %v1137 = vrot.slane %v1129, 4
        %v1138 = vsel %vm700, %v1130, %v1131
        %vm1139 = vcmask 1031168
        %v1140 = vsel %vm1139, %v1115, %v1138
        %v1141 = vsel %vm700, %v1132, %v1133
        %v1142 = vsel %vm1139, %v1119, %v1141
        %v1143 = vsel %vm700, %v1134, %v1135
        %v1144 = vsel %vm1139, %v1123, %v1143
        %v1145 = vsel %vm700, %v1136, %v1137
        %v1146 = vsel %vm1139, %v1127, %v1145
        %1151 = vst [vmem:[#allocation3 + $0x40] sm:$0xff] %v1140
        %1152 = vst [vmem:[#allocation3 + $0x48] sm:$0xff] %v1142
        %1153 = vst [vmem:[#allocation3 + $0x50] sm:$0xff] %v1144
        %1154 = vst [vmem:[#allocation3 + $0x58] sm:$0xff] %v1146
        %s1155 = scalar_lea.vmem %s1, 16
        %v1156 = vld [vmem:[%s1155] sm:$0xf]
        %v1157 = vld [vmem:[%s1155 + $0x4] sm:$0xf]
        %v1158 = vld [vmem:[%s1155 + $0x8] sm:$0xf]
        %v1159 = vld [vmem:[%s1155 + $0xc] sm:$0xf]
        %v1160 = vld [vmem:[#allocation3] sm:$0xff]
        %v1161 = vld [vmem:[#allocation3 + $0x8] sm:$0xff]
        %v1162 = vld [vmem:[#allocation3 + $0x10] sm:$0xff]
        %v1163 = vld [vmem:[#allocation3 + $0x18] sm:$0xff]
        %v1164 = vld [vmem:[#allocation3 + $0x20] sm:$0xff]
        %v1165 = vld [vmem:[#allocation3 + $0x28] sm:$0xff]
        %v1166 = vld [vmem:[#allocation3 + $0x30] sm:$0xff]
        %v1167 = vld [vmem:[#allocation3 + $0x38] sm:$0xff]
        %v1168 = vld [vmem:[#allocation3 + $0x40] sm:$0xff]
        %v1169 = vld [vmem:[#allocation3 + $0x48] sm:$0xff]
        %v1170 = vld [vmem:[#allocation3 + $0x50] sm:$0xff]
        %v1171 = vld [vmem:[#allocation3 + $0x58] sm:$0xff]
        %s1172 = scalar_lea.vmem %s2, 32
        %v1173 = vld [vmem:[%s1172] sm:$0xff]
        %v1174 = vld [vmem:[%s1172 + $0x8] sm:$0xff]
        %v1175 = vld [vmem:[%s1172 + $0x10] sm:$0xff]
        %v1176 = vld [vmem:[%s1172 + $0x18] sm:$0xff]
        %1178 = vset.pattern.permute.xlu0 0
        %1179 = vperm.xlu0 %1178, %v1173
        %v1180 = vpop.permute.xlu0 %1179
        %1183 = vset.pattern.permute.xlu0 0
        %1184 = vperm.xlu0 %1183, %v1174
        %v1185 = vpop.permute.xlu0 %1184
        %1188 = vset.pattern.permute.xlu0 0
        %1189 = vperm.xlu0 %1188, %v1175
        %v1190 = vpop.permute.xlu0 %1189
        %1193 = vset.pattern.permute.xlu0 0
        %1194 = vperm.xlu0 %1193, %v1176
        %v1195 = vpop.permute.xlu0 %1194
        %v1201 = vunpack.c.l.b16 %v1156
        %v1202 = vunpack.c.l.b16 %v1157
        %v1203 = vunpack.c.l.b16 %v1158
        %v1204 = vunpack.c.l.b16 %v1159
        %v1205 = vpack.c.b16 %v1202, %v1201
        %v1206 = vpack.c.b16 %v1204, %v1203
        %v1219 = vunpack.c.l.b16 %v1160
        %v1220 = vunpack.c.h.b16 %v1160
        %v1221 = vunpack.c.l.b16 %v1161
        %v1222 = vunpack.c.h.b16 %v1161
        %v1223 = vunpack.c.l.b16 %v1162
        %v1224 = vunpack.c.h.b16 %v1162
        %v1225 = vunpack.c.l.b16 %v1163
        %v1226 = vunpack.c.h.b16 %v1163
        %v1227 = vunpack.c.l.b16 %v1164
        %v1228 = vunpack.c.h.b16 %v1164
        %v1229 = vunpack.c.l.b16 %v1165
        %v1230 = vunpack.c.h.b16 %v1165
        %v1231 = vunpack.c.l.b16 %v1166
        %v1232 = vunpack.c.h.b16 %v1166
        %v1233 = vunpack.c.l.b16 %v1167
        %v1234 = vunpack.c.h.b16 %v1167
        %v1235 = vunpack.c.l.b16 %v1168
        %v1236 = vunpack.c.h.b16 %v1168
        %v1237 = vunpack.c.l.b16 %v1169
        %v1238 = vunpack.c.h.b16 %v1169
        %v1239 = vunpack.c.l.b16 %v1170
        %v1240 = vunpack.c.h.b16 %v1170
        %v1241 = vunpack.c.l.b16 %v1171
        %v1242 = vunpack.c.h.b16 %v1171
        %v1243 = vpack.c.b16 %v1221, %v1219
        %v1244 = vpack.c.b16 %v1222, %v1220
        %v1245 = vpack.c.b16 %v1225, %v1223
        %v1246 = vpack.c.b16 %v1226, %v1224
        %v1247 = vpack.c.b16 %v1229, %v1227
        %v1248 = vpack.c.b16 %v1230, %v1228
        %v1249 = vpack.c.b16 %v1233, %v1231
        %v1250 = vpack.c.b16 %v1234, %v1232
        %v1251 = vpack.c.b16 %v1237, %v1235
        %v1252 = vpack.c.b16 %v1238, %v1236
        %v1253 = vpack.c.b16 %v1241, %v1239
        %v1254 = vpack.c.b16 %v1242, %v1240
        %v1268 = vsel %vm913, %v1205, 0
        %v1271 = vsel %vm913, %v1206, 0
        %1273 = vmatpush.bf16.msra.mxu0 0
        %1274 = vmatpush.bf16.msra.mxu0 0
        %1275 = vmatpush.bf16.msra.mxu0 %v1253
        %1276 = vmatpush.bf16.msra.mxu0 %v1251
        %1277 = vmatpush.bf16.msra.mxu0 %v1249
        %1278 = vmatpush.bf16.msra.mxu0 %v1247
        %1279 = vmatpush.bf16.msra.mxu0 %v1245
        %1280 = vmatpush.bf16.msra.mxu0 %v1243
        %1281 = vmatmul.bf16.gmra.mxu0 %v1268
        %v1282 = vpop.f32.mrf.mxu0
        %v1283 = vadd.f32 %v1180, %v1282
        %v1284 = vpop.f32.mrf.mxu0
        %v1285 = vadd.f32 %v1185, %v1284
        %1286 = vmatmul.bf16.gmra.mxu0 %v1271
        %v1287 = vpop.f32.mrf.mxu0
        %v1288 = vadd.f32 %v1190, %v1287
        %v1289 = vpop.f32.mrf.mxu0
        %v1290 = vadd.f32 %v1195, %v1289
        %1291 = vdwg.mxu0
        %1292 = vmatpush.bf16.msra.mxu0 0
        %1293 = vmatpush.bf16.msra.mxu0 0
        %1294 = vmatpush.bf16.msra.mxu0 %v1254
        %1295 = vmatpush.bf16.msra.mxu0 %v1252
        %1296 = vmatpush.bf16.msra.mxu0 %v1250
        %1297 = vmatpush.bf16.msra.mxu0 %v1248
        %1298 = vmatpush.bf16.msra.mxu0 %v1246
        %1299 = vmatpush.bf16.msra.mxu0 %v1244
        %1300 = vmatmul.bf16.gmra.mxu0 %v1268
        %v1301 = vpop.f32.mrf.mxu0
        %v1302 = vadd.f32 %v1180, %v1301
        %v1303 = vpop.f32.mrf.mxu0
        %v1304 = vadd.f32 %v1185, %v1303
        %1305 = vmatmul.bf16.gmra.mxu0 %v1271
        %v1306 = vpop.f32.mrf.mxu0
        %v1307 = vadd.f32 %v1190, %v1306
        %v1308 = vpop.f32.mrf.mxu0
        %v1309 = vadd.f32 %v1195, %v1308
        %1310 = vdwg.mxu0
        %v1311 = vmax.f32 %v1283, 0.0
        %v1312 = vmax.f32 %v1302, 0.0
        %v1313 = vmax.f32 %v1285, 0.0
        %v1314 = vmax.f32 %v1304, 0.0
        %v1315 = vmax.f32 %v1288, 0.0
        %v1316 = vmax.f32 %v1307, 0.0
        %v1317 = vmax.f32 %v1290, 0.0
        %v1318 = vmax.f32 %v1309, 0.0
        %v1319 = vld [vmem:[#allocation2 + $0x8] sm:$0xff]
        %v1320 = vld [vmem:[#allocation2 + $0x10] sm:$0xff]
        %v1321 = vld [vmem:[#allocation2 + $0x28] sm:$0xff]
        %v1322 = vld [vmem:[#allocation2 + $0x30] sm:$0xff]
        %v1323 = vld [vmem:[#allocation2 + $0x48] sm:$0xff]
        %v1324 = vld [vmem:[#allocation2 + $0x50] sm:$0xff]
        %v1325 = vld [vmem:[#allocation2 + $0x68] sm:$0xff]
        %v1326 = vld [vmem:[#allocation2 + $0x70] sm:$0xff]
        %v1327 = vadd.f32 %v1311, %v1319
        %v1328 = vadd.f32 %v1312, %v1320
        %v1329 = vadd.f32 %v1313, %v1321
        %v1330 = vadd.f32 %v1314, %v1322
        %v1331 = vadd.f32 %v1315, %v1323
        %v1332 = vadd.f32 %v1316, %v1324
        %v1333 = vadd.f32 %v1317, %v1325
        %v1334 = vadd.f32 %v1318, %v1326
        %v1335 = vsel %vm984, %v1327, 0.0
        %v1336 = vsel %vm984, %v1328, 0.0
        %v1337 = vsel %vm984, %v1329, 0.0
        %v1338 = vsel %vm984, %v1330, 0.0
        %v1339 = vsel %vm984, %v1331, 0.0
        %v1340 = vsel %vm984, %v1332, 0.0
        %v1341 = vsel %vm984, %v1333, 0.0
        %v1342 = vsel %vm984, %v1334, 0.0
        %1343 = vst [vmem:[#allocation2 + $0x8] sm:$0xff] %v1335
        %1344 = vst [vmem:[#allocation2 + $0x10] sm:$0xff] %v1336
        %1345 = vst [vmem:[#allocation2 + $0x28] sm:$0xff] %v1337
        %1346 = vst [vmem:[#allocation2 + $0x30] sm:$0xff] %v1338
        %1347 = vst [vmem:[#allocation2 + $0x48] sm:$0xff] %v1339
        %1348 = vst [vmem:[#allocation2 + $0x50] sm:$0xff] %v1340
        %1349 = vst [vmem:[#allocation2 + $0x68] sm:$0xff] %v1341
        %1350 = vst [vmem:[#allocation2 + $0x70] sm:$0xff] %v1342
        %v1351 = vld [vmem:[#allocation2] sm:$0xff]
        %v1352 = vld [vmem:[#allocation2 + $0x8] sm:$0xff]
        %v1353 = vld [vmem:[#allocation2 + $0x10] sm:$0xff]
        %v1354 = vld [vmem:[#allocation2 + $0x20] sm:$0xff]
        %v1355 = vld [vmem:[#allocation2 + $0x28] sm:$0xff]
        %v1356 = vld [vmem:[#allocation2 + $0x30] sm:$0xff]
        %v1357 = vld [vmem:[#allocation2 + $0x40] sm:$0xff]
        %v1358 = vld [vmem:[#allocation2 + $0x48] sm:$0xff]
        %v1359 = vld [vmem:[#allocation2 + $0x50] sm:$0xff]
        %v1360 = vld [vmem:[#allocation2 + $0x60] sm:$0xff]
        %v1361 = vld [vmem:[#allocation2 + $0x68] sm:$0xff]
        %v1362 = vld [vmem:[#allocation2 + $0x70] sm:$0xff]
        %v1363 = vpack.c.bf16 %v1352, %v1351
        %v1364 = vpack.c.bf16 %v1353, %v1353
        %v1365 = vpack.c.bf16 %v1355, %v1354
        %v1366 = vpack.c.bf16 %v1356, %v1356
        %v1367 = vpack.c.bf16 %v1358, %v1357
        %v1368 = vpack.c.bf16 %v1359, %v1359
        %v1369 = vpack.c.bf16 %v1361, %v1360
        %v1370 = vpack.c.bf16 %v1362, %v1362
        %1379 = vrot.lane.b32.xlu0 %v1363, 4
        %v1380 = vpop.permute.xlu0 %1379
        %1381 = vrot.lane.b32.xlu0 %v1364, 4
        %v1382 = vpop.permute.xlu0 %1381
        %1383 = vrot.lane.b32.xlu0 %v1365, 4
        %v1384 = vpop.permute.xlu0 %1383
        %1385 = vrot.lane.b32.xlu0 %v1366, 4
        %v1386 = vpop.permute.xlu0 %1385
        %1387 = vrot.lane.b32.xlu0 %v1367, 4
        %v1388 = vpop.permute.xlu0 %1387
        %1389 = vrot.lane.b32.xlu0 %v1368, 4
        %v1390 = vpop.permute.xlu0 %1389
        %1391 = vrot.lane.b32.xlu0 %v1369, 4
        %v1392 = vpop.permute.xlu0 %1391
        %1393 = vrot.lane.b32.xlu0 %v1370, 4
        %v1394 = vpop.permute.xlu0 %1393
        %v1395 = vrot.slane %v1380, 4
        %v1396 = vrot.slane %v1382, 4
        %v1397 = vrot.slane %v1384, 4
        %v1398 = vrot.slane %v1386, 4
        %v1399 = vrot.slane %v1388, 4
        %v1400 = vrot.slane %v1390, 4
        %v1401 = vrot.slane %v1392, 4
        %v1402 = vrot.slane %v1394, 4
        %v1403 = vsel %vm700, %v1395, %v1396
        %vm1404 = vcmask 31744
        %v1405 = vsel %vm1404, %v1380, %v1403
        %v1406 = vsel %vm700, %v1397, %v1398
        %v1407 = vsel %vm1404, %v1384, %v1406
        %v1408 = vsel %vm700, %v1399, %v1400
        %v1409 = vsel %vm1404, %v1388, %v1408
        %v1410 = vsel %vm700, %v1401, %v1402
        %v1411 = vsel %vm1404, %v1392, %v1410
        %1416 = vst [vmem:[#allocation3] sm:$0xff] %v1405
        %1417 = vst [vmem:[#allocation3 + $0x8] sm:$0xff] %v1407
        %1418 = vst [vmem:[#allocation3 + $0x10] sm:$0xff] %v1409
        %1419 = vst [vmem:[#allocation3 + $0x18] sm:$0xff] %v1411
        %v1420 = vld [vmem:[#allocation2 + $0x8] sm:$0xff]
        %v1421 = vld [vmem:[#allocation2 + $0x10] sm:$0xff]
        %v1422 = vld [vmem:[#allocation2 + $0x28] sm:$0xff]
        %v1423 = vld [vmem:[#allocation2 + $0x30] sm:$0xff]
        %v1424 = vld [vmem:[#allocation2 + $0x48] sm:$0xff]
        %v1425 = vld [vmem:[#allocation2 + $0x50] sm:$0xff]
        %v1426 = vld [vmem:[#allocation2 + $0x68] sm:$0xff]
        %v1427 = vld [vmem:[#allocation2 + $0x70] sm:$0xff]
        %v1428 = vpack.c.bf16 %v1421, %v1420
        %v1429 = vpack.c.bf16 %v1423, %v1422
        %v1430 = vpack.c.bf16 %v1425, %v1424
        %v1431 = vpack.c.bf16 %v1427, %v1426
        %1432 = vst [vmem:[#allocation3 + $0x20] sm:$0xff] %v1428
        %1433 = vst [vmem:[#allocation3 + $0x28] sm:$0xff] %v1429
        %1434 = vst [vmem:[#allocation3 + $0x30] sm:$0xff] %v1430
        %1435 = vst [vmem:[#allocation3 + $0x38] sm:$0xff] %v1431
        %v1436 = vld [vmem:[#allocation2 + $0x8] sm:$0xff]
        %v1437 = vld [vmem:[#allocation2 + $0x10] sm:$0xff]
        %v1438 = vld [vmem:[#allocation2 + $0x18] sm:$0xff]
        %v1439 = vld [vmem:[#allocation2 + $0x28] sm:$0xff]
        %v1440 = vld [vmem:[#allocation2 + $0x30] sm:$0xff]
        %v1441 = vld [vmem:[#allocation2 + $0x38] sm:$0xff]
        %v1442 = vld [vmem:[#allocation2 + $0x48] sm:$0xff]
        %v1443 = vld [vmem:[#allocation2 + $0x50] sm:$0xff]
        %v1444 = vld [vmem:[#allocation2 + $0x58] sm:$0xff]
        %v1445 = vld [vmem:[#allocation2 + $0x68] sm:$0xff]
        %v1446 = vld [vmem:[#allocation2 + $0x70] sm:$0xff]
        %v1447 = vld [vmem:[#allocation2 + $0x78] sm:$0xff]
        %v1448 = vpack.c.bf16 %v1437, %v1436
        %v1449 = vpack.c.bf16 %v1438, %v1438
        %v1450 = vpack.c.bf16 %v1440, %v1439
        %v1451 = vpack.c.bf16 %v1441, %v1441
        %v1452 = vpack.c.bf16 %v1443, %v1442
        %v1453 = vpack.c.bf16 %v1444, %v1444
        %v1454 = vpack.c.bf16 %v1446, %v1445
        %v1455 = vpack.c.bf16 %v1447, %v1447
        %1464 = vrot.lane.b32.xlu0 %v1448, 124
        %v1465 = vpop.permute.xlu0 %1464
        %1466 = vrot.lane.b32.xlu0 %v1449, 124
        %v1467 = vpop.permute.xlu0 %1466
        %1468 = vrot.lane.b32.xlu0 %v1450, 124
        %v1469 = vpop.permute.xlu0 %1468
        %1470 = vrot.lane.b32.xlu0 %v1451, 124
        %v1471 = vpop.permute.xlu0 %1470
        %1472 = vrot.lane.b32.xlu0 %v1452, 124
        %v1473 = vpop.permute.xlu0 %1472
        %1474 = vrot.lane.b32.xlu0 %v1453, 124
        %v1475 = vpop.permute.xlu0 %1474
        %1476 = vrot.lane.b32.xlu0 %v1454, 124
        %v1477 = vpop.permute.xlu0 %1476
        %1478 = vrot.lane.b32.xlu0 %v1455, 124
        %v1479 = vpop.permute.xlu0 %1478
        %v1480 = vrot.slane %v1465, 4
        %v1481 = vrot.slane %v1467, 4
        %v1482 = vrot.slane %v1469, 4
        %v1483 = vrot.slane %v1471, 4
        %v1484 = vrot.slane %v1473, 4
        %v1485 = vrot.slane %v1475, 4
        %v1486 = vrot.slane %v1477, 4
        %v1487 = vrot.slane %v1479, 4
        %v1488 = vsel %vm700, %v1480, %v1481
        %vm1489 = vcmask 1014784
        %v1490 = vsel %vm1489, %v1465, %v1488
        %v1491 = vsel %vm700, %v1482, %v1483
        %v1492 = vsel %vm1489, %v1469, %v1491
        %v1493 = vsel %vm700, %v1484, %v1485
        %v1494 = vsel %vm1489, %v1473, %v1493
        %v1495 = vsel %vm700, %v1486, %v1487
        %v1496 = vsel %vm1489, %v1477, %v1495
        %1501 = vst [vmem:[#allocation3 + $0x40] sm:$0xff] %v1490
        %1502 = vst [vmem:[#allocation3 + $0x48] sm:$0xff] %v1492
        %1503 = vst [vmem:[#allocation3 + $0x50] sm:$0xff] %v1494
        %1504 = vst [vmem:[#allocation3 + $0x58] sm:$0xff] %v1496
        %s1505 = scalar_lea.vmem %s1, 32
        %v1506 = vld [vmem:[%s1505] sm:$0xf]
        %v1507 = vld [vmem:[%s1505 + $0x4] sm:$0xf]
        %v1508 = vld [vmem:[%s1505 + $0x8] sm:$0xf]
        %v1509 = vld [vmem:[%s1505 + $0xc] sm:$0xf]
        %v1510 = vld [vmem:[#allocation3] sm:$0xff]
        %v1511 = vld [vmem:[#allocation3 + $0x8] sm:$0xff]
        %v1512 = vld [vmem:[#allocation3 + $0x10] sm:$0xff]
        %v1513 = vld [vmem:[#allocation3 + $0x18] sm:$0xff]
        %v1514 = vld [vmem:[#allocation3 + $0x20] sm:$0xff]
        %v1515 = vld [vmem:[#allocation3 + $0x28] sm:$0xff]
        %v1516 = vld [vmem:[#allocation3 + $0x30] sm:$0xff]
        %v1517 = vld [vmem:[#allocation3 + $0x38] sm:$0xff]
        %v1518 = vld [vmem:[#allocation3 + $0x40] sm:$0xff]
        %v1519 = vld [vmem:[#allocation3 + $0x48] sm:$0xff]
        %v1520 = vld [vmem:[#allocation3 + $0x50] sm:$0xff]
        %v1521 = vld [vmem:[#allocation3 + $0x58] sm:$0xff]
        %s1522 = scalar_lea.vmem %s2, 64
        %v1523 = vld [vmem:[%s1522] sm:$0xff]
        %v1524 = vld [vmem:[%s1522 + $0x8] sm:$0xff]
        %v1525 = vld [vmem:[%s1522 + $0x10] sm:$0xff]
        %v1526 = vld [vmem:[%s1522 + $0x18] sm:$0xff]
        %1528 = vset.pattern.permute.xlu0 0
        %1529 = vperm.xlu0 %1528, %v1523
        %v1530 = vpop.permute.xlu0 %1529
        %1533 = vset.pattern.permute.xlu0 0
        %1534 = vperm.xlu0 %1533, %v1524
        %v1535 = vpop.permute.xlu0 %1534
        %1538 = vset.pattern.permute.xlu0 0
        %1539 = vperm.xlu0 %1538, %v1525
        %v1540 = vpop.permute.xlu0 %1539
        %1543 = vset.pattern.permute.xlu0 0
        %1544 = vperm.xlu0 %1543, %v1526
        %v1545 = vpop.permute.xlu0 %1544
        %v1551 = vunpack.c.l.b16 %v1506
        %v1552 = vunpack.c.l.b16 %v1507
        %v1553 = vunpack.c.l.b16 %v1508
        %v1554 = vunpack.c.l.b16 %v1509
        %v1555 = vpack.c.b16 %v1552, %v1551
        %v1556 = vpack.c.b16 %v1554, %v1553
        %v1569 = vunpack.c.l.b16 %v1510
        %v1570 = vunpack.c.h.b16 %v1510
        %v1571 = vunpack.c.l.b16 %v1511
        %v1572 = vunpack.c.h.b16 %v1511
        %v1573 = vunpack.c.l.b16 %v1512
        %v1574 = vunpack.c.h.b16 %v1512
        %v1575 = vunpack.c.l.b16 %v1513
        %v1576 = vunpack.c.h.b16 %v1513
        %v1577 = vunpack.c.l.b16 %v1514
        %v1578 = vunpack.c.h.b16 %v1514
        %v1579 = vunpack.c.l.b16 %v1515
        %v1580 = vunpack.c.h.b16 %v1515
        %v1581 = vunpack.c.l.b16 %v1516
        %v1582 = vunpack.c.h.b16 %v1516
        %v1583 = vunpack.c.l.b16 %v1517
        %v1584 = vunpack.c.h.b16 %v1517
        %v1585 = vunpack.c.l.b16 %v1518
        %v1586 = vunpack.c.h.b16 %v1518
        %v1587 = vunpack.c.l.b16 %v1519
        %v1588 = vunpack.c.h.b16 %v1519
        %v1589 = vunpack.c.l.b16 %v1520
        %v1590 = vunpack.c.h.b16 %v1520
        %v1591 = vunpack.c.l.b16 %v1521
        %v1592 = vunpack.c.h.b16 %v1521
        %v1593 = vpack.c.b16 %v1571, %v1569
        %v1594 = vpack.c.b16 %v1572, %v1570
        %v1595 = vpack.c.b16 %v1575, %v1573
        %v1596 = vpack.c.b16 %v1576, %v1574
        %v1597 = vpack.c.b16 %v1579, %v1577
        %v1598 = vpack.c.b16 %v1580, %v1578
        %v1599 = vpack.c.b16 %v1583, %v1581
        %v1600 = vpack.c.b16 %v1584, %v1582
        %v1601 = vpack.c.b16 %v1587, %v1585
        %v1602 = vpack.c.b16 %v1588, %v1586
        %v1603 = vpack.c.b16 %v1591, %v1589
        %v1604 = vpack.c.b16 %v1592, %v1590
        %v1618 = vsel %vm913, %v1555, 0
        %v1621 = vsel %vm913, %v1556, 0
        %1623 = vmatpush.bf16.msra.mxu0 0
        %1624 = vmatpush.bf16.msra.mxu0 0
        %1625 = vmatpush.bf16.msra.mxu0 %v1603
        %1626 = vmatpush.bf16.msra.mxu0 %v1601
        %1627 = vmatpush.bf16.msra.mxu0 %v1599
        %1628 = vmatpush.bf16.msra.mxu0 %v1597
        %1629 = vmatpush.bf16.msra.mxu0 %v1595
        %1630 = vmatpush.bf16.msra.mxu0 %v1593
        %1631 = vmatmul.bf16.gmra.mxu0 %v1618
        %v1632 = vpop.f32.mrf.mxu0
        %v1633 = vadd.f32 %v1530, %v1632
        %v1634 = vpop.f32.mrf.mxu0
        %v1635 = vadd.f32 %v1535, %v1634
        %1636 = vmatmul.bf16.gmra.mxu0 %v1621
        %v1637 = vpop.f32.mrf.mxu0
        %v1638 = vadd.f32 %v1540, %v1637
        %v1639 = vpop.f32.mrf.mxu0
        %v1640 = vadd.f32 %v1545, %v1639
        %1641 = vdwg.mxu0
        %1642 = vmatpush.bf16.msra.mxu0 0
        %1643 = vmatpush.bf16.msra.mxu0 0
        %1644 = vmatpush.bf16.msra.mxu0 %v1604
        %1645 = vmatpush.bf16.msra.mxu0 %v1602
        %1646 = vmatpush.bf16.msra.mxu0 %v1600
        %1647 = vmatpush.bf16.msra.mxu0 %v1598
        %1648 = vmatpush.bf16.msra.mxu0 %v1596
        %1649 = vmatpush.bf16.msra.mxu0 %v1594
        %1650 = vmatmul.bf16.gmra.mxu0 %v1618
        %v1651 = vpop.f32.mrf.mxu0
        %v1652 = vadd.f32 %v1530, %v1651
        %v1653 = vpop.f32.mrf.mxu0
        %v1654 = vadd.f32 %v1535, %v1653
        %1655 = vmatmul.bf16.gmra.mxu0 %v1621
        %v1656 = vpop.f32.mrf.mxu0
        %v1657 = vadd.f32 %v1540, %v1656
        %v1658 = vpop.f32.mrf.mxu0
        %v1659 = vadd.f32 %v1545, %v1658
        %1660 = vdwg.mxu0
        %v1661 = vmax.f32 %v1633, 0.0
        %v1662 = vmax.f32 %v1652, 0.0
        %v1663 = vmax.f32 %v1635, 0.0
        %v1664 = vmax.f32 %v1654, 0.0
        %v1665 = vmax.f32 %v1638, 0.0
        %v1666 = vmax.f32 %v1657, 0.0
        %v1667 = vmax.f32 %v1640, 0.0
        %v1668 = vmax.f32 %v1659, 0.0
        %v1669 = vld [vmem:[#allocation2 + $0x8] sm:$0xff]
        %v1670 = vld [vmem:[#allocation2 + $0x10] sm:$0xff]
        %v1671 = vld [vmem:[#allocation2 + $0x28] sm:$0xff]
        %v1672 = vld [vmem:[#allocation2 + $0x30] sm:$0xff]
        %v1673 = vld [vmem:[#allocation2 + $0x48] sm:$0xff]
        %v1674 = vld [vmem:[#allocation2 + $0x50] sm:$0xff]
        %v1675 = vld [vmem:[#allocation2 + $0x68] sm:$0xff]
        %v1676 = vld [vmem:[#allocation2 + $0x70] sm:$0xff]
        %v1677 = vadd.f32 %v1661, %v1669
        %v1678 = vadd.f32 %v1662, %v1670
        %v1679 = vadd.f32 %v1663, %v1671
        %v1680 = vadd.f32 %v1664, %v1672
        %v1681 = vadd.f32 %v1665, %v1673
        %v1682 = vadd.f32 %v1666, %v1674
        %v1683 = vadd.f32 %v1667, %v1675
        %v1684 = vadd.f32 %v1668, %v1676
        %v1685 = vsel %vm984, %v1677, 0.0
        %v1686 = vsel %vm984, %v1678, 0.0
        %v1687 = vsel %vm984, %v1679, 0.0
        %v1688 = vsel %vm984, %v1680, 0.0
        %v1689 = vsel %vm984, %v1681, 0.0
        %v1690 = vsel %vm984, %v1682, 0.0
        %v1691 = vsel %vm984, %v1683, 0.0
        %v1692 = vsel %vm984, %v1684, 0.0
        %1693 = vst [vmem:[#allocation2 + $0x8] sm:$0xff] %v1685
        %1694 = vst [vmem:[#allocation2 + $0x10] sm:$0xff] %v1686
        %1695 = vst [vmem:[#allocation2 + $0x28] sm:$0xff] %v1687
        %1696 = vst [vmem:[#allocation2 + $0x30] sm:$0xff] %v1688
        %1697 = vst [vmem:[#allocation2 + $0x48] sm:$0xff] %v1689
        %1698 = vst [vmem:[#allocation2 + $0x50] sm:$0xff] %v1690
        %1699 = vst [vmem:[#allocation2 + $0x68] sm:$0xff] %v1691
        %1700 = vst [vmem:[#allocation2 + $0x70] sm:$0xff] %v1692
        %v1701 = vld [vmem:[#allocation2] sm:$0xff]
        %v1702 = vld [vmem:[#allocation2 + $0x8] sm:$0xff]
        %v1703 = vld [vmem:[#allocation2 + $0x10] sm:$0xff]
        %v1704 = vld [vmem:[#allocation2 + $0x20] sm:$0xff]
        %v1705 = vld [vmem:[#allocation2 + $0x28] sm:$0xff]
        %v1706 = vld [vmem:[#allocation2 + $0x30] sm:$0xff]
        %v1707 = vld [vmem:[#allocation2 + $0x40] sm:$0xff]
        %v1708 = vld [vmem:[#allocation2 + $0x48] sm:$0xff]
        %v1709 = vld [vmem:[#allocation2 + $0x50] sm:$0xff]
        %v1710 = vld [vmem:[#allocation2 + $0x60] sm:$0xff]
        %v1711 = vld [vmem:[#allocation2 + $0x68] sm:$0xff]
        %v1712 = vld [vmem:[#allocation2 + $0x70] sm:$0xff]
        %v1713 = vpack.c.bf16 %v1702, %v1701
        %v1714 = vpack.c.bf16 %v1703, %v1703
        %v1715 = vpack.c.bf16 %v1705, %v1704
        %v1716 = vpack.c.bf16 %v1706, %v1706
        %v1717 = vpack.c.bf16 %v1708, %v1707
        %v1718 = vpack.c.bf16 %v1709, %v1709
        %v1719 = vpack.c.bf16 %v1711, %v1710
        %v1720 = vpack.c.bf16 %v1712, %v1712
        %1729 = vrot.lane.b32.xlu0 %v1713, 8
        %v1730 = vpop.permute.xlu0 %1729
        %1731 = vrot.lane.b32.xlu0 %v1714, 8
        %v1732 = vpop.permute.xlu0 %1731
        %1733 = vrot.lane.b32.xlu0 %v1715, 8
        %v1734 = vpop.permute.xlu0 %1733
        %1735 = vrot.lane.b32.xlu0 %v1716, 8
        %v1736 = vpop.permute.xlu0 %1735
        %1737 = vrot.lane.b32.xlu0 %v1717, 8
        %v1738 = vpop.permute.xlu0 %1737
        %1739 = vrot.lane.b32.xlu0 %v1718, 8
        %v1740 = vpop.permute.xlu0 %1739
        %1741 = vrot.lane.b32.xlu0 %v1719, 8
        %v1742 = vpop.permute.xlu0 %1741
        %1743 = vrot.lane.b32.xlu0 %v1720, 8
        %v1744 = vpop.permute.xlu0 %1743
        %v1745 = vrot.slane %v1730, 4
        %v1746 = vrot.slane %v1732, 4
        %v1747 = vrot.slane %v1734, 4
        %v1748 = vrot.slane %v1736, 4
        %v1749 = vrot.slane %v1738, 4
        %v1750 = vrot.slane %v1740, 4
        %v1751 = vrot.slane %v1742, 4
        %v1752 = vrot.slane %v1744, 4
        %v1753 = vsel %vm700, %v1745, %v1746
        %vm1754 = vcmask 64512
        %v1755 = vsel %vm1754, %v1730, %v1753
        %v1756 = vsel %vm700, %v1747, %v1748
        %v1757 = vsel %vm1754, %v1734, %v1756
        %v1758 = vsel %vm700, %v1749, %v1750
        %v1759 = vsel %vm1754, %v1738, %v1758
        %v1760 = vsel %vm700, %v1751, %v1752
        %v1761 = vsel %vm1754, %v1742, %v1760
        %1766 = vst [vmem:[#allocation3] sm:$0xff] %v1755
        %1767 = vst [vmem:[#allocation3 + $0x8] sm:$0xff] %v1757
        %1768 = vst [vmem:[#allocation3 + $0x10] sm:$0xff] %v1759
        %1769 = vst [vmem:[#allocation3 + $0x18] sm:$0xff] %v1761
        %v1770 = vld [vmem:[#allocation2 + $0x8] sm:$0xff]
        %v1771 = vld [vmem:[#allocation2 + $0x10] sm:$0xff]
        %v1772 = vld [vmem:[#allocation2 + $0x28] sm:$0xff]
        %v1773 = vld [vmem:[#allocation2 + $0x30] sm:$0xff]
        %v1774 = vld [vmem:[#allocation2 + $0x48] sm:$0xff]
        %v1775 = vld [vmem:[#allocation2 + $0x50] sm:$0xff]
        %v1776 = vld [vmem:[#allocation2 + $0x68] sm:$0xff]
        %v1777 = vld [vmem:[#allocation2 + $0x70] sm:$0xff]
        %v1778 = vpack.c.bf16 %v1771, %v1770
        %v1779 = vpack.c.bf16 %v1773, %v1772
        %v1780 = vpack.c.bf16 %v1775, %v1774
        %v1781 = vpack.c.bf16 %v1777, %v1776
        %1782 = vst [vmem:[#allocation3 + $0x20] sm:$0xff] %v1778
        %1783 = vst [vmem:[#allocation3 + $0x28] sm:$0xff] %v1779
        %1784 = vst [vmem:[#allocation3 + $0x30] sm:$0xff] %v1780
        %1785 = vst [vmem:[#allocation3 + $0x38] sm:$0xff] %v1781
        %v1786 = vld [vmem:[#allocation2 + $0x8] sm:$0xff]
        %v1787 = vld [vmem:[#allocation2 + $0x10] sm:$0xff]
        %v1788 = vld [vmem:[#allocation2 + $0x18] sm:$0xff]
        %v1789 = vld [vmem:[#allocation2 + $0x28] sm:$0xff]
        %v1790 = vld [vmem:[#allocation2 + $0x30] sm:$0xff]
        %v1791 = vld [vmem:[#allocation2 + $0x38] sm:$0xff]
        %v1792 = vld [vmem:[#allocation2 + $0x48] sm:$0xff]
        %v1793 = vld [vmem:[#allocation2 + $0x50] sm:$0xff]
        %v1794 = vld [vmem:[#allocation2 + $0x58] sm:$0xff]
        %v1795 = vld [vmem:[#allocation2 + $0x68] sm:$0xff]
        %v1796 = vld [vmem:[#allocation2 + $0x70] sm:$0xff]
        %v1797 = vld [vmem:[#allocation2 + $0x78] sm:$0xff]
        %v1798 = vpack.c.bf16 %v1787, %v1786
        %v1799 = vpack.c.bf16 %v1788, %v1788
        %v1800 = vpack.c.bf16 %v1790, %v1789
        %v1801 = vpack.c.bf16 %v1791, %v1791
        %v1802 = vpack.c.bf16 %v1793, %v1792
        %v1803 = vpack.c.bf16 %v1794, %v1794
        %v1804 = vpack.c.bf16 %v1796, %v1795
        %v1805 = vpack.c.bf16 %v1797, %v1797
        %1814 = vrot.lane.b32.xlu0 %v1798, 120
        %v1815 = vpop.permute.xlu0 %1814
        %1816 = vrot.lane.b32.xlu0 %v1799, 120
        %v1817 = vpop.permute.xlu0 %1816
        %1818 = vrot.lane.b32.xlu0 %v1800, 120
        %v1819 = vpop.permute.xlu0 %1818
        %1820 = vrot.lane.b32.xlu0 %v1801, 120
        %v1821 = vpop.permute.xlu0 %1820
        %1822 = vrot.lane.b32.xlu0 %v1802, 120
        %v1823 = vpop.permute.xlu0 %1822
        %1824 = vrot.lane.b32.xlu0 %v1803, 120
        %v1825 = vpop.permute.xlu0 %1824
        %1826 = vrot.lane.b32.xlu0 %v1804, 120
        %v1827 = vpop.permute.xlu0 %1826
        %1828 = vrot.lane.b32.xlu0 %v1805, 120
        %v1829 = vpop.permute.xlu0 %1828
        %v1830 = vrot.slane %v1815, 4
        %v1831 = vrot.slane %v1817, 4
        %v1832 = vrot.slane %v1819, 4
        %v1833 = vrot.slane %v1821, 4
        %v1834 = vrot.slane %v1823, 4
        %v1835 = vrot.slane %v1825, 4
        %v1836 = vrot.slane %v1827, 4
        %v1837 = vrot.slane %v1829, 4
        %v1838 = vsel %vm700, %v1830, %v1831
        %vm1839 = vcmask 982016
        %v1840 = vsel %vm1839, %v1815, %v1838
        %v1841 = vsel %vm700, %v1832, %v1833
        %v1842 = vsel %vm1839, %v1819, %v1841
        %v1843 = vsel %vm700, %v1834, %v1835
        %v1844 = vsel %vm1839, %v1823, %v1843
        %v1845 = vsel %vm700, %v1836, %v1837
        %v1846 = vsel %vm1839, %v1827, %v1845
        %1851 = vst [vmem:[#allocation3 + $0x40] sm:$0xff] %v1840
        %1852 = vst [vmem:[#allocation3 + $0x48] sm:$0xff] %v1842
        %1853 = vst [vmem:[#allocation3 + $0x50] sm:$0xff] %v1844
        %1854 = vst [vmem:[#allocation3 + $0x58] sm:$0xff] %v1846
        %s1855 = scalar_lea.vmem %s1, 48
        %v1856 = vld [vmem:[%s1855] sm:$0xf]
        %v1857 = vld [vmem:[%s1855 + $0x4] sm:$0xf]
        %v1858 = vld [vmem:[%s1855 + $0x8] sm:$0xf]
        %v1859 = vld [vmem:[%s1855 + $0xc] sm:$0xf]
        %v1860 = vld [vmem:[#allocation3] sm:$0xff]
        %v1861 = vld [vmem:[#allocation3 + $0x8] sm:$0xff]
        %v1862 = vld [vmem:[#allocation3 + $0x10] sm:$0xff]
        %v1863 = vld [vmem:[#allocation3 + $0x18] sm:$0xff]
        %v1864 = vld [vmem:[#allocation3 + $0x20] sm:$0xff]
        %v1865 = vld [vmem:[#allocation3 + $0x28] sm:$0xff]
        %v1866 = vld [vmem:[#allocation3 + $0x30] sm:$0xff]
        %v1867 = vld [vmem:[#allocation3 + $0x38] sm:$0xff]
        %v1868 = vld [vmem:[#allocation3 + $0x40] sm:$0xff]
        %v1869 = vld [vmem:[#allocation3 + $0x48] sm:$0xff]
        %v1870 = vld [vmem:[#allocation3 + $0x50] sm:$0xff]
        %v1871 = vld [vmem:[#allocation3 + $0x58] sm:$0xff]
        %s1872 = scalar_lea.vmem %s2, 96
        %v1873 = vld [vmem:[%s1872] sm:$0xff]
        %v1874 = vld [vmem:[%s1872 + $0x8] sm:$0xff]
        %v1875 = vld [vmem:[%s1872 + $0x10] sm:$0xff]
        %v1876 = vld [vmem:[%s1872 + $0x18] sm:$0xff]
        %1878 = vset.pattern.permute.xlu0 0
        %1879 = vperm.xlu0 %1878, %v1873
        %v1880 = vpop.permute.xlu0 %1879
        %1883 = vset.pattern.permute.xlu0 0
        %1884 = vperm.xlu0 %1883, %v1874
        %v1885 = vpop.permute.xlu0 %1884
        %1888 = vset.pattern.permute.xlu0 0
        %1889 = vperm.xlu0 %1888, %v1875
        %v1890 = vpop.permute.xlu0 %1889
        %1893 = vset.pattern.permute.xlu0 0
        %1894 = vperm.xlu0 %1893, %v1876
        %v1895 = vpop.permute.xlu0 %1894
        %v1901 = vunpack.c.l.b16 %v1856
        %v1902 = vunpack.c.l.b16 %v1857
        %v1903 = vunpack.c.l.b16 %v1858
        %v1904 = vunpack.c.l.b16 %v1859
        %v1905 = vpack.c.b16 %v1902, %v1901
        %v1906 = vpack.c.b16 %v1904, %v1903
        %v1919 = vunpack.c.l.b16 %v1860
        %v1920 = vunpack.c.h.b16 %v1860
        %v1921 = vunpack.c.l.b16 %v1861
        %v1922 = vunpack.c.h.b16 %v1861
        %v1923 = vunpack.c.l.b16 %v1862
        %v1924 = vunpack.c.h.b16 %v1862
        %v1925 = vunpack.c.l.b16 %v1863
        %v1926 = vunpack.c.h.b16 %v1863
        %v1927 = vunpack.c.l.b16 %v1864
        %v1928 = vunpack.c.h.b16 %v1864
        %v1929 = vunpack.c.l.b16 %v1865
        %v1930 = vunpack.c.h.b16 %v1865
        %v1931 = vunpack.c.l.b16 %v1866
        %v1932 = vunpack.c.h.b16 %v1866
        %v1933 = vunpack.c.l.b16 %v1867
        %v1934 = vunpack.c.h.b16 %v1867
        %v1935 = vunpack.c.l.b16 %v1868
        %v1936 = vunpack.c.h.b16 %v1868
        %v1937 = vunpack.c.l.b16 %v1869
        %v1938 = vunpack.c.h.b16 %v1869
        %v1939 = vunpack.c.l.b16 %v1870
        %v1940 = vunpack.c.h.b16 %v1870
        %v1941 = vunpack.c.l.b16 %v1871
        %v1942 = vunpack.c.h.b16 %v1871
        %v1943 = vpack.c.b16 %v1921, %v1919
        %v1944 = vpack.c.b16 %v1922, %v1920
        %v1945 = vpack.c.b16 %v1925, %v1923
        %v1946 = vpack.c.b16 %v1926, %v1924
        %v1947 = vpack.c.b16 %v1929, %v1927
        %v1948 = vpack.c.b16 %v1930, %v1928
        %v1949 = vpack.c.b16 %v1933, %v1931
        %v1950 = vpack.c.b16 %v1934, %v1932
        %v1951 = vpack.c.b16 %v1937, %v1935
        %v1952 = vpack.c.b16 %v1938, %v1936
        %v1953 = vpack.c.b16 %v1941, %v1939
        %v1954 = vpack.c.b16 %v1942, %v1940
        %v1968 = vsel %vm913, %v1905, 0
        %v1971 = vsel %vm913, %v1906, 0
        %1973 = vmatpush.bf16.msra.mxu0 0
        %1974 = vmatpush.bf16.msra.mxu0 0
        %1975 = vmatpush.bf16.msra.mxu0 %v1953
        %1976 = vmatpush.bf16.msra.mxu0 %v1951
        %1977 = vmatpush.bf16.msra.mxu0 %v1949
        %1978 = vmatpush.bf16.msra.mxu0 %v1947
        %1979 = vmatpush.bf16.msra.mxu0 %v1945
        %1980 = vmatpush.bf16.msra.mxu0 %v1943
        %1981 = vmatmul.bf16.gmra.mxu0 %v1968
        %v1982 = vpop.f32.mrf.mxu0
        %v1983 = vadd.f32 %v1880, %v1982
        %v1984 = vpop.f32.mrf.mxu0
        %v1985 = vadd.f32 %v1885, %v1984
        %1986 = vmatmul.bf16.gmra.mxu0 %v1971
        %v1987 = vpop.f32.mrf.mxu0
        %v1988 = vadd.f32 %v1890, %v1987
        %v1989 = vpop.f32.mrf.mxu0
        %v1990 = vadd.f32 %v1895, %v1989
        %1991 = vdwg.mxu0
        %1992 = vmatpush.bf16.msra.mxu0 0
        %1993 = vmatpush.bf16.msra.mxu0 0
        %1994 = vmatpush.bf16.msra.mxu0 %v1954
        %1995 = vmatpush.bf16.msra.mxu0 %v1952
        %1996 = vmatpush.bf16.msra.mxu0 %v1950
        %1997 = vmatpush.bf16.msra.mxu0 %v1948
        %1998 = vmatpush.bf16.msra.mxu0 %v1946
        %1999 = vmatpush.bf16.msra.mxu0 %v1944
        %2000 = vmatmul.bf16.gmra.mxu0 %v1968
        %v2001 = vpop.f32.mrf.mxu0
        %v2002 = vadd.f32 %v1880, %v2001
        %v2003 = vpop.f32.mrf.mxu0
        %v2004 = vadd.f32 %v1885, %v2003
        %2005 = vmatmul.bf16.gmra.mxu0 %v1971
        %v2006 = vpop.f32.mrf.mxu0
        %v2007 = vadd.f32 %v1890, %v2006
        %v2008 = vpop.f32.mrf.mxu0
        %v2009 = vadd.f32 %v1895, %v2008
        %2010 = vdwg.mxu0
        %v2011 = vmax.f32 %v1983, 0.0
        %v2012 = vmax.f32 %v2002, 0.0
        %v2013 = vmax.f32 %v1985, 0.0
        %v2014 = vmax.f32 %v2004, 0.0
        %v2015 = vmax.f32 %v1988, 0.0
        %v2016 = vmax.f32 %v2007, 0.0
        %v2017 = vmax.f32 %v1990, 0.0
        %v2018 = vmax.f32 %v2009, 0.0
        %v2019 = vld [vmem:[#allocation2 + $0x8] sm:$0xff]
        %v2020 = vld [vmem:[#allocation2 + $0x10] sm:$0xff]
        %v2021 = vld [vmem:[#allocation2 + $0x28] sm:$0xff]
        %v2022 = vld [vmem:[#allocation2 + $0x30] sm:$0xff]
        %v2023 = vld [vmem:[#allocation2 + $0x48] sm:$0xff]
        %v2024 = vld [vmem:[#allocation2 + $0x50] sm:$0xff]
        %v2025 = vld [vmem:[#allocation2 + $0x68] sm:$0xff]
        %v2026 = vld [vmem:[#allocation2 + $0x70] sm:$0xff]
        %v2027 = vadd.f32 %v2011, %v2019
        %v2028 = vadd.f32 %v2012, %v2020
        %v2029 = vadd.f32 %v2013, %v2021
        %v2030 = vadd.f32 %v2014, %v2022
        %v2031 = vadd.f32 %v2015, %v2023
        %v2032 = vadd.f32 %v2016, %v2024
        %v2033 = vadd.f32 %v2017, %v2025
        %v2034 = vadd.f32 %v2018, %v2026
        %v2035 = vsel %vm984, %v2027, 0.0
        %v2036 = vsel %vm984, %v2028, 0.0
        %v2037 = vsel %vm984, %v2029, 0.0
        %v2038 = vsel %vm984, %v2030, 0.0
        %v2039 = vsel %vm984, %v2031, 0.0
        %v2040 = vsel %vm984, %v2032, 0.0
        %v2041 = vsel %vm984, %v2033, 0.0
        %v2042 = vsel %vm984, %v2034, 0.0
        %2043 = vst [vmem:[#allocation2 + $0x8] sm:$0xff] %v2035
        %2044 = vst [vmem:[#allocation2 + $0x10] sm:$0xff] %v2036
        %2045 = vst [vmem:[#allocation2 + $0x28] sm:$0xff] %v2037
        %2046 = vst [vmem:[#allocation2 + $0x30] sm:$0xff] %v2038
        %2047 = vst [vmem:[#allocation2 + $0x48] sm:$0xff] %v2039
        %2048 = vst [vmem:[#allocation2 + $0x50] sm:$0xff] %v2040
        %2049 = vst [vmem:[#allocation2 + $0x68] sm:$0xff] %v2041
        %2050 = vst [vmem:[#allocation2 + $0x70] sm:$0xff] %v2042
        %v2051 = vld [vmem:[#allocation2 + $0x8] sm:$0xff]
        %v2052 = vld [vmem:[#allocation2 + $0x10] sm:$0xff]
        %v2053 = vld [vmem:[#allocation2 + $0x28] sm:$0xff]
        %v2054 = vld [vmem:[#allocation2 + $0x30] sm:$0xff]
        %v2055 = vld [vmem:[#allocation2 + $0x48] sm:$0xff]
        %v2056 = vld [vmem:[#allocation2 + $0x50] sm:$0xff]
        %v2057 = vld [vmem:[#allocation2 + $0x68] sm:$0xff]
        %v2058 = vld [vmem:[#allocation2 + $0x70] sm:$0xff]
        %v2059 = vpack.c.bf16 %v2053, %v2051
        %v2060 = vpack.c.bf16 %v2054, %v2052
        %v2061 = vpack.c.bf16 %v2057, %v2055
        %v2062 = vpack.c.bf16 %v2058, %v2056
        %v2063 = vld [vmem:[#allocation6] sm:$0x1]
        %v2064 = vld [vmem:[#allocation2 + $0x8] sm:$0xff]
        %v2065 = vld [vmem:[#allocation2 + $0x10] sm:$0xff]
        %v2066 = vld [vmem:[#allocation2 + $0x18] sm:$0xff]
        %v2067 = vld [vmem:[#allocation2 + $0x28] sm:$0xff]
        %v2068 = vld [vmem:[#allocation2 + $0x30] sm:$0xff]
        %v2069 = vld [vmem:[#allocation2 + $0x38] sm:$0xff]
        %v2070 = vld [vmem:[#allocation2 + $0x48] sm:$0xff]
        %v2071 = vld [vmem:[#allocation2 + $0x50] sm:$0xff]
        %v2072 = vld [vmem:[#allocation2 + $0x58] sm:$0xff]
        %v2073 = vld [vmem:[#allocation2 + $0x68] sm:$0xff]
        %v2074 = vld [vmem:[#allocation2 + $0x70] sm:$0xff]
        %v2075 = vld [vmem:[#allocation2 + $0x78] sm:$0xff]
        %v2076 = vpack.c.bf16 %v2067, %v2064
        %v2077 = vpack.c.bf16 %v2068, %v2065
        %v2078 = vpack.c.bf16 %v2069, %v2066
        %v2079 = vpack.c.bf16 %v2073, %v2070
        %v2080 = vpack.c.bf16 %v2074, %v2071
        %v2081 = vpack.c.bf16 %v2075, %v2072
        %s2082 = scalar_lea.vmem [#allocation6], 1
        %v2083 = vld [vmem:[%s2082] sm:$0x1]
        %2090 = vrot.lane.b32.xlu0 %v2076, 127
        %v2091 = vpop.permute.xlu0 %2090
        %2092 = vrot.lane.b32.xlu0 %v2077, 127
        %v2093 = vpop.permute.xlu0 %2092
        %2094 = vrot.lane.b32.xlu0 %v2078, 127
        %v2095 = vpop.permute.xlu0 %2094
        %2096 = vrot.lane.b32.xlu0 %v2079, 127
        %v2097 = vpop.permute.xlu0 %2096
        %2098 = vrot.lane.b32.xlu0 %v2080, 127
        %v2099 = vpop.permute.xlu0 %2098
        %2100 = vrot.lane.b32.xlu0 %v2081, 127
        %v2101 = vpop.permute.xlu0 %2100
        %v2102 = vsel %vm787, %v2091, %v2093
        %v2103 = vsel %vm787, %v2093, %v2095
        %v2104 = vsel %vm787, %v2097, %v2099
        %v2105 = vsel %vm787, %v2099, %v2101
        %vm2110 = vcmask 261120
        %v2112 = vsel %vm2110, %v2083, 0
        %2114 = vmatpush.bf16.msra.mxu0 0
        %2115 = vmatpush.bf16.msra.mxu0 0
        %2116 = vmatpush.bf16.msra.mxu0 0
        %2117 = vmatpush.bf16.msra.mxu0 0
        %2118 = vmatpush.bf16.msra.mxu0 0
        %2119 = vmatpush.bf16.msra.mxu0 0
        %2120 = vmatpush.bf16.msra.mxu0 %v2104
        %2121 = vmatpush.bf16.msra.mxu0 %v2102
        %2122 = vmatmul.bf16.gmra.mxu0 %v2112
        %v2123 = vpop.f32.mrf.mxu0
        %v2124 = vadd.f32 0.0, %v2123
        %v2125 = vpop.f32.mrf.mxu0
        %2126 = vdwg.mxu0
        %2127 = vmatpush.bf16.msra.mxu0 0
        %2128 = vmatpush.bf16.msra.mxu0 0
        %2129 = vmatpush.bf16.msra.mxu0 0
        %2130 = vmatpush.bf16.msra.mxu0 0
        %2131 = vmatpush.bf16.msra.mxu0 0
        %2132 = vmatpush.bf16.msra.mxu0 0
        %2133 = vmatpush.bf16.msra.mxu0 %v2105
        %2134 = vmatpush.bf16.msra.mxu0 %v2103
        %2135 = vmatmul.bf16.gmra.mxu0 %v2112
        %v2136 = vpop.f32.mrf.mxu0
        %v2137 = vadd.f32 0.0, %v2136
        %v2138 = vpop.f32.mrf.mxu0
        %2139 = vdwg.mxu0
        %v2141 = vsel %vm2110, %v2063, 0
        %2143 = vmatpush.bf16.msra.mxu0 0
        %2144 = vmatpush.bf16.msra.mxu0 0
        %2145 = vmatpush.bf16.msra.mxu0 0
        %2146 = vmatpush.bf16.msra.mxu0 0
        %2147 = vmatpush.bf16.msra.mxu0 0
        %2148 = vmatpush.bf16.msra.mxu0 0
        %2149 = vmatpush.bf16.msra.mxu0 %v2061
        %2150 = vmatpush.bf16.msra.mxu0 %v2059
        %2151 = vmatmul.bf16.gmra.mxu0 %v2141
        %v2152 = vpop.f32.mrf.mxu0
        %v2153 = vadd.f32 %v2124, %v2152
        %v2154 = vpop.f32.mrf.mxu0
        %2155 = vdwg.mxu0
        %2156 = vmatpush.bf16.msra.mxu0 0
        %2157 = vmatpush.bf16.msra.mxu0 0
        %2158 = vmatpush.bf16.msra.mxu0 0
        %2159 = vmatpush.bf16.msra.mxu0 0
        %2160 = vmatpush.bf16.msra.mxu0 0
        %2161 = vmatpush.bf16.msra.mxu0 0
        %2162 = vmatpush.bf16.msra.mxu0 %v2062
        %2163 = vmatpush.bf16.msra.mxu0 %v2060
        %2164 = vmatmul.bf16.gmra.mxu0 %v2141
        %v2165 = vpop.f32.mrf.mxu0
        %v2166 = vadd.f32 %v2137, %v2165
        %v2167 = vpop.f32.mrf.mxu0
        %2168 = vdwg.mxu0
        %s2169 = scalar_lea.vmem [#allocation6], 2
        %v2170 = vld [vmem:[%s2169] sm:$0x1]
        %2171 = vrot.lane.b32.xlu0 %v2076, 126
        %v2172 = vpop.permute.xlu0 %2171
        %2173 = vrot.lane.b32.xlu0 %v2077, 126
        %v2174 = vpop.permute.xlu0 %2173
        %2175 = vrot.lane.b32.xlu0 %v2078, 126
        %v2176 = vpop.permute.xlu0 %2175
        %2177 = vrot.lane.b32.xlu0 %v2079, 126
        %v2178 = vpop.permute.xlu0 %2177
        %2179 = vrot.lane.b32.xlu0 %v2080, 126
        %v2180 = vpop.permute.xlu0 %2179
        %2181 = vrot.lane.b32.xlu0 %v2081, 126
        %v2182 = vpop.permute.xlu0 %2181
        %v2183 = vsel %vm1139, %v2172, %v2174
        %v2184 = vsel %vm1139, %v2174, %v2176
        %v2185 = vsel %vm1139, %v2178, %v2180
        %v2186 = vsel %vm1139, %v2180, %v2182
        %v2192 = vsel %vm2110, %v2170, 0
        %2194 = vmatpush.bf16.msra.mxu0 0
        %2195 = vmatpush.bf16.msra.mxu0 0
        %2196 = vmatpush.bf16.msra.mxu0 0
        %2197 = vmatpush.bf16.msra.mxu0 0
        %2198 = vmatpush.bf16.msra.mxu0 0
        %2199 = vmatpush.bf16.msra.mxu0 0
        %2200 = vmatpush.bf16.msra.mxu0 %v2185
        %2201 = vmatpush.bf16.msra.mxu0 %v2183
        %2202 = vmatmul.bf16.gmra.mxu0 %v2192
        %v2203 = vpop.f32.mrf.mxu0
        %v2204 = vadd.f32 0.0, %v2203
        %v2205 = vpop.f32.mrf.mxu0
        %2206 = vdwg.mxu0
        %2207 = vmatpush.bf16.msra.mxu0 0
        %2208 = vmatpush.bf16.msra.mxu0 0
        %2209 = vmatpush.bf16.msra.mxu0 0
        %2210 = vmatpush.bf16.msra.mxu0 0
        %2211 = vmatpush.bf16.msra.mxu0 0
        %2212 = vmatpush.bf16.msra.mxu0 0
        %2213 = vmatpush.bf16.msra.mxu0 %v2186
        %2214 = vmatpush.bf16.msra.mxu0 %v2184
        %2215 = vmatmul.bf16.gmra.mxu0 %v2192
        %v2216 = vpop.f32.mrf.mxu0
        %v2217 = vadd.f32 0.0, %v2216
        %v2218 = vpop.f32.mrf.mxu0
        %2219 = vdwg.mxu0
        %v2220 = vadd.f32 %v2153, %v2204
        %v2221 = vadd.f32 %v2166, %v2217
        %s2222 = scalar_lea.vmem [#allocation6], 3
        %v2223 = vld [vmem:[%s2222] sm:$0x1]
        %2224 = vrot.lane.b32.xlu0 %v2076, 125
        %v2225 = vpop.permute.xlu0 %2224
        %2226 = vrot.lane.b32.xlu0 %v2077, 125
        %v2227 = vpop.permute.xlu0 %2226
        %2228 = vrot.lane.b32.xlu0 %v2078, 125
        %v2229 = vpop.permute.xlu0 %2228
        %2230 = vrot.lane.b32.xlu0 %v2079, 125
        %v2231 = vpop.permute.xlu0 %2230
        %2232 = vrot.lane.b32.xlu0 %v2080, 125
        %v2233 = vpop.permute.xlu0 %2232
        %2234 = vrot.lane.b32.xlu0 %v2081, 125
        %v2235 = vpop.permute.xlu0 %2234
        %vm2236 = vcmask 1022976
        %v2237 = vsel %vm2236, %v2225, %v2227
        %v2238 = vsel %vm2236, %v2227, %v2229
        %v2239 = vsel %vm2236, %v2231, %v2233
        %v2240 = vsel %vm2236, %v2233, %v2235
        %v2246 = vsel %vm2110, %v2223, 0
        %2248 = vmatpush.bf16.msra.mxu0 0
        %2249 = vmatpush.bf16.msra.mxu0 0
        %2250 = vmatpush.bf16.msra.mxu0 0
        %2251 = vmatpush.bf16.msra.mxu0 0
        %2252 = vmatpush.bf16.msra.mxu0 0
        %2253 = vmatpush.bf16.msra.mxu0 0
        %2254 = vmatpush.bf16.msra.mxu0 %v2239
        %2255 = vmatpush.bf16.msra.mxu0 %v2237
        %2256 = vmatmul.bf16.gmra.mxu0 %v2246
        %v2257 = vpop.f32.mrf.mxu0
        %v2258 = vadd.f32 0.0, %v2257
        %v2259 = vpop.f32.mrf.mxu0
        %2260 = vdwg.mxu0
        %2261 = vmatpush.bf16.msra.mxu0 0
        %2262 = vmatpush.bf16.msra.mxu0 0
        %2263 = vmatpush.bf16.msra.mxu0 0
        %2264 = vmatpush.bf16.msra.mxu0 0
        %2265 = vmatpush.bf16.msra.mxu0 0
        %2266 = vmatpush.bf16.msra.mxu0 0
        %2267 = vmatpush.bf16.msra.mxu0 %v2240
        %2268 = vmatpush.bf16.msra.mxu0 %v2238
        %2269 = vmatmul.bf16.gmra.mxu0 %v2246
        %v2270 = vpop.f32.mrf.mxu0
        %v2271 = vadd.f32 0.0, %v2270
        %v2272 = vpop.f32.mrf.mxu0
        %2273 = vdwg.mxu0
        %v2274 = vadd.f32 %v2220, %v2258
        %v2275 = vadd.f32 %v2221, %v2271
        %s2276 = scalar_lea.vmem [#allocation6], 4
        %v2277 = vld [vmem:[%s2276] sm:$0x1]
        %2278 = vrot.lane.b32.xlu0 %v2076, 124
        %v2279 = vpop.permute.xlu0 %2278
        %2280 = vrot.lane.b32.xlu0 %v2077, 124
        %v2281 = vpop.permute.xlu0 %2280
        %2282 = vrot.lane.b32.xlu0 %v2078, 124
        %v2283 = vpop.permute.xlu0 %2282
        %2284 = vrot.lane.b32.xlu0 %v2079, 124
        %v2285 = vpop.permute.xlu0 %2284
        %2286 = vrot.lane.b32.xlu0 %v2080, 124
        %v2287 = vpop.permute.xlu0 %2286
        %2288 = vrot.lane.b32.xlu0 %v2081, 124
        %v2289 = vpop.permute.xlu0 %2288
        %v2290 = vsel %vm1489, %v2279, %v2281
        %v2291 = vsel %vm1489, %v2281, %v2283
        %v2292 = vsel %vm1489, %v2285, %v2287
        %v2293 = vsel %vm1489, %v2287, %v2289
        %v2299 = vsel %vm2110, %v2277, 0
        %2301 = vmatpush.bf16.msra.mxu0 0
        %2302 = vmatpush.bf16.msra.mxu0 0
        %2303 = vmatpush.bf16.msra.mxu0 0
        %2304 = vmatpush.bf16.msra.mxu0 0
        %2305 = vmatpush.bf16.msra.mxu0 0
        %2306 = vmatpush.bf16.msra.mxu0 0
        %2307 = vmatpush.bf16.msra.mxu0 %v2292
        %2308 = vmatpush.bf16.msra.mxu0 %v2290
        %2309 = vmatmul.bf16.gmra.mxu0 %v2299
        %v2310 = vpop.f32.mrf.mxu0
        %v2311 = vadd.f32 0.0, %v2310
        %v2312 = vpop.f32.mrf.mxu0
        %2313 = vdwg.mxu0
        %2314 = vmatpush.bf16.msra.mxu0 0
        %2315 = vmatpush.bf16.msra.mxu0 0
        %2316 = vmatpush.bf16.msra.mxu0 0
        %2317 = vmatpush.bf16.msra.mxu0 0
        %2318 = vmatpush.bf16.msra.mxu0 0
        %2319 = vmatpush.bf16.msra.mxu0 0
        %2320 = vmatpush.bf16.msra.mxu0 %v2293
        %2321 = vmatpush.bf16.msra.mxu0 %v2291
        %2322 = vmatmul.bf16.gmra.mxu0 %v2299
        %v2323 = vpop.f32.mrf.mxu0
        %v2324 = vadd.f32 0.0, %v2323
        %v2325 = vpop.f32.mrf.mxu0
        %2326 = vdwg.mxu0
        %v2327 = vadd.f32 %v2274, %v2311
        %v2328 = vadd.f32 %v2275, %v2324
        %s2329 = scalar_lea.vmem [#allocation6], 5
        %v2330 = vld [vmem:[%s2329] sm:$0x1]
        %2331 = vrot.lane.b32.xlu0 %v2076, 123
        %v2332 = vpop.permute.xlu0 %2331
        %2333 = vrot.lane.b32.xlu0 %v2077, 123
        %v2334 = vpop.permute.xlu0 %2333
        %2335 = vrot.lane.b32.xlu0 %v2078, 123
        %v2336 = vpop.permute.xlu0 %2335
        %2337 = vrot.lane.b32.xlu0 %v2079, 123
        %v2338 = vpop.permute.xlu0 %2337
        %2339 = vrot.lane.b32.xlu0 %v2080, 123
        %v2340 = vpop.permute.xlu0 %2339
        %2341 = vrot.lane.b32.xlu0 %v2081, 123
        %v2342 = vpop.permute.xlu0 %2341
        %vm2343 = vcmask 1006592
        %v2344 = vsel %vm2343, %v2332, %v2334
        %v2345 = vsel %vm2343, %v2334, %v2336
        %v2346 = vsel %vm2343, %v2338, %v2340
        %v2347 = vsel %vm2343, %v2340, %v2342
        %v2353 = vsel %vm2110, %v2330, 0
        %2355 = vmatpush.bf16.msra.mxu0 0
        %2356 = vmatpush.bf16.msra.mxu0 0
        %2357 = vmatpush.bf16.msra.mxu0 0
        %2358 = vmatpush.bf16.msra.mxu0 0
        %2359 = vmatpush.bf16.msra.mxu0 0
        %2360 = vmatpush.bf16.msra.mxu0 0
        %2361 = vmatpush.bf16.msra.mxu0 %v2346
        %2362 = vmatpush.bf16.msra.mxu0 %v2344
        %2363 = vmatmul.bf16.gmra.mxu0 %v2353
        %v2364 = vpop.f32.mrf.mxu0
        %v2365 = vadd.f32 0.0, %v2364
        %v2366 = vpop.f32.mrf.mxu0
        %2367 = vdwg.mxu0
        %2368 = vmatpush.bf16.msra.mxu0 0
        %2369 = vmatpush.bf16.msra.mxu0 0
        %2370 = vmatpush.bf16.msra.mxu0 0
        %2371 = vmatpush.bf16.msra.mxu0 0
        %2372 = vmatpush.bf16.msra.mxu0 0
        %2373 = vmatpush.bf16.msra.mxu0 0
        %2374 = vmatpush.bf16.msra.mxu0 %v2347
        %2375 = vmatpush.bf16.msra.mxu0 %v2345
        %2376 = vmatmul.bf16.gmra.mxu0 %v2353
        %v2377 = vpop.f32.mrf.mxu0
        %v2378 = vadd.f32 0.0, %v2377
        %v2379 = vpop.f32.mrf.mxu0
        %2380 = vdwg.mxu0
        %v2381 = vadd.f32 %v2327, %v2365
        %v2382 = vadd.f32 %v2328, %v2378
        %s2383 = scalar_lea.vmem [#allocation6], 6
        %v2384 = vld [vmem:[%s2383] sm:$0x1]
        %2385 = vrot.lane.b32.xlu0 %v2076, 122
        %v2386 = vpop.permute.xlu0 %2385
        %2387 = vrot.lane.b32.xlu0 %v2077, 122
        %v2388 = vpop.permute.xlu0 %2387
        %2389 = vrot.lane.b32.xlu0 %v2078, 122
        %v2390 = vpop.permute.xlu0 %2389
        %2391 = vrot.lane.b32.xlu0 %v2079, 122
        %v2392 = vpop.permute.xlu0 %2391
        %2393 = vrot.lane.b32.xlu0 %v2080, 122
        %v2394 = vpop.permute.xlu0 %2393
        %2395 = vrot.lane.b32.xlu0 %v2081, 122
        %v2396 = vpop.permute.xlu0 %2395
        %vm2397 = vcmask 998400
        %v2398 = vsel %vm2397, %v2386, %v2388
        %v2399 = vsel %vm2397, %v2388, %v2390
        %v2400 = vsel %vm2397, %v2392, %v2394
        %v2401 = vsel %vm2397, %v2394, %v2396
        %v2407 = vsel %vm2110, %v2384, 0
        %2409 = vmatpush.bf16.msra.mxu0 0
        %2410 = vmatpush.bf16.msra.mxu0 0
        %2411 = vmatpush.bf16.msra.mxu0 0
        %2412 = vmatpush.bf16.msra.mxu0 0
        %2413 = vmatpush.bf16.msra.mxu0 0
        %2414 = vmatpush.bf16.msra.mxu0 0
        %2415 = vmatpush.bf16.msra.mxu0 %v2400
        %2416 = vmatpush.bf16.msra.mxu0 %v2398
        %2417 = vmatmul.bf16.gmra.mxu0 %v2407
        %v2418 = vpop.f32.mrf.mxu0
        %v2419 = vadd.f32 0.0, %v2418
        %v2420 = vpop.f32.mrf.mxu0
        %2421 = vdwg.mxu0
        %2422 = vmatpush.bf16.msra.mxu0 0
        %2423 = vmatpush.bf16.msra.mxu0 0
        %2424 = vmatpush.bf16.msra.mxu0 0
        %2425 = vmatpush.bf16.msra.mxu0 0
        %2426 = vmatpush.bf16.msra.mxu0 0
        %2427 = vmatpush.bf16.msra.mxu0 0
        %2428 = vmatpush.bf16.msra.mxu0 %v2401
        %2429 = vmatpush.bf16.msra.mxu0 %v2399
        %2430 = vmatmul.bf16.gmra.mxu0 %v2407
        %v2431 = vpop.f32.mrf.mxu0
        %v2432 = vadd.f32 0.0, %v2431
        %v2433 = vpop.f32.mrf.mxu0
        %2434 = vdwg.mxu0
        %v2435 = vadd.f32 %v2381, %v2419
        %v2436 = vadd.f32 %v2382, %v2432
        %s2437 = scalar_lea.vmem [#allocation6], 7
        %v2438 = vld [vmem:[%s2437] sm:$0x1]
        %2439 = vrot.lane.b32.xlu0 %v2076, 121
        %v2440 = vpop.permute.xlu0 %2439
        %2441 = vrot.lane.b32.xlu0 %v2077, 121
        %v2442 = vpop.permute.xlu0 %2441
        %2443 = vrot.lane.b32.xlu0 %v2078, 121
        %v2444 = vpop.permute.xlu0 %2443
        %2445 = vrot.lane.b32.xlu0 %v2079, 121
        %v2446 = vpop.permute.xlu0 %2445
        %2447 = vrot.lane.b32.xlu0 %v2080, 121
        %v2448 = vpop.permute.xlu0 %2447
        %2449 = vrot.lane.b32.xlu0 %v2081, 121
        %v2450 = vpop.permute.xlu0 %2449
        %vm2451 = vcmask 990208
        %v2452 = vsel %vm2451, %v2440, %v2442
        %v2453 = vsel %vm2451, %v2442, %v2444
        %v2454 = vsel %vm2451, %v2446, %v2448
        %v2455 = vsel %vm2451, %v2448, %v2450
        %v2461 = vsel %vm2110, %v2438, 0
        %2463 = vmatpush.bf16.msra.mxu0 0
        %2464 = vmatpush.bf16.msra.mxu0 0
        %2465 = vmatpush.bf16.msra.mxu0 0
        %2466 = vmatpush.bf16.msra.mxu0 0
        %2467 = vmatpush.bf16.msra.mxu0 0
        %2468 = vmatpush.bf16.msra.mxu0 0
        %2469 = vmatpush.bf16.msra.mxu0 %v2454
        %2470 = vmatpush.bf16.msra.mxu0 %v2452
        %2471 = vmatmul.bf16.gmra.mxu0 %v2461
        %v2472 = vpop.f32.mrf.mxu0
        %v2473 = vadd.f32 0.0, %v2472
        %v2474 = vpop.f32.mrf.mxu0
        %2475 = vdwg.mxu0
        %2476 = vmatpush.bf16.msra.mxu0 0
        %2477 = vmatpush.bf16.msra.mxu0 0
        %2478 = vmatpush.bf16.msra.mxu0 0
        %2479 = vmatpush.bf16.msra.mxu0 0
        %2480 = vmatpush.bf16.msra.mxu0 0
        %2481 = vmatpush.bf16.msra.mxu0 0
        %2482 = vmatpush.bf16.msra.mxu0 %v2455
        %2483 = vmatpush.bf16.msra.mxu0 %v2453
        %2484 = vmatmul.bf16.gmra.mxu0 %v2461
        %v2485 = vpop.f32.mrf.mxu0
        %v2486 = vadd.f32 0.0, %v2485
        %v2487 = vpop.f32.mrf.mxu0
        %2488 = vdwg.mxu0
        %v2489 = vadd.f32 %v2435, %v2473
        %v2490 = vadd.f32 %v2436, %v2486
        %s2491 = scalar_lea.vmem [#allocation6], 8
        %v2492 = vld [vmem:[%s2491] sm:$0x1]
        %2493 = vrot.lane.b32.xlu0 %v2076, 120
        %v2494 = vpop.permute.xlu0 %2493
        %2495 = vrot.lane.b32.xlu0 %v2077, 120
        %v2496 = vpop.permute.xlu0 %2495
        %2497 = vrot.lane.b32.xlu0 %v2078, 120
        %v2498 = vpop.permute.xlu0 %2497
        %2499 = vrot.lane.b32.xlu0 %v2079, 120
        %v2500 = vpop.permute.xlu0 %2499
        %2501 = vrot.lane.b32.xlu0 %v2080, 120
        %v2502 = vpop.permute.xlu0 %2501
        %2503 = vrot.lane.b32.xlu0 %v2081, 120
        %v2504 = vpop.permute.xlu0 %2503
        %v2505 = vsel %vm1839, %v2494, %v2496
        %v2506 = vsel %vm1839, %v2496, %v2498
        %v2507 = vsel %vm1839, %v2500, %v2502
        %v2508 = vsel %vm1839, %v2502, %v2504
        %v2514 = vsel %vm2110, %v2492, 0
        %2516 = vmatpush.bf16.msra.mxu0 0
        %2517 = vmatpush.bf16.msra.mxu0 0
        %2518 = vmatpush.bf16.msra.mxu0 0
        %2519 = vmatpush.bf16.msra.mxu0 0
        %2520 = vmatpush.bf16.msra.mxu0 0
        %2521 = vmatpush.bf16.msra.mxu0 0
        %2522 = vmatpush.bf16.msra.mxu0 %v2507
        %2523 = vmatpush.bf16.msra.mxu0 %v2505
        %2524 = vmatmul.bf16.gmra.mxu0 %v2514
        %v2525 = vpop.f32.mrf.mxu0
        %v2526 = vadd.f32 0.0, %v2525
        %v2527 = vpop.f32.mrf.mxu0
        %2528 = vdwg.mxu0
        %2529 = vmatpush.bf16.msra.mxu0 0
        %2530 = vmatpush.bf16.msra.mxu0 0
        %2531 = vmatpush.bf16.msra.mxu0 0
        %2532 = vmatpush.bf16.msra.mxu0 0
        %2533 = vmatpush.bf16.msra.mxu0 0
        %2534 = vmatpush.bf16.msra.mxu0 0
        %2535 = vmatpush.bf16.msra.mxu0 %v2508
        %2536 = vmatpush.bf16.msra.mxu0 %v2506
        %2537 = vmatmul.bf16.gmra.mxu0 %v2514
        %v2538 = vpop.f32.mrf.mxu0
        %v2539 = vadd.f32 0.0, %v2538
        %v2540 = vpop.f32.mrf.mxu0
        %2541 = vdwg.mxu0
        %v2542 = vadd.f32 %v2489, %v2526
        %v2543 = vadd.f32 %v2490, %v2539
        %v2544 = vld [vmem:[#allocation4] sm:$0x1]
        %2546 = vset.pattern.permute.xlu0 0
        %2547 = vperm.xlu0 %2546, %v2544
        %v2548 = vpop.permute.xlu0 %2547
        %v2550 = vperm.slane %v2548, 0
        %v2551 = vadd.f32 %v2542, %v2550
        %v2552 = vadd.f32 %v2543, %v2550
        %vm2553 = vcmask 450560
        %v2554 = vsel %vm2553, %v2551, -inf
        %2555 = vmax.xlane.f32.xlu0 %v2554
        %v2556 = vpop.xlane.xlu0 %2555
        %v2557 = vsub.f32 %v2551, %v2556
        %v2558 = vmul.f32 %v2557, 1.442695
        %v2559 = vpow.pop %v2558
        %v2560 = vsel %vm2553, %v2559, 0.0
        %2561 = vadd.xlane.f32.xlu0 %v2560
        %v2562 = vpop.xlane.xlu0 %2561
        %v2563 = vrcp.pop %v2562
        %v2564 = vmul.f32 %v2559, %v2563
        %v2565 = vsel %vm2553, %v2552, -inf
        %2566 = vmax.xlane.f32.xlu0 %v2565
        %v2567 = vpop.xlane.xlu0 %2566
        %v2568 = vsub.f32 %v2552, %v2567
        %v2569 = vmul.f32 %v2568, 1.442695
        %v2570 = vpow.pop %v2569
        %v2571 = vsel %vm2553, %v2570, 0.0
        %2572 = vadd.xlane.f32.xlu0 %v2571
        %v2573 = vpop.xlane.xlu0 %2572
        %v2574 = vrcp.pop %v2573
        %v2575 = vmul.f32 %v2570, %v2574
        %2576 = vst.msk [vmem:[%s584] sm:$0x1] %vm2553, %v2564
        %2577 = vst.msk [vmem:[%s584 + $0x1] sm:$0x1] %vm2553, %v2575
        %v2578 = vld [vmem:[#allocation2 + $0x8] sm:$0xff]
        %v2579 = vld [vmem:[#allocation2 + $0x28] sm:$0xff]
        %v2580 = vld [vmem:[#allocation2 + $0x48] sm:$0xff]
        %v2581 = vld [vmem:[#allocation2 + $0x68] sm:$0xff]
        %v2582 = vsel %vm627, %v2578, 0.0
        %2583 = vadd.xlane.f32.xlu0 %v2582
        %v2584 = vpop.xlane.xlu0 %2583
        %v2585 = vsel %vm627, %v2579, 0.0
        %2586 = vadd.xlane.f32.xlu0 %v2585
        %v2587 = vpop.xlane.xlu0 %2586
        %v2588 = vsel %vm627, %v2580, 0.0
        %2589 = vadd.xlane.f32.xlu0 %v2588
        %v2590 = vpop.xlane.xlu0 %2589
        %v2591 = vsel %vm627, %v2581, 0.0
        %2592 = vadd.xlane.f32.xlu0 %v2591
        %v2593 = vpop.xlane.xlu0 %2592
        %v2594 = vrcp.pop 64.0
        %v2595 = vmul.f32 64.0, %v2594
        %v2596 = vsub.f32 1.0, %v2595
        %v2597 = vmul.f32 %v2594, %v2596
        %v2598 = vadd.f32 %v2594, %v2597
        %vm2599 = vweird.f32 %v2594
        %v2600 = vsel %vm2599, %v2594, %v2598
        %v2601 = vmul.f32 %v2584, %v2600
        %v2602 = vmul.f32 %v2587, %v2600
        %v2603 = vmul.f32 %v2590, %v2600
        %v2604 = vmul.f32 %v2593, %v2600
        %v2605 = vld [vmem:[#allocation2 + $0x10] sm:$0xff]
        %v2606 = vld [vmem:[#allocation2 + $0x30] sm:$0xff]
        %v2607 = vld [vmem:[#allocation2 + $0x50] sm:$0xff]
        %v2608 = vld [vmem:[#allocation2 + $0x70] sm:$0xff]
        %v2609 = vsel %vm627, %v2605, 0.0
        %2610 = vadd.xlane.f32.xlu0 %v2609
        %v2611 = vpop.xlane.xlu0 %2610
        %v2612 = vsel %vm627, %v2606, 0.0
        %2613 = vadd.xlane.f32.xlu0 %v2612
        %v2614 = vpop.xlane.xlu0 %2613
        %v2615 = vsel %vm627, %v2607, 0.0
        %2616 = vadd.xlane.f32.xlu0 %v2615
        %v2617 = vpop.xlane.xlu0 %2616
        %v2618 = vsel %vm627, %v2608, 0.0
        %2619 = vadd.xlane.f32.xlu0 %v2618
        %v2620 = vpop.xlane.xlu0 %2619
        %v2621 = vmul.f32 %v2611, %v2600
        %v2622 = vmul.f32 %v2614, %v2600
        %v2623 = vmul.f32 %v2617, %v2600
        %v2624 = vmul.f32 %v2620, %v2600
        %vm2625 = vcmask 7168
        %v2626 = vsel %vm2625, %v2601, %v2621
        %v2627 = vsel %vm2625, %v2602, %v2622
        %v2628 = vsel %vm2625, %v2603, %v2623
        %v2629 = vsel %vm2625, %v2604, %v2624
        %v2630 = vld [vmem:[#allocation9] sm:$0xff]
        %v2631 = vld [vmem:[#allocation9 + $0x8] sm:$0xff]
        %v2632 = vld [vmem:[#allocation9 + $0x10] sm:$0xff]
        %v2633 = vld [vmem:[#allocation9 + $0x18] sm:$0xff]
        %v2634 = vld [vmem:[#allocation11] sm:$0xff]
        %v2635 = vld [vmem:[#allocation11 + $0x8] sm:$0xff]
        %v2636 = vld [vmem:[#allocation11 + $0x10] sm:$0xff]
        %v2637 = vld [vmem:[#allocation11 + $0x18] sm:$0xff]
        %2639 = vset.pattern.permute.xlu0 0
        %2640 = vperm.xlu0 %2639, %v2634
        %v2641 = vpop.permute.xlu0 %2640
        %2644 = vset.pattern.permute.xlu0 0
        %2645 = vperm.xlu0 %2644, %v2635
        %v2646 = vpop.permute.xlu0 %2645
        %2649 = vset.pattern.permute.xlu0 0
        %2650 = vperm.xlu0 %2649, %v2636
        %v2651 = vpop.permute.xlu0 %2650
        %2654 = vset.pattern.permute.xlu0 0
        %2655 = vperm.xlu0 %2654, %v2637
        %v2656 = vpop.permute.xlu0 %2655
        %v2659 = vsel %vm2110, %v2630, 0
        %v2662 = vsel %vm2110, %v2631, 0
        %v2665 = vsel %vm2110, %v2632, 0
        %v2668 = vsel %vm2110, %v2633, 0
        %2670 = vmatpush.msra.mxu0 0.0
        %2671 = vmatpush.msra.mxu0 0.0
        %2672 = vmatpush.msra.mxu0 0.0
        %2673 = vmatpush.msra.mxu0 0.0
        %2674 = vmatpush.msra.mxu0 0.0
        %2675 = vmatpush.msra.mxu0 0.0
        %2676 = vmatpush.msra.mxu0 0.0
        %2677 = vmatpush.msra.mxu0 0.0
        %2678 = vmatpush.msra.mxu0 0.0
        %2679 = vmatpush.msra.mxu0 0.0
        %2680 = vmatpush.msra.mxu0 0.0
        %2681 = vmatpush.msra.mxu0 0.0
        %2682 = vmatpush.msra.mxu0 %v2629
        %2683 = vmatpush.msra.mxu0 %v2628
        %2684 = vmatpush.msra.mxu0 %v2627
        %2685 = vmatpush.msra.mxu0 %v2626
        %2686 = vmatmul.f32.gmra.mxu0 %v2659
        %v2687 = vpop.f32.mrf.mxu0
        %v2688 = vadd.f32 %v2641, %v2687
        %2689 = vmatmul.f32.gmra.mxu0 %v2662
        %v2690 = vpop.f32.mrf.mxu0
        %v2691 = vadd.f32 %v2646, %v2690
        %2692 = vmatmul.f32.gmra.mxu0 %v2665
        %v2693 = vpop.f32.mrf.mxu0
        %v2694 = vadd.f32 %v2651, %v2693
        %2695 = vmatmul.f32.gmra.mxu0 %v2668
        %v2696 = vpop.f32.mrf.mxu0
        %v2697 = vadd.f32 %v2656, %v2696
        %2698 = vdwg.mxu0
        %v2699 = vmax.f32 %v2688, 0.0
        %v2700 = vmax.f32 %v2691, 0.0
        %v2701 = vmax.f32 %v2694, 0.0
        %v2702 = vmax.f32 %v2697, 0.0
        %v2703 = vld [vmem:[#allocation12] sm:$0xff]
        %v2704 = vld [vmem:[#allocation12 + $0x8] sm:$0xff]
        %v2705 = vld [vmem:[#allocation12 + $0x10] sm:$0xff]
        %v2706 = vld [vmem:[#allocation12 + $0x18] sm:$0xff]
        %v2707 = vld [vmem:[#allocation14] sm:$0xff]
        %v2708 = vld [vmem:[#allocation14 + $0x8] sm:$0xff]
        %v2709 = vld [vmem:[#allocation14 + $0x10] sm:$0xff]
        %v2710 = vld [vmem:[#allocation14 + $0x18] sm:$0xff]
        %2712 = vset.pattern.permute.xlu0 0
        %2713 = vperm.xlu0 %2712, %v2707
        %v2714 = vpop.permute.xlu0 %2713
        %2717 = vset.pattern.permute.xlu0 0
        %2718 = vperm.xlu0 %2717, %v2708
        %v2719 = vpop.permute.xlu0 %2718
        %2722 = vset.pattern.permute.xlu0 0
        %2723 = vperm.xlu0 %2722, %v2709
        %v2724 = vpop.permute.xlu0 %2723
        %2727 = vset.pattern.permute.xlu0 0
        %2728 = vperm.xlu0 %2727, %v2710
        %v2729 = vpop.permute.xlu0 %2728
        %v2732 = vsel %vm2110, %v2703, 0
        %v2735 = vsel %vm2110, %v2704, 0
        %v2738 = vsel %vm2110, %v2705, 0
        %v2741 = vsel %vm2110, %v2706, 0
        %2743 = vmatpush.msra.mxu0 0.0
        %2744 = vmatpush.msra.mxu0 0.0
        %2745 = vmatpush.msra.mxu0 0.0
        %2746 = vmatpush.msra.mxu0 0.0
        %2747 = vmatpush.msra.mxu0 0.0
        %2748 = vmatpush.msra.mxu0 0.0
        %2749 = vmatpush.msra.mxu0 0.0
        %2750 = vmatpush.msra.mxu0 0.0
        %2751 = vmatpush.msra.mxu0 0.0
        %2752 = vmatpush.msra.mxu0 0.0
        %2753 = vmatpush.msra.mxu0 0.0
        %2754 = vmatpush.msra.mxu0 0.0
        %2755 = vmatpush.msra.mxu0 %v2702
        %2756 = vmatpush.msra.mxu0 %v2701
        %2757 = vmatpush.msra.mxu0 %v2700
        %2758 = vmatpush.msra.mxu0 %v2699
        %2759 = vmatmul.f32.gmra.mxu0 %v2732
        %v2760 = vpop.f32.mrf.mxu0
        %v2761 = vadd.f32 %v2714, %v2760
        %2762 = vmatmul.f32.gmra.mxu0 %v2735
        %v2763 = vpop.f32.mrf.mxu0
        %v2764 = vadd.f32 %v2719, %v2763
        %2765 = vmatmul.f32.gmra.mxu0 %v2738
        %v2766 = vpop.f32.mrf.mxu0
        %v2767 = vadd.f32 %v2724, %v2766
        %2768 = vmatmul.f32.gmra.mxu0 %v2741
        %v2769 = vpop.f32.mrf.mxu0
        %v2770 = vadd.f32 %v2729, %v2769
        %2771 = vdwg.mxu0
        %v2772 = vmax.f32 %v2761, 0.0
        %v2773 = vmax.f32 %v2764, 0.0
        %v2774 = vmax.f32 %v2767, 0.0
        %v2775 = vmax.f32 %v2770, 0.0
        %v2776 = vld [vmem:[#allocation15] sm:$0xff]
        %v2777 = vld [vmem:[#allocation15 + $0x8] sm:$0xff]
        %v2778 = vld [vmem:[#allocation15 + $0x10] sm:$0xff]
        %v2779 = vld [vmem:[#allocation15 + $0x18] sm:$0xff]
        %v2780 = vld [vmem:[#allocation17] sm:$0xff]
        %v2781 = vld [vmem:[#allocation17 + $0x8] sm:$0xff]
        %v2782 = vld [vmem:[#allocation17 + $0x10] sm:$0xff]
        %v2783 = vld [vmem:[#allocation17 + $0x18] sm:$0xff]
        %2785 = vset.pattern.permute.xlu0 0
        %2786 = vperm.xlu0 %2785, %v2780
        %v2787 = vpop.permute.xlu0 %2786
        %2790 = vset.pattern.permute.xlu0 0
        %2791 = vperm.xlu0 %2790, %v2781
        %v2792 = vpop.permute.xlu0 %2791
        %2795 = vset.pattern.permute.xlu0 0
        %2796 = vperm.xlu0 %2795, %v2782
        %v2797 = vpop.permute.xlu0 %2796
        %2800 = vset.pattern.permute.xlu0 0
        %2801 = vperm.xlu0 %2800, %v2783
        %v2802 = vpop.permute.xlu0 %2801
        %v2805 = vsel %vm2110, %v2776, 0
        %v2808 = vsel %vm2110, %v2777, 0
        %v2811 = vsel %vm2110, %v2778, 0
        %v2814 = vsel %vm2110, %v2779, 0
        %2816 = vmatpush.msra.mxu0 0.0
        %2817 = vmatpush.msra.mxu0 0.0
        %2818 = vmatpush.msra.mxu0 0.0
        %2819 = vmatpush.msra.mxu0 0.0
        %2820 = vmatpush.msra.mxu0 0.0
        %2821 = vmatpush.msra.mxu0 0.0
        %2822 = vmatpush.msra.mxu0 0.0
        %2823 = vmatpush.msra.mxu0 0.0
        %2824 = vmatpush.msra.mxu0 0.0
        %2825 = vmatpush.msra.mxu0 0.0
        %2826 = vmatpush.msra.mxu0 0.0
        %2827 = vmatpush.msra.mxu0 0.0
        %2828 = vmatpush.msra.mxu0 %v2775
        %2829 = vmatpush.msra.mxu0 %v2774
        %2830 = vmatpush.msra.mxu0 %v2773
        %2831 = vmatpush.msra.mxu0 %v2772
        %2832 = vmatmul.f32.gmra.mxu0 %v2805
        %v2833 = vpop.f32.mrf.mxu0
        %v2834 = vadd.f32 %v2787, %v2833
        %2835 = vmatmul.f32.gmra.mxu0 %v2808
        %v2836 = vpop.f32.mrf.mxu0
        %v2837 = vadd.f32 %v2792, %v2836
        %2838 = vmatmul.f32.gmra.mxu0 %v2811
        %v2839 = vpop.f32.mrf.mxu0
        %v2840 = vadd.f32 %v2797, %v2839
        %2841 = vmatmul.f32.gmra.mxu0 %v2814
        %v2842 = vpop.f32.mrf.mxu0
        %v2843 = vadd.f32 %v2802, %v2842
        %2844 = vdwg.mxu0
        %v2845 = vmax.f32 %v2834, 0.0
        %v2846 = vmax.f32 %v2837, 0.0
        %v2847 = vmax.f32 %v2840, 0.0
        %v2848 = vmax.f32 %v2843, 0.0
        %v2849 = vld [vmem:[%s11] sm:$0x1]
        %v2850 = vld [vmem:[#allocation5] sm:$0x1]
        %2852 = vset.pattern.permute.xlu0 0
        %2853 = vperm.xlu0 %2852, %v2850
        %v2854 = vpop.permute.xlu0 %2853
        %v2856 = vperm.slane %v2854, 0
        %v2858 = vsel %vm2110, %v2849, 0
        %2860 = vmatpush.msra.mxu0 0.0
        %2861 = vmatpush.msra.mxu0 0.0
        %2862 = vmatpush.msra.mxu0 0.0
        %2863 = vmatpush.msra.mxu0 0.0
        %2864 = vmatpush.msra.mxu0 0.0
        %2865 = vmatpush.msra.mxu0 0.0
        %2866 = vmatpush.msra.mxu0 0.0
        %2867 = vmatpush.msra.mxu0 0.0
        %2868 = vmatpush.msra.mxu0 0.0
        %2869 = vmatpush.msra.mxu0 0.0
        %2870 = vmatpush.msra.mxu0 0.0
        %2871 = vmatpush.msra.mxu0 0.0
        %2872 = vmatpush.msra.mxu0 %v2848
        %2873 = vmatpush.msra.mxu0 %v2847
        %2874 = vmatpush.msra.mxu0 %v2846
        %2875 = vmatpush.msra.mxu0 %v2845
        %2876 = vmatmul.f32.gmra.mxu0 %v2858
        %v2877 = vpop.f32.mrf.mxu0
        %v2878 = vadd.f32 %v2856, %v2877
        %2879 = vdwg.mxu0
        %v2880 = vmax.f32 %v2878, 0.0
        %v2881 = vand.u32 2147483647, %v2878
        %v2882 = vsub.f32 0.0, %v2881
        %v2883 = vmul.f32 %v2882, 1.442695
        %v2884 = vpow.pop %v2883
        %v2885 = vadd.f32 %v2884, 1.0
        %v2886 = vlog2.pop %v2885
        %v2887 = vmul.f32 %v2886, 0.6931472
        %v2888 = vmul.f32 -0.5, %v2884
        %v2889 = vadd.f32 %v2888, 1.0
        %v2890 = vmul.f32 %v2889, %v2884
        %v2891 = vand.u32 2147483647, %v2884
        %vm2892 = vcmp.lt.f32.partialorder %v2891, 0.0004427343
        %v2893 = vsel %vm2892, %v2890, %v2887
        %v2894 = vadd.f32 %v2880, %v2893
        %vm2895 = vcmask 8192
        %2896 = vst.msk [vmem:[%s600] sm:$0x1] %vm2895, %v2894
        %s2897 = sand.u32 %s323, 1
        %s2898 = scalar_lea.sflag [#allocation8], %s2897
        %s2899 = sand.u32 %s323, 1
        %s2900 = smul.addr %s2899, 2
        %s2901 = scalar_lea.vmem [#allocation18], %s2900
        %p2902 = scmp.lt.s32.totalorder %s37, 1
        %s2903 = scalar_select %p2902, %s37, 1
        %s2904 = scalar_lea.vmem %s14, %s2903
        // Predicated region
        $region101: #{_lambda_.1} parent=71 // pred_check
          %p2905 = pneg %p333
        $region102: #{_lambda_.1} parent=71 // pred_check_branch
          %2907 = sbr.rel (%p2905) target = $region104
        $region103: #{_lambda_.1} parent=71 // pred_region
          %s2908 = smul.u32 2, %s37
          %2910 = vsyncadd %s2898, 0
          %s2911 = scalar_lea.hbm %s13, %s2908
          %s2912 = sshll.u32 %s2901, 4
          %s2913 = int_to_ptr.vmem [resolvable:$true] %s2912
          %s2914 = sshll.u32 %s2911, 4
          %s2915 = int_to_ptr.hbm [resolvable:$true] %s2914
          %2920 = dma.vmem_to_hbm [thread:$0]  %s2913, 32, %s2915, %s2898, 16, 16, 1
        $region104: #{_lambda_.1} parent=71 // pred_fallthru
          _
        // Predicated region
        $region105: #{_lambda_.1} parent=71 // pred_check
          %p2921 = pneg %p359
        $region106: #{_lambda_.1} parent=71 // pred_check_branch
          %2923 = sbr.rel (%p2921) target = $region108
        $region107: #{_lambda_.1} parent=71 // pred_region
          _
        $region108: #{_lambda_.1} parent=71 // pred_fallthru
          _
      $region72: #{_lambda_.1} parent=5 // pred_fallthru
        _
      %p2924 = scmp.le.s32.totalorder 2, %s32
      // Predicated region
      $region109: #{_lambda_.1} parent=5 // pred_check
        %p2925 = pneg %p2924
      $region110: #{_lambda_.1} parent=5 // pred_check_branch
        %2927 = sbr.rel (%p2925) target = $region112
      $region111: #{_lambda_.1} parent=5 // pred_region
        %s2928 = ssub.s32 %s32, 2
        // Predicated region
        $region113: #{_lambda_.1} parent=111 // pred_check
          %p2929 = pneg %p339
        $region114: #{_lambda_.1} parent=111 // pred_check_branch
          %2931 = sbr.rel (%p2929) target = $region116
        $region115: #{_lambda_.1} parent=111 // pred_region
          %s2932 = sand.u32 %s324, 1
          %s2933 = scalar_lea.sflag [#allocation8], %s2932
          %s2934 = sand.u32 %s324, 1
          %s2935 = smul.addr %s2934, 2
          %s2936 = scalar_lea.vmem [#allocation18], %s2935
          %2938 = dma.done %s2933, 32
        $region116: #{_lambda_.1} parent=111 // pred_fallthru
          _
        // Predicated region
        $region117: #{_lambda_.1} parent=111 // pred_check
          %p2939 = pneg %p365
        $region118: #{_lambda_.1} parent=111 // pred_check_branch
          %2941 = sbr.rel (%p2939) target = $region120
        $region119: #{_lambda_.1} parent=111 // pred_region
          %p2942 = scmp.lt.s32.totalorder %s38, 1
          %s2943 = scalar_select %p2942, %s38, 1
          %s2944 = scalar_lea.vmem %s14, %s2943
        $region120: #{_lambda_.1} parent=111 // pred_fallthru
          _
      $region112: #{_lambda_.1} parent=5 // pred_fallthru
        _
    $region6: #{_lambda_.1} parent=1 // loop_footer
      %s36 = sadd.s32 1, %s32
    $region7: #{_lambda_.1} parent=1 // loop_footer_branch
      %31 = sbr.rel target = $region3
    $region8: #{_lambda_.1} parent=1 // loop_exit
      _
    %2945 = vsyncpa [#allocation7], 1
    %s2946 = scalar_lea.sflag [#allocation7], 1
    %2947 = vsyncpa %s2946, 1
    %2948 = vsyncpa [#allocation10], 1
    %2949 = vsyncpa [#allocation13], 1
    %2950 = vsyncpa [#allocation16], 1
    %2951 = vsyncpa [#allocation8], 1
    %s2952 = scalar_lea.sflag [#allocation8], 1
    %2953 = vsyncpa %s2952, 1

</llo_original>
